<compile_context>
chip_gen: v5e
topology: v5e:2x2
jax: 0.10.0
libtpu: 0.0.40
codegen_flags: <defaults>
</compile_context>

<pallas_src>
import functools
import math

import jax
import jax.numpy as jnp
from jax.experimental import pallas as pl
from jax.experimental.pallas import tpu as pltpu

EPS = 1e-6


# --------------------------------------------------------------- LN helper
def _ln(x, g, b):
    """Custom LayerNorm: unbiased std (D-1), eps added to std."""
    d = x.shape[-1]
    mean = jnp.mean(x, axis=-1, keepdims=True)
    xc = x - mean
    var_unbiased = jnp.sum(xc * xc, axis=-1, keepdims=True) * (1.0 / (d - 1))
    std = jnp.sqrt(var_unbiased)
    return g * xc / (std + EPS) + b


# ------------------------------------------- fused attention sublayer kernel
#   out = x + Wo(MHA(LN1(x), mask)) + bo           (one grid step per batch)
def _attn_layer_kernel(x_ref, mask_ref, g_ref, b_ref, wqkv_ref, bqkv_ref,
                       wo_ref, bo_ref, o_ref, *, heads):
    x = x_ref[0]                                        # (S, D) f32
    S, D = x.shape
    dk = D // heads
    scale = 1.0 / math.sqrt(dk)

    # pre-norm
    xn = _ln(x, g_ref[...], b_ref[...])                 # (S, D)

    # fused QKV projection: one (S,D) x (D,3D) matmul
    qkv = jnp.dot(xn, wqkv_ref[...],
                  preferred_element_type=jnp.float32) + bqkv_ref[...]
    q = qkv[:, 0 * D:1 * D]
    k = qkv[:, 1 * D:2 * D]
    v = qkv[:, 2 * D:3 * D]

    madd = mask_ref[0]                                   # (1, S) additive mask

    # multi-head attention, heads handled in-kernel (lane-contiguous D)
    head_outs = []
    for h in range(heads):
        lo, hi = h * dk, (h + 1) * dk
        qh = q[:, lo:hi] * scale                         # scale folded into Q
        kh = k[:, lo:hi]
        vh = v[:, lo:hi]
        s = jnp.dot(qh, kh.T, preferred_element_type=jnp.float32) + madd
        m = jnp.max(s, axis=-1, keepdims=True)
        e = jnp.exp(s - m)
        denom = jnp.sum(e, axis=-1, keepdims=True)
        p = e * pl.reciprocal(denom, approx=True)        # softmax on EUP recip
        head_outs.append(jnp.dot(p, vh, preferred_element_type=jnp.float32))
    a = jnp.concatenate(head_outs, axis=-1)              # (S, D), lane dense

    # output projection + residual
    y = jnp.dot(a, wo_ref[...], preferred_element_type=jnp.float32) + bo_ref[...]
    o_ref[0] = (x + y).astype(o_ref.dtype)


def attn_sublayer(x, mask_add, p, heads):
    B, S, D = x.shape
    kernel = functools.partial(_attn_layer_kernel, heads=heads)
    return pl.pallas_call(
        kernel,
        out_shape=jax.ShapeDtypeStruct((B, S, D), x.dtype),
        grid=(B,),
        in_specs=[
            pl.BlockSpec((1, S, D), lambda b: (b, 0, 0)),      # x
            pl.BlockSpec((1, 1, S), lambda b: (b, 0, 0)),      # additive mask
            pl.BlockSpec((1, D), lambda b: (0, 0)),            # ln1 gamma
            pl.BlockSpec((1, D), lambda b: (0, 0)),            # ln1 beta
            pl.BlockSpec((D, 3 * D), lambda b: (0, 0)),        # fused Wqkv
            pl.BlockSpec((1, 3 * D), lambda b: (0, 0)),        # fused bqkv
            pl.BlockSpec((D, D), lambda b: (0, 0)),            # Wo
            pl.BlockSpec((1, D), lambda b: (0, 0)),            # bo
        ],
        out_specs=pl.BlockSpec((1, S, D), lambda b: (b, 0, 0)),
        compiler_params=pltpu.CompilerParams(
            dimension_semantics=("parallel",)),
    )(x, mask_add,
      p["ln1_g"].reshape(1, D), p["ln1_b"].reshape(1, D),
      p["wqkv"], p["bqkv"].reshape(1, 3 * D),
      p["wo"], p["bo"].reshape(1, D))


# ------------------------------------------------ fused FFN sublayer kernel
#   out = x + W2(relu(W1(LN2(x)) + b1)) + b2        (row-tiled over B*S)
def _ffn_layer_kernel(x_ref, g_ref, b_ref, w1_ref, b1_ref, w2_ref, b2_ref,
                      o_ref):
    x = x_ref[...]                                      # (TR, D)
    xn = _ln(x, g_ref[...], b_ref[...])
    h = jnp.dot(xn, w1_ref[...], preferred_element_type=jnp.float32) + b1_ref[...]
    h = jnp.maximum(h, 0.0)                             # ReLU
    y = jnp.dot(h, w2_ref[...], preferred_element_type=jnp.float32) + b2_ref[...]
    o_ref[...] = (x + y).astype(o_ref.dtype)


def _row_tile(R):
    # full-array tile when small; otherwise large row tiles (amortize per-step
    # overhead, saturate the MXU M dimension).
    return R if R <= 512 else 512


def ffn_sublayer(x, p):
    B, S, D = x.shape
    Dff = p["w1"].shape[1]
    R = B * S
    TR = _row_tile(R)
    x2d = x.reshape(R, D)
    out = pl.pallas_call(
        _ffn_layer_kernel,
        out_shape=jax.ShapeDtypeStruct((R, D), x.dtype),
        grid=(pl.cdiv(R, TR),),
        in_specs=[
            pl.BlockSpec((TR, D), lambda i: (i, 0)),           # x rows
            pl.BlockSpec((1, D), lambda i: (0, 0)),            # ln2 gamma
            pl.BlockSpec((1, D), lambda i: (0, 0)),            # ln2 beta
            pl.BlockSpec((D, Dff), lambda i: (0, 0)),          # W1
            pl.BlockSpec((1, Dff), lambda i: (0, 0)),          # b1
            pl.BlockSpec((Dff, D), lambda i: (0, 0)),          # W2
            pl.BlockSpec((1, D), lambda i: (0, 0)),            # b2
        ],
        out_specs=pl.BlockSpec((TR, D), lambda i: (i, 0)),
        compiler_params=pltpu.CompilerParams(
            dimension_semantics=("parallel",)),
    )(x2d,
      p["ln2_g"].reshape(1, D), p["ln2_b"].reshape(1, D),
      p["w1"], p["b1"].reshape(1, Dff),
      p["w2"], p["b2"].reshape(1, D))
    return out.reshape(B, S, D)


# ------------------------------------------------------ final LayerNorm only
def _layernorm_rows_kernel(x_ref, g_ref, b_ref, o_ref):
    o_ref[...] = _ln(x_ref[...], g_ref[...], b_ref[...]).astype(o_ref.dtype)


def layernorm_rows(x2d, gamma, beta):
    R, D = x2d.shape
    TR = _row_tile(R)
    return pl.pallas_call(
        _layernorm_rows_kernel,
        out_shape=jax.ShapeDtypeStruct((R, D), x2d.dtype),
        grid=(pl.cdiv(R, TR),),
        in_specs=[
            pl.BlockSpec((TR, D), lambda i: (i, 0)),
            pl.BlockSpec((1, D), lambda i: (0, 0)),
            pl.BlockSpec((1, D), lambda i: (0, 0)),
        ],
        out_specs=pl.BlockSpec((TR, D), lambda i: (i, 0)),
        compiler_params=pltpu.CompilerParams(
            dimension_semantics=("parallel",)),
    )(x2d, gamma.reshape(1, D), beta.reshape(1, D))


# ----------------------------------------------------------- Encoder forward
def encoder_forward(x, mask, layer_params, final_g, final_b, heads):
    """Encoder.forward: pass x through each layer, then final LayerNorm."""
    # Additive mask (0 keep / -1e9 drop) computed once, reused by every layer.
    mask_add = jnp.where(mask == 0, jnp.float32(-1e9), jnp.float32(0.0))
    for p in layer_params:
        x = attn_sublayer(x, mask_add, p, heads)   # x + SelfAttn(LN1(x))
        x = ffn_sublayer(x, p)                     # x + FFN(LN2(x))
    B, S, D = x.shape
    return layernorm_rows(x.reshape(B * S, D), final_g, final_b).reshape(B, S, D)


# ----------------------------------------------------------- parameter init
def init_params(key, n_layers, d_model, d_ff):
    layers = []
    for _ in range(n_layers):
        keys = jax.random.split(key, 5)
        key = keys[0]
        s = 1.0 / math.sqrt(d_model)
        p = {
            # fused (D, 3D) QKV projection
            "wqkv": jax.random.normal(keys[1], (d_model, 3 * d_model),
                                      jnp.float32) * s,
            "bqkv": jnp.zeros((3 * d_model,), jnp.float32),
            "wo": jax.random.normal(keys[2], (d_model, d_model), jnp.float32) * s,
            "bo": jnp.zeros((d_model,), jnp.float32),
            "w1": jax.random.normal(keys[3], (d_model, d_ff), jnp.float32) * s,
            "b1": jnp.zeros((d_ff,), jnp.float32),
            "w2": jax.random.normal(keys[4], (d_ff, d_model), jnp.float32)
                  * (1.0 / math.sqrt(d_ff)),
            "b2": jnp.zeros((d_model,), jnp.float32),
            "ln1_g": jnp.ones((d_model,), jnp.float32),
            "ln1_b": jnp.zeros((d_model,), jnp.float32),
            "ln2_g": jnp.ones((d_model,), jnp.float32),
            "ln2_b": jnp.zeros((d_model,), jnp.float32),
        }
        layers.append(p)
    final_g = jnp.ones((d_model,), jnp.float32)
    final_b = jnp.zeros((d_model,), jnp.float32)
    return layers, final_g, final_b, key


if __name__ == "__main__":
    B, S, D, H, DFF, N = 2, 8, 32, 4, 64, 2

    root = jax.random.PRNGKey(0)
    kx, kp = jax.random.split(root)
    x = jax.random.normal(kx, (B, S, D), jnp.float32)
    mask = jnp.ones((B, 1, S), jnp.float32)   # encoder src mask (all valid)

    layer_params, final_g, final_b, _ = init_params(kp, N, D, DFF)

    # TODO(synk): dropout in SublayerConnection/attention omitted (p=0, eval).
    fwd = jax.jit(encoder_forward, static_argnames=("heads",))
    out = fwd(x, mask, layer_params, final_g, final_b, heads=H)
    out = jax.block_until_ready(out)
    assert out.shape == (B, S, D)
    assert bool(jnp.all(jnp.isfinite(out)))
    print("KERNEL_OK")
</pallas_src>

<mosaic_0001>
module attributes {stable_mosaic.version = 11 : i64} {
  func.func @_ffn_layer_kernel(%arg0: i32, %arg1: memref<16x32xf32, #tpu.memory_space<vmem>>, %arg2: memref<1x32xf32, #tpu.memory_space<vmem>>, %arg3: memref<1x32xf32, #tpu.memory_space<vmem>>, %arg4: memref<32x64xf32, #tpu.memory_space<vmem>>, %arg5: memref<1x64xf32, #tpu.memory_space<vmem>>, %arg6: memref<64x32xf32, #tpu.memory_space<vmem>>, %arg7: memref<1x32xf32, #tpu.memory_space<vmem>>, %arg8: memref<16x32xf32, #tpu.memory_space<vmem>>) attributes {dimension_semantics = [#tpu.dimension_semantics<parallel>], iteration_bounds = array<i64: 1>, scalar_prefetch = 0 : i64, scratch_operands = 0 : i64, tpu.core_type = #tpu.core_type<tc>, window_params = [{transform_indices = @transform_0, window_bounds = array<i64: 16, 32>}, {pipeline_mode = #tpu.pipeline_mode<synchronous>, transform_indices = @transform_1, window_bounds = array<i64: 1, 32>}, {pipeline_mode = #tpu.pipeline_mode<synchronous>, transform_indices = @transform_2, window_bounds = array<i64: 1, 32>}, {pipeline_mode = #tpu.pipeline_mode<synchronous>, transform_indices = @transform_3, window_bounds = array<i64: 32, 64>}, {pipeline_mode = #tpu.pipeline_mode<synchronous>, transform_indices = @transform_4, window_bounds = array<i64: 1, 64>}, {pipeline_mode = #tpu.pipeline_mode<synchronous>, transform_indices = @transform_5, window_bounds = array<i64: 64, 32>}, {pipeline_mode = #tpu.pipeline_mode<synchronous>, transform_indices = @transform_6, window_bounds = array<i64: 1, 32>}, {transform_indices = @transform_7, window_bounds = array<i64: 16, 32>}]} {
    %c0 = arith.constant 0 : index
    %c0_0 = arith.constant 0 : index
    %0 = vector.load %arg1[%c0, %c0_0] : memref<16x32xf32, #tpu.memory_space<vmem>>, vector<16x32xf32>
    %c0_1 = arith.constant 0 : index
    %c0_2 = arith.constant 0 : index
    %1 = vector.load %arg2[%c0_1, %c0_2] : memref<1x32xf32, #tpu.memory_space<vmem>>, vector<1x32xf32>
    %c0_3 = arith.constant 0 : index
    %c0_4 = arith.constant 0 : index
    %2 = vector.load %arg3[%c0_3, %c0_4] : memref<1x32xf32, #tpu.memory_space<vmem>>, vector<1x32xf32>
    %cst = arith.constant dense<0.000000e+00> : vector<16xf32>
    %3 = vector.multi_reduction <add>, %0, %cst [1] : vector<16x32xf32> to vector<16xf32>
    %4 = vector.shape_cast %3 : vector<16xf32> to vector<16x1xf32>
    %cst_5 = arith.constant 3.200000e+01 : f32
    %5 = vector.broadcast %cst_5 : f32 to vector<16x1xf32>
    %6 = arith.divf %4, %5 : vector<16x1xf32>
    %7 = vector.broadcast %6 : vector<16x1xf32> to vector<16x32xf32>
    %8 = arith.subf %0, %7 : vector<16x32xf32>
    %9 = arith.mulf %8, %8 : vector<16x32xf32>
    %cst_6 = arith.constant dense<0.000000e+00> : vector<16xf32>
    %10 = vector.multi_reduction <add>, %9, %cst_6 [1] : vector<16x32xf32> to vector<16xf32>
    %11 = vector.shape_cast %10 : vector<16xf32> to vector<16x1xf32>
    %cst_7 = arith.constant 0.0322580636 : f32
    %12 = vector.broadcast %cst_7 : f32 to vector<16x1xf32>
    %13 = arith.mulf %11, %12 : vector<16x1xf32>
    %14 = math.sqrt %13 : vector<16x1xf32>
    %15 = vector.broadcast %1 : vector<1x32xf32> to vector<16x32xf32>
    %16 = arith.mulf %15, %8 : vector<16x32xf32>
    %cst_8 = arith.constant 9.99999997E-7 : f32
    %17 = vector.broadcast %cst_8 : f32 to vector<16x1xf32>
    %18 = arith.addf %14, %17 : vector<16x1xf32>
    %19 = vector.broadcast %18 : vector<16x1xf32> to vector<16x32xf32>
    %20 = arith.divf %16, %19 : vector<16x32xf32>
    %21 = vector.broadcast %2 : vector<1x32xf32> to vector<16x32xf32>
    %22 = arith.addf %20, %21 : vector<16x32xf32>
    %c0_9 = arith.constant 0 : index
    %c0_10 = arith.constant 0 : index
    %23 = vector.load %arg4[%c0_9, %c0_10] : memref<32x64xf32, #tpu.memory_space<vmem>>, vector<32x64xf32>
    %cst_11 = arith.constant dense<0.000000e+00> : vector<16x64xf32>
    %24 = tpu.matmul %22, %23, %cst_11 {dimension_numbers = #tpu.dot_dimension_numbers<[1], [0], [0], [1], [0, 0, 1, 1], [], []>} : vector<16x32xf32>, vector<32x64xf32>, vector<16x64xf32> -> vector<16x64xf32>
    %c0_12 = arith.constant 0 : index
    %c0_13 = arith.constant 0 : index
    %25 = vector.load %arg5[%c0_12, %c0_13] : memref<1x64xf32, #tpu.memory_space<vmem>>, vector<1x64xf32>
    %26 = vector.broadcast %25 : vector<1x64xf32> to vector<16x64xf32>
    %27 = arith.addf %24, %26 : vector<16x64xf32>
    %cst_14 = arith.constant 0.000000e+00 : f32
    %28 = vector.broadcast %cst_14 : f32 to vector<16x64xf32>
    %29 = arith.maximumf %27, %28 : vector<16x64xf32>
    %c0_15 = arith.constant 0 : index
    %c0_16 = arith.constant 0 : index
    %30 = vector.load %arg6[%c0_15, %c0_16] : memref<64x32xf32, #tpu.memory_space<vmem>>, vector<64x32xf32>
    %cst_17 = arith.constant dense<0.000000e+00> : vector<16x32xf32>
    %31 = tpu.matmul %29, %30, %cst_17 {dimension_numbers = #tpu.dot_dimension_numbers<[1], [0], [0], [1], [0, 0, 1, 1], [], []>} : vector<16x64xf32>, vector<64x32xf32>, vector<16x32xf32> -> vector<16x32xf32>
    %c0_18 = arith.constant 0 : index
    %c0_19 = arith.constant 0 : index
    %32 = vector.load %arg7[%c0_18, %c0_19] : memref<1x32xf32, #tpu.memory_space<vmem>>, vector<1x32xf32>
    %33 = vector.broadcast %32 : vector<1x32xf32> to vector<16x32xf32>
    %34 = arith.addf %31, %33 : vector<16x32xf32>
    %35 = arith.addf %0, %34 : vector<16x32xf32>
    %c0_20 = arith.constant 0 : index
    %c0_21 = arith.constant 0 : index
    %36 = vector.load %arg8[%c0_20, %c0_21] : memref<16x32xf32, #tpu.memory_space<vmem>>, vector<16x32xf32>
    tpu.vector_store %arg8[%c0_20, %c0_21], %35 {strides = array<i32>} : memref<16x32xf32, #tpu.memory_space<vmem>>, vector<16x32xf32>,
    return
  }
  func.func @transform_0(%arg0: i32) -> (i32, i32) {
    %c0_i32 = arith.constant 0 : i32
    %c0_i32_0 = arith.constant 0 : i32
    return %arg0, %c0_i32 : i32, i32
  }
  func.func @transform_1(%arg0: i32) -> (i32, i32) {
    %c0_i32 = arith.constant 0 : i32
    %c0_i32_0 = arith.constant 0 : i32
    %c0_i32_1 = arith.constant 0 : i32
    return %c0_i32, %c0_i32_0 : i32, i32
  }
  func.func @transform_2(%arg0: i32) -> (i32, i32) {
    %c0_i32 = arith.constant 0 : i32
    %c0_i32_0 = arith.constant 0 : i32
    %c0_i32_1 = arith.constant 0 : i32
    return %c0_i32, %c0_i32_0 : i32, i32
  }
  func.func @transform_3(%arg0: i32) -> (i32, i32) {
    %c0_i32 = arith.constant 0 : i32
    %c0_i32_0 = arith.constant 0 : i32
    %c0_i32_1 = arith.constant 0 : i32
    return %c0_i32, %c0_i32_0 : i32, i32
  }
  func.func @transform_4(%arg0: i32) -> (i32, i32) {
    %c0_i32 = arith.constant 0 : i32
    %c0_i32_0 = arith.constant 0 : i32
    %c0_i32_1 = arith.constant 0 : i32
    return %c0_i32, %c0_i32_0 : i32, i32
  }
  func.func @transform_5(%arg0: i32) -> (i32, i32) {
    %c0_i32 = arith.constant 0 : i32
    %c0_i32_0 = arith.constant 0 : i32
    %c0_i32_1 = arith.constant 0 : i32
    return %c0_i32, %c0_i32_0 : i32, i32
  }
  func.func @transform_6(%arg0: i32) -> (i32, i32) {
    %c0_i32 = arith.constant 0 : i32
    %c0_i32_0 = arith.constant 0 : i32
    %c0_i32_1 = arith.constant 0 : i32
    return %c0_i32, %c0_i32_0 : i32, i32
  }
  func.func @transform_7(%arg0: i32) -> (i32, i32) {
    %c0_i32 = arith.constant 0 : i32
    %c0_i32_0 = arith.constant 0 : i32
    return %arg0, %c0_i32 : i32, i32
  }
}

module attributes {stable_mosaic.version = 11 : i64} {
  func.func @_attn_layer_kernel(%arg0: i32, %arg1: memref<1x8x32xf32, #tpu.memory_space<vmem>>, %arg2: memref<1x1x8xf32, #tpu.memory_space<vmem>>, %arg3: memref<1x32xf32, #tpu.memory_space<vmem>>, %arg4: memref<1x32xf32, #tpu.memory_space<vmem>>, %arg5: memref<32x96xf32, #tpu.memory_space<vmem>>, %arg6: memref<1x96xf32, #tpu.memory_space<vmem>>, %arg7: memref<32x32xf32, #tpu.memory_space<vmem>>, %arg8: memref<1x32xf32, #tpu.memory_space<vmem>>, %arg9: memref<1x8x32xf32, #tpu.memory_space<vmem>>) attributes {dimension_semantics = [#tpu.dimension_semantics<parallel>], iteration_bounds = array<i64: 2>, scalar_prefetch = 0 : i64, scratch_operands = 0 : i64, tpu.core_type = #tpu.core_type<tc>, window_params = [{transform_indices = @transform_0, window_bounds = array<i64: 1, 8, 32>}, {transform_indices = @transform_1, window_bounds = array<i64: 1, 1, 8>}, {pipeline_mode = #tpu.pipeline_mode<synchronous>, transform_indices = @transform_2, window_bounds = array<i64: 1, 32>}, {pipeline_mode = #tpu.pipeline_mode<synchronous>, transform_indices = @transform_3, window_bounds = array<i64: 1, 32>}, {pipeline_mode = #tpu.pipeline_mode<synchronous>, transform_indices = @transform_4, window_bounds = array<i64: 32, 96>}, {pipeline_mode = #tpu.pipeline_mode<synchronous>, transform_indices = @transform_5, window_bounds = array<i64: 1, 96>}, {pipeline_mode = #tpu.pipeline_mode<synchronous>, transform_indices = @transform_6, window_bounds = array<i64: 32, 32>}, {pipeline_mode = #tpu.pipeline_mode<synchronous>, transform_indices = @transform_7, window_bounds = array<i64: 1, 32>}, {transform_indices = @transform_8, window_bounds = array<i64: 1, 8, 32>}]} {
    %c0 = arith.constant 0 : index
    %c0_0 = arith.constant 0 : index
    %c0_1 = arith.constant 0 : index
    %0 = vector.load %arg1[%c0, %c0_0, %c0_1] : memref<1x8x32xf32, #tpu.memory_space<vmem>>, vector<1x8x32xf32>
    %1 = vector.shape_cast %0 : vector<1x8x32xf32> to vector<8x32xf32>
    %c0_2 = arith.constant 0 : index
    %c0_3 = arith.constant 0 : index
    %2 = vector.load %arg3[%c0_2, %c0_3] : memref<1x32xf32, #tpu.memory_space<vmem>>, vector<1x32xf32>
    %c0_4 = arith.constant 0 : index
    %c0_5 = arith.constant 0 : index
    %3 = vector.load %arg4[%c0_4, %c0_5] : memref<1x32xf32, #tpu.memory_space<vmem>>, vector<1x32xf32>
    %cst = arith.constant dense<0.000000e+00> : vector<8xf32>
    %4 = vector.multi_reduction <add>, %1, %cst [1] : vector<8x32xf32> to vector<8xf32>
    %5 = vector.shape_cast %4 : vector<8xf32> to vector<8x1xf32>
    %cst_6 = arith.constant 3.200000e+01 : f32
    %6 = vector.broadcast %cst_6 : f32 to vector<8x1xf32>
    %7 = arith.divf %5, %6 : vector<8x1xf32>
    %8 = vector.broadcast %7 : vector<8x1xf32> to vector<8x32xf32>
    %9 = arith.subf %1, %8 : vector<8x32xf32>
    %10 = arith.mulf %9, %9 : vector<8x32xf32>
    %cst_7 = arith.constant dense<0.000000e+00> : vector<8xf32>
    %11 = vector.multi_reduction <add>, %10, %cst_7 [1] : vector<8x32xf32> to vector<8xf32>
    %12 = vector.shape_cast %11 : vector<8xf32> to vector<8x1xf32>
    %cst_8 = arith.constant 0.0322580636 : f32
    %13 = vector.broadcast %cst_8 : f32 to vector<8x1xf32>
    %14 = arith.mulf %12, %13 : vector<8x1xf32>
    %15 = math.sqrt %14 : vector<8x1xf32>
    %16 = vector.broadcast %2 : vector<1x32xf32> to vector<8x32xf32>
    %17 = arith.mulf %16, %9 : vector<8x32xf32>
    %cst_9 = arith.constant 9.99999997E-7 : f32
    %18 = vector.broadcast %cst_9 : f32 to vector<8x1xf32>
    %19 = arith.addf %15, %18 : vector<8x1xf32>
    %20 = vector.broadcast %19 : vector<8x1xf32> to vector<8x32xf32>
    %21 = arith.divf %17, %20 : vector<8x32xf32>
    %22 = vector.broadcast %3 : vector<1x32xf32> to vector<8x32xf32>
    %23 = arith.addf %21, %22 : vector<8x32xf32>
    %c0_10 = arith.constant 0 : index
    %c0_11 = arith.constant 0 : index
    %24 = vector.load %arg5[%c0_10, %c0_11] : memref<32x96xf32, #tpu.memory_space<vmem>>, vector<32x96xf32>
    %cst_12 = arith.constant dense<0.000000e+00> : vector<8x96xf32>
    %25 = tpu.matmul %23, %24, %cst_12 {dimension_numbers = #tpu.dot_dimension_numbers<[1], [0], [0], [1], [0, 0, 1, 1], [], []>} : vector<8x32xf32>, vector<32x96xf32>, vector<8x96xf32> -> vector<8x96xf32>
    %c0_13 = arith.constant 0 : index
    %c0_14 = arith.constant 0 : index
    %26 = vector.load %arg6[%c0_13, %c0_14] : memref<1x96xf32, #tpu.memory_space<vmem>>, vector<1x96xf32>
    %27 = vector.broadcast %26 : vector<1x96xf32> to vector<8x96xf32>
    %28 = arith.addf %25, %27 : vector<8x96xf32>
    %29 = vector.extract_strided_slice %28 {offsets = [0, 0], sizes = [8, 32], strides = [1, 1]} : vector<8x96xf32> to vector<8x32xf32>
    %30 = vector.extract_strided_slice %28 {offsets = [0, 32], sizes = [8, 32], strides = [1, 1]} : vector<8x96xf32> to vector<8x32xf32>
    %31 = vector.extract_strided_slice %28 {offsets = [0, 64], sizes = [8, 32], strides = [1, 1]} : vector<8x96xf32> to vector<8x32xf32>
    %c0_15 = arith.constant 0 : index
    %c0_16 = arith.constant 0 : index
    %c0_17 = arith.constant 0 : index
    %32 = vector.load %arg2[%c0_15, %c0_16, %c0_17] : memref<1x1x8xf32, #tpu.memory_space<vmem>>, vector<1x1x8xf32>
    %33 = vector.shape_cast %32 : vector<1x1x8xf32> to vector<1x8xf32>
    %34 = vector.extract_strided_slice %29 {offsets = [0, 0], sizes = [8, 8], strides = [1, 1]} : vector<8x32xf32> to vector<8x8xf32>
    %cst_18 = arith.constant 0.353553385 : f32
    %35 = vector.broadcast %cst_18 : f32 to vector<8x8xf32>
    %36 = arith.mulf %34, %35 : vector<8x8xf32>
    %37 = vector.extract_strided_slice %30 {offsets = [0, 0], sizes = [8, 8], strides = [1, 1]} : vector<8x32xf32> to vector<8x8xf32>
    %38 = vector.extract_strided_slice %31 {offsets = [0, 0], sizes = [8, 8], strides = [1, 1]} : vector<8x32xf32> to vector<8x8xf32>
    %39 = tpu.transpose %37, [1, 0] : vector<8x8xf32> -> vector<8x8xf32>
    %cst_19 = arith.constant dense<0.000000e+00> : vector<8x8xf32>
    %40 = tpu.matmul %36, %39, %cst_19 {dimension_numbers = #tpu.dot_dimension_numbers<[1], [0], [0], [1], [0, 0, 1, 1], [], []>} : vector<8x8xf32>, vector<8x8xf32>, vector<8x8xf32> -> vector<8x8xf32>
    %41 = vector.broadcast %33 : vector<1x8xf32> to vector<8x8xf32>
    %42 = arith.addf %40, %41 : vector<8x8xf32>
    %cst_20 = arith.constant dense<0xFF800000> : vector<8xf32>
    %43 = vector.multi_reduction <maximumf>, %42, %cst_20 [1] : vector<8x8xf32> to vector<8xf32>
    %44 = vector.shape_cast %43 : vector<8xf32> to vector<8x1xf32>
    %45 = vector.broadcast %44 : vector<8x1xf32> to vector<8x8xf32>
    %46 = arith.subf %42, %45 : vector<8x8xf32>
    %47 = math.exp %46 : vector<8x8xf32>
    %cst_21 = arith.constant dense<0.000000e+00> : vector<8xf32>
    %48 = vector.multi_reduction <add>, %47, %cst_21 [1] : vector<8x8xf32> to vector<8xf32>
    %49 = vector.shape_cast %48 : vector<8xf32> to vector<8x1xf32>
    %50 = tpu.reciprocal %49 {approx = true} : vector<8x1xf32> -> vector<8x1xf32>
    %51 = vector.broadcast %50 : vector<8x1xf32> to vector<8x8xf32>
    %52 = arith.mulf %47, %51 : vector<8x8xf32>
    %cst_22 = arith.constant dense<0.000000e+00> : vector<8x8xf32>
    %53 = tpu.matmul %52, %38, %cst_22 {dimension_numbers = #tpu.dot_dimension_numbers<[1], [0], [0], [1], [0, 0, 1, 1], [], []>} : vector<8x8xf32>, vector<8x8xf32>, vector<8x8xf32> -> vector<8x8xf32>
    %54 = vector.extract_strided_slice %29 {offsets = [0, 8], sizes = [8, 8], strides = [1, 1]} : vector<8x32xf32> to vector<8x8xf32>
    %cst_23 = arith.constant 0.353553385 : f32
    %55 = vector.broadcast %cst_23 : f32 to vector<8x8xf32>
    %56 = arith.mulf %54, %55 : vector<8x8xf32>
    %57 = vector.extract_strided_slice %30 {offsets = [0, 8], sizes = [8, 8], strides = [1, 1]} : vector<8x32xf32> to vector<8x8xf32>
    %58 = vector.extract_strided_slice %31 {offsets = [0, 8], sizes = [8, 8], strides = [1, 1]} : vector<8x32xf32> to vector<8x8xf32>
    %59 = tpu.transpose %57, [1, 0] : vector<8x8xf32> -> vector<8x8xf32>
    %cst_24 = arith.constant dense<0.000000e+00> : vector<8x8xf32>
    %60 = tpu.matmul %56, %59, %cst_24 {dimension_numbers = #tpu.dot_dimension_numbers<[1], [0], [0], [1], [0, 0, 1, 1], [], []>} : vector<8x8xf32>, vector<8x8xf32>, vector<8x8xf32> -> vector<8x8xf32>
    %61 = vector.broadcast %33 : vector<1x8xf32> to vector<8x8xf32>
    %62 = arith.addf %60, %61 : vector<8x8xf32>
    %cst_25 = arith.constant dense<0xFF800000> : vector<8xf32>
    %63 = vector.multi_reduction <maximumf>, %62, %cst_25 [1] : vector<8x8xf32> to vector<8xf32>
    %64 = vector.shape_cast %63 : vector<8xf32> to vector<8x1xf32>
    %65 = vector.broadcast %64 : vector<8x1xf32> to vector<8x8xf32>
    %66 = arith.subf %62, %65 : vector<8x8xf32>
    %67 = math.exp %66 : vector<8x8xf32>
    %cst_26 = arith.constant dense<0.000000e+00> : vector<8xf32>
    %68 = vector.multi_reduction <add>, %67, %cst_26 [1] : vector<8x8xf32> to vector<8xf32>
    %69 = vector.shape_cast %68 : vector<8xf32> to vector<8x1xf32>
    %70 = tpu.reciprocal %69 {approx = true} : vector<8x1xf32> -> vector<8x1xf32>
    %71 = vector.broadcast %70 : vector<8x1xf32> to vector<8x8xf32>
    %72 = arith.mulf %67, %71 : vector<8x8xf32>
    %cst_27 = arith.constant dense<0.000000e+00> : vector<8x8xf32>
    %73 = tpu.matmul %72, %58, %cst_27 {dimension_numbers = #tpu.dot_dimension_numbers<[1], [0], [0], [1], [0, 0, 1, 1], [], []>} : vector<8x8xf32>, vector<8x8xf32>, vector<8x8xf32> -> vector<8x8xf32>
    %74 = vector.extract_strided_slice %29 {offsets = [0, 16], sizes = [8, 8], strides = [1, 1]} : vector<8x32xf32> to vector<8x8xf32>
    %cst_28 = arith.constant 0.353553385 : f32
    %75 = vector.broadcast %cst_28 : f32 to vector<8x8xf32>
    %76 = arith.mulf %74, %75 : vector<8x8xf32>
    %77 = vector.extract_strided_slice %30 {offsets = [0, 16], sizes = [8, 8], strides = [1, 1]} : vector<8x32xf32> to vector<8x8xf32>
    %78 = vector.extract_strided_slice %31 {offsets = [0, 16], sizes = [8, 8], strides = [1, 1]} : vector<8x32xf32> to vector<8x8xf32>
    %79 = tpu.transpose %77, [1, 0] : vector<8x8xf32> -> vector<8x8xf32>
    %cst_29 = arith.constant dense<0.000000e+00> : vector<8x8xf32>
    %80 = tpu.matmul %76, %79, %cst_29 {dimension_numbers = #tpu.dot_dimension_numbers<[1], [0], [0], [1], [0, 0, 1, 1], [], []>} : vector<8x8xf32>, vector<8x8xf32>, vector<8x8xf32> -> vector<8x8xf32>
    %81 = vector.broadcast %33 : vector<1x8xf32> to vector<8x8xf32>
    %82 = arith.addf %80, %81 : vector<8x8xf32>
    %cst_30 = arith.constant dense<0xFF800000> : vector<8xf32>
    %83 = vector.multi_reduction <maximumf>, %82, %cst_30 [1] : vector<8x8xf32> to vector<8xf32>
    %84 = vector.shape_cast %83 : vector<8xf32> to vector<8x1xf32>
    %85 = vector.broadcast %84 : vector<8x1xf32> to vector<8x8xf32>
    %86 = arith.subf %82, %85 : vector<8x8xf32>
    %87 = math.exp %86 : vector<8x8xf32>
    %cst_31 = arith.constant dense<0.000000e+00> : vector<8xf32>
    %88 = vector.multi_reduction <add>, %87, %cst_31 [1] : vector<8x8xf32> to vector<8xf32>
    %89 = vector.shape_cast %88 : vector<8xf32> to vector<8x1xf32>
    %90 = tpu.reciprocal %89 {approx = true} : vector<8x1xf32> -> vector<8x1xf32>
    %91 = vector.broadcast %90 : vector<8x1xf32> to vector<8x8xf32>
    %92 = arith.mulf %87, %91 : vector<8x8xf32>
    %cst_32 = arith.constant dense<0.000000e+00> : vector<8x8xf32>
    %93 = tpu.matmul %92, %78, %cst_32 {dimension_numbers = #tpu.dot_dimension_numbers<[1], [0], [0], [1], [0, 0, 1, 1], [], []>} : vector<8x8xf32>, vector<8x8xf32>, vector<8x8xf32> -> vector<8x8xf32>
    %94 = vector.extract_strided_slice %29 {offsets = [0, 24], sizes = [8, 8], strides = [1, 1]} : vector<8x32xf32> to vector<8x8xf32>
    %cst_33 = arith.constant 0.353553385 : f32
    %95 = vector.broadcast %cst_33 : f32 to vector<8x8xf32>
    %96 = arith.mulf %94, %95 : vector<8x8xf32>
    %97 = vector.extract_strided_slice %30 {offsets = [0, 24], sizes = [8, 8], strides = [1, 1]} : vector<8x32xf32> to vector<8x8xf32>
    %98 = vector.extract_strided_slice %31 {offsets = [0, 24], sizes = [8, 8], strides = [1, 1]} : vector<8x32xf32> to vector<8x8xf32>
    %99 = tpu.transpose %97, [1, 0] : vector<8x8xf32> -> vector<8x8xf32>
    %cst_34 = arith.constant dense<0.000000e+00> : vector<8x8xf32>
    %100 = tpu.matmul %96, %99, %cst_34 {dimension_numbers = #tpu.dot_dimension_numbers<[1], [0], [0], [1], [0, 0, 1, 1], [], []>} : vector<8x8xf32>, vector<8x8xf32>, vector<8x8xf32> -> vector<8x8xf32>
    %101 = vector.broadcast %33 : vector<1x8xf32> to vector<8x8xf32>
    %102 = arith.addf %100, %101 : vector<8x8xf32>
    %cst_35 = arith.constant dense<0xFF800000> : vector<8xf32>
    %103 = vector.multi_reduction <maximumf>, %102, %cst_35 [1] : vector<8x8xf32> to vector<8xf32>
    %104 = vector.shape_cast %103 : vector<8xf32> to vector<8x1xf32>
    %105 = vector.broadcast %104 : vector<8x1xf32> to vector<8x8xf32>
    %106 = arith.subf %102, %105 : vector<8x8xf32>
    %107 = math.exp %106 : vector<8x8xf32>
    %cst_36 = arith.constant dense<0.000000e+00> : vector<8xf32>
    %108 = vector.multi_reduction <add>, %107, %cst_36 [1] : vector<8x8xf32> to vector<8xf32>
    %109 = vector.shape_cast %108 : vector<8xf32> to vector<8x1xf32>
    %110 = tpu.reciprocal %109 {approx = true} : vector<8x1xf32> -> vector<8x1xf32>
    %111 = vector.broadcast %110 : vector<8x1xf32> to vector<8x8xf32>
    %112 = arith.mulf %107, %111 : vector<8x8xf32>
    %cst_37 = arith.constant dense<0.000000e+00> : vector<8x8xf32>
    %113 = tpu.matmul %112, %98, %cst_37 {dimension_numbers = #tpu.dot_dimension_numbers<[1], [0], [0], [1], [0, 0, 1, 1], [], []>} : vector<8x8xf32>, vector<8x8xf32>, vector<8x8xf32> -> vector<8x8xf32>
    %114 = tpu.concatenate %53, %73, %93, %113 in 1 : vector<8x8xf32>, vector<8x8xf32>, vector<8x8xf32>, vector<8x8xf32> -> vector<8x32xf32>
    %c0_38 = arith.constant 0 : index
    %c0_39 = arith.constant 0 : index
    %115 = vector.load %arg7[%c0_38, %c0_39] : memref<32x32xf32, #tpu.memory_space<vmem>>, vector<32x32xf32>
    %cst_40 = arith.constant dense<0.000000e+00> : vector<8x32xf32>
    %116 = tpu.matmul %114, %115, %cst_40 {dimension_numbers = #tpu.dot_dimension_numbers<[1], [0], [0], [1], [0, 0, 1, 1], [], []>} : vector<8x32xf32>, vector<32x32xf32>, vector<8x32xf32> -> vector<8x32xf32>
    %c0_41 = arith.constant 0 : index
    %c0_42 = arith.constant 0 : index
    %117 = vector.load %arg8[%c0_41, %c0_42] : memref<1x32xf32, #tpu.memory_space<vmem>>, vector<1x32xf32>
    %118 = vector.broadcast %117 : vector<1x32xf32> to vector<8x32xf32>
    %119 = arith.addf %116, %118 : vector<8x32xf32>
    %120 = arith.addf %1, %119 : vector<8x32xf32>
    %c0_43 = arith.constant 0 : index
    %c0_44 = arith.constant 0 : index
    %c0_45 = arith.constant 0 : index
    %121 = vector.load %arg9[%c0_43, %c0_44, %c0_45] : memref<1x8x32xf32, #tpu.memory_space<vmem>>, vector<1x8x32xf32>
    %122 = vector.shape_cast %121 : vector<1x8x32xf32> to vector<8x32xf32>
    %123 = vector.shape_cast %120 : vector<8x32xf32> to vector<1x8x32xf32>
    tpu.vector_store %arg9[%c0_43, %c0_44, %c0_45], %123 {strides = array<i32>} : memref<1x8x32xf32, #tpu.memory_space<vmem>>, vector<1x8x32xf32>,
    return
  }
  func.func @transform_0(%arg0: i32) -> (i32, i32, i32) {
    %c0_i32 = arith.constant 0 : i32
    %c0_i32_0 = arith.constant 0 : i32
    %c0_i32_1 = arith.constant 0 : i32
    return %arg0, %c0_i32, %c0_i32_0 : i32, i32, i32
  }
  func.func @transform_1(%arg0: i32) -> (i32, i32, i32) {
    %c0_i32 = arith.constant 0 : i32
    %c0_i32_0 = arith.constant 0 : i32
    %c0_i32_1 = arith.constant 0 : i32
    return %arg0, %c0_i32, %c0_i32_0 : i32, i32, i32
  }
  func.func @transform_2(%arg0: i32) -> (i32, i32) {
    %c0_i32 = arith.constant 0 : i32
    %c0_i32_0 = arith.constant 0 : i32
    %c0_i32_1 = arith.constant 0 : i32
    return %c0_i32, %c0_i32_0 : i32, i32
  }
  func.func @transform_3(%arg0: i32) -> (i32, i32) {
    %c0_i32 = arith.constant 0 : i32
    %c0_i32_0 = arith.constant 0 : i32
    %c0_i32_1 = arith.constant 0 : i32
    return %c0_i32, %c0_i32_0 : i32, i32
  }
  func.func @transform_4(%arg0: i32) -> (i32, i32) {
    %c0_i32 = arith.constant 0 : i32
    %c0_i32_0 = arith.constant 0 : i32
    %c0_i32_1 = arith.constant 0 : i32
    return %c0_i32, %c0_i32_0 : i32, i32
  }
  func.func @transform_5(%arg0: i32) -> (i32, i32) {
    %c0_i32 = arith.constant 0 : i32
    %c0_i32_0 = arith.constant 0 : i32
    %c0_i32_1 = arith.constant 0 : i32
    return %c0_i32, %c0_i32_0 : i32, i32
  }
  func.func @transform_6(%arg0: i32) -> (i32, i32) {
    %c0_i32 = arith.constant 0 : i32
    %c0_i32_0 = arith.constant 0 : i32
    %c0_i32_1 = arith.constant 0 : i32
    return %c0_i32, %c0_i32_0 : i32, i32
  }
  func.func @transform_7(%arg0: i32) -> (i32, i32) {
    %c0_i32 = arith.constant 0 : i32
    %c0_i32_0 = arith.constant 0 : i32
    %c0_i32_1 = arith.constant 0 : i32
    return %c0_i32, %c0_i32_0 : i32, i32
  }
  func.func @transform_8(%arg0: i32) -> (i32, i32, i32) {
    %c0_i32 = arith.constant 0 : i32
    %c0_i32_0 = arith.constant 0 : i32
    %c0_i32_1 = arith.constant 0 : i32
    return %arg0, %c0_i32, %c0_i32_0 : i32, i32, i32
  }
}

module attributes {stable_mosaic.version = 11 : i64} {
  func.func @_ffn_layer_kernel(%arg0: i32, %arg1: memref<16x32xf32, #tpu.memory_space<vmem>>, %arg2: memref<1x32xf32, #tpu.memory_space<vmem>>, %arg3: memref<1x32xf32, #tpu.memory_space<vmem>>, %arg4: memref<32x64xf32, #tpu.memory_space<vmem>>, %arg5: memref<1x64xf32, #tpu.memory_space<vmem>>, %arg6: memref<64x32xf32, #tpu.memory_space<vmem>>, %arg7: memref<1x32xf32, #tpu.memory_space<vmem>>, %arg8: memref<16x32xf32, #tpu.memory_space<vmem>>) attributes {dimension_semantics = [#tpu.dimension_semantics<parallel>], iteration_bounds = array<i64: 1>, scalar_prefetch = 0 : i64, scratch_operands = 0 : i64, tpu.core_type = #tpu.core_type<tc>, window_params = [{transform_indices = @transform_0, window_bounds = array<i64: 16, 32>}, {pipeline_mode = #tpu.pipeline_mode<synchronous>, transform_indices = @transform_1, window_bounds = array<i64: 1, 32>}, {pipeline_mode = #tpu.pipeline_mode<synchronous>, transform_indices = @transform_2, window_bounds = array<i64: 1, 32>}, {pipeline_mode = #tpu.pipeline_mode<synchronous>, transform_indices = @transform_3, window_bounds = array<i64: 32, 64>}, {pipeline_mode = #tpu.pipeline_mode<synchronous>, transform_indices = @transform_4, window_bounds = array<i64: 1, 64>}, {pipeline_mode = #tpu.pipeline_mode<synchronous>, transform_indices = @transform_5, window_bounds = array<i64: 64, 32>}, {pipeline_mode = #tpu.pipeline_mode<synchronous>, transform_indices = @transform_6, window_bounds = array<i64: 1, 32>}, {transform_indices = @transform_7, window_bounds = array<i64: 16, 32>}]} {
    %c0 = arith.constant 0 : index
    %c0_0 = arith.constant 0 : index
    %0 = vector.load %arg1[%c0, %c0_0] : memref<16x32xf32, #tpu.memory_space<vmem>>, vector<16x32xf32>
    %c0_1 = arith.constant 0 : index
    %c0_2 = arith.constant 0 : index
    %1 = vector.load %arg2[%c0_1, %c0_2] : memref<1x32xf32, #tpu.memory_space<vmem>>, vector<1x32xf32>
    %c0_3 = arith.constant 0 : index
    %c0_4 = arith.constant 0 : index
    %2 = vector.load %arg3[%c0_3, %c0_4] : memref<1x32xf32, #tpu.memory_space<vmem>>, vector<1x32xf32>
    %cst = arith.constant dense<0.000000e+00> : vector<16xf32>
    %3 = vector.multi_reduction <add>, %0, %cst [1] : vector<16x32xf32> to vector<16xf32>
    %4 = vector.shape_cast %3 : vector<16xf32> to vector<16x1xf32>
    %cst_5 = arith.constant 3.200000e+01 : f32
    %5 = vector.broadcast %cst_5 : f32 to vector<16x1xf32>
    %6 = arith.divf %4, %5 : vector<16x1xf32>
    %7 = vector.broadcast %6 : vector<16x1xf32> to vector<16x32xf32>
    %8 = arith.subf %0, %7 : vector<16x32xf32>
    %9 = arith.mulf %8, %8 : vector<16x32xf32>
    %cst_6 = arith.constant dense<0.000000e+00> : vector<16xf32>
    %10 = vector.multi_reduction <add>, %9, %cst_6 [1] : vector<16x32xf32> to vector<16xf32>
    %11 = vector.shape_cast %10 : vector<16xf32> to vector<16x1xf32>
    %cst_7 = arith.constant 0.0322580636 : f32
    %12 = vector.broadcast %cst_7 : f32 to vector<16x1xf32>
    %13 = arith.mulf %11, %12 : vector<16x1xf32>
    %14 = math.sqrt %13 : vector<16x1xf32>
    %15 = vector.broadcast %1 : vector<1x32xf32> to vector<16x32xf32>
    %16 = arith.mulf %15, %8 : vector<16x32xf32>
    %cst_8 = arith.constant 9.99999997E-7 : f32
    %17 = vector.broadcast %cst_8 : f32 to vector<16x1xf32>
    %18 = arith.addf %14, %17 : vector<16x1xf32>
    %19 = vector.broadcast %18 : vector<16x1xf32> to vector<16x32xf32>
    %20 = arith.divf %16, %19 : vector<16x32xf32>
    %21 = vector.broadcast %2 : vector<1x32xf32> to vector<16x32xf32>
    %22 = arith.addf %20, %21 : vector<16x32xf32>
    %c0_9 = arith.constant 0 : index
    %c0_10 = arith.constant 0 : index
    %23 = vector.load %arg4[%c0_9, %c0_10] : memref<32x64xf32, #tpu.memory_space<vmem>>, vector<32x64xf32>
    %cst_11 = arith.constant dense<0.000000e+00> : vector<16x64xf32>
    %24 = tpu.matmul %22, %23, %cst_11 {dimension_numbers = #tpu.dot_dimension_numbers<[1], [0], [0], [1], [0, 0, 1, 1], [], []>} : vector<16x32xf32>, vector<32x64xf32>, vector<16x64xf32> -> vector<16x64xf32>
    %c0_12 = arith.constant 0 : index
    %c0_13 = arith.constant 0 : index
    %25 = vector.load %arg5[%c0_12, %c0_13] : memref<1x64xf32, #tpu.memory_space<vmem>>, vector<1x64xf32>
    %26 = vector.broadcast %25 : vector<1x64xf32> to vector<16x64xf32>
    %27 = arith.addf %24, %26 : vector<16x64xf32>
    %cst_14 = arith.constant 0.000000e+00 : f32
    %28 = vector.broadcast %cst_14 : f32 to vector<16x64xf32>
    %29 = arith.maximumf %27, %28 : vector<16x64xf32>
    %c0_15 = arith.constant 0 : index
    %c0_16 = arith.constant 0 : index
    %30 = vector.load %arg6[%c0_15, %c0_16] : memref<64x32xf32, #tpu.memory_space<vmem>>, vector<64x32xf32>
    %cst_17 = arith.constant dense<0.000000e+00> : vector<16x32xf32>
    %31 = tpu.matmul %29, %30, %cst_17 {dimension_numbers = #tpu.dot_dimension_numbers<[1], [0], [0], [1], [0, 0, 1, 1], [], []>} : vector<16x64xf32>, vector<64x32xf32>, vector<16x32xf32> -> vector<16x32xf32>
    %c0_18 = arith.constant 0 : index
    %c0_19 = arith.constant 0 : index
    %32 = vector.load %arg7[%c0_18, %c0_19] : memref<1x32xf32, #tpu.memory_space<vmem>>, vector<1x32xf32>
    %33 = vector.broadcast %32 : vector<1x32xf32> to vector<16x32xf32>
    %34 = arith.addf %31, %33 : vector<16x32xf32>
    %35 = arith.addf %0, %34 : vector<16x32xf32>
    %c0_20 = arith.constant 0 : index
    %c0_21 = arith.constant 0 : index
    %36 = vector.load %arg8[%c0_20, %c0_21] : memref<16x32xf32, #tpu.memory_space<vmem>>, vector<16x32xf32>
    tpu.vector_store %arg8[%c0_20, %c0_21], %35 {strides = array<i32>} : memref<16x32xf32, #tpu.memory_space<vmem>>, vector<16x32xf32>,
    return
  }
  func.func @transform_0(%arg0: i32) -> (i32, i32) {
    %c0_i32 = arith.constant 0 : i32
    %c0_i32_0 = arith.constant 0 : i32
    return %arg0, %c0_i32 : i32, i32
  }
  func.func @transform_1(%arg0: i32) -> (i32, i32) {
    %c0_i32 = arith.constant 0 : i32
    %c0_i32_0 = arith.constant 0 : i32
    %c0_i32_1 = arith.constant 0 : i32
    return %c0_i32, %c0_i32_0 : i32, i32
  }
  func.func @transform_2(%arg0: i32) -> (i32, i32) {
    %c0_i32 = arith.constant 0 : i32
    %c0_i32_0 = arith.constant 0 : i32
    %c0_i32_1 = arith.constant 0 : i32
    return %c0_i32, %c0_i32_0 : i32, i32
  }
  func.func @transform_3(%arg0: i32) -> (i32, i32) {
    %c0_i32 = arith.constant 0 : i32
    %c0_i32_0 = arith.constant 0 : i32
    %c0_i32_1 = arith.constant 0 : i32
    return %c0_i32, %c0_i32_0 : i32, i32
  }
  func.func @transform_4(%arg0: i32) -> (i32, i32) {
    %c0_i32 = arith.constant 0 : i32
    %c0_i32_0 = arith.constant 0 : i32
    %c0_i32_1 = arith.constant 0 : i32
    return %c0_i32, %c0_i32_0 : i32, i32
  }
  func.func @transform_5(%arg0: i32) -> (i32, i32) {
    %c0_i32 = arith.constant 0 : i32
    %c0_i32_0 = arith.constant 0 : i32
    %c0_i32_1 = arith.constant 0 : i32
    return %c0_i32, %c0_i32_0 : i32, i32
  }
  func.func @transform_6(%arg0: i32) -> (i32, i32) {
    %c0_i32 = arith.constant 0 : i32
    %c0_i32_0 = arith.constant 0 : i32
    %c0_i32_1 = arith.constant 0 : i32
    return %c0_i32, %c0_i32_0 : i32, i32
  }
  func.func @transform_7(%arg0: i32) -> (i32, i32) {
    %c0_i32 = arith.constant 0 : i32
    %c0_i32_0 = arith.constant 0 : i32
    return %arg0, %c0_i32 : i32, i32
  }
}

module attributes {stable_mosaic.version = 11 : i64} {
  func.func @_attn_layer_kernel(%arg0: i32, %arg1: memref<1x8x32xf32, #tpu.memory_space<vmem>>, %arg2: memref<1x1x8xf32, #tpu.memory_space<vmem>>, %arg3: memref<1x32xf32, #tpu.memory_space<vmem>>, %arg4: memref<1x32xf32, #tpu.memory_space<vmem>>, %arg5: memref<32x96xf32, #tpu.memory_space<vmem>>, %arg6: memref<1x96xf32, #tpu.memory_space<vmem>>, %arg7: memref<32x32xf32, #tpu.memory_space<vmem>>, %arg8: memref<1x32xf32, #tpu.memory_space<vmem>>, %arg9: memref<1x8x32xf32, #tpu.memory_space<vmem>>) attributes {dimension_semantics = [#tpu.dimension_semantics<parallel>], iteration_bounds = array<i64: 2>, scalar_prefetch = 0 : i64, scratch_operands = 0 : i64, tpu.core_type = #tpu.core_type<tc>, window_params = [{transform_indices = @transform_0, window_bounds = array<i64: 1, 8, 32>}, {transform_indices = @transform_1, window_bounds = array<i64: 1, 1, 8>}, {pipeline_mode = #tpu.pipeline_mode<synchronous>, transform_indices = @transform_2, window_bounds = array<i64: 1, 32>}, {pipeline_mode = #tpu.pipeline_mode<synchronous>, transform_indices = @transform_3, window_bounds = array<i64: 1, 32>}, {pipeline_mode = #tpu.pipeline_mode<synchronous>, transform_indices = @transform_4, window_bounds = array<i64: 32, 96>}, {pipeline_mode = #tpu.pipeline_mode<synchronous>, transform_indices = @transform_5, window_bounds = array<i64: 1, 96>}, {pipeline_mode = #tpu.pipeline_mode<synchronous>, transform_indices = @transform_6, window_bounds = array<i64: 32, 32>}, {pipeline_mode = #tpu.pipeline_mode<synchronous>, transform_indices = @transform_7, window_bounds = array<i64: 1, 32>}, {transform_indices = @transform_8, window_bounds = array<i64: 1, 8, 32>}]} {
    %c0 = arith.constant 0 : index
    %c0_0 = arith.constant 0 : index
    %c0_1 = arith.constant 0 : index
    %0 = vector.load %arg1[%c0, %c0_0, %c0_1] : memref<1x8x32xf32, #tpu.memory_space<vmem>>, vector<1x8x32xf32>
    %1 = vector.shape_cast %0 : vector<1x8x32xf32> to vector<8x32xf32>
    %c0_2 = arith.constant 0 : index
    %c0_3 = arith.constant 0 : index
    %2 = vector.load %arg3[%c0_2, %c0_3] : memref<1x32xf32, #tpu.memory_space<vmem>>, vector<1x32xf32>
    %c0_4 = arith.constant 0 : index
    %c0_5 = arith.constant 0 : index
    %3 = vector.load %arg4[%c0_4, %c0_5] : memref<1x32xf32, #tpu.memory_space<vmem>>, vector<1x32xf32>
    %cst = arith.constant dense<0.000000e+00> : vector<8xf32>
    %4 = vector.multi_reduction <add>, %1, %cst [1] : vector<8x32xf32> to vector<8xf32>
    %5 = vector.shape_cast %4 : vector<8xf32> to vector<8x1xf32>
    %cst_6 = arith.constant 3.200000e+01 : f32
    %6 = vector.broadcast %cst_6 : f32 to vector<8x1xf32>
    %7 = arith.divf %5, %6 : vector<8x1xf32>
    %8 = vector.broadcast %7 : vector<8x1xf32> to vector<8x32xf32>
    %9 = arith.subf %1, %8 : vector<8x32xf32>
    %10 = arith.mulf %9, %9 : vector<8x32xf32>
    %cst_7 = arith.constant dense<0.000000e+00> : vector<8xf32>
    %11 = vector.multi_reduction <add>, %10, %cst_7 [1] : vector<8x32xf32> to vector<8xf32>
    %12 = vector.shape_cast %11 : vector<8xf32> to vector<8x1xf32>
    %cst_8 = arith.constant 0.0322580636 : f32
    %13 = vector.broadcast %cst_8 : f32 to vector<8x1xf32>
    %14 = arith.mulf %12, %13 : vector<8x1xf32>
    %15 = math.sqrt %14 : vector<8x1xf32>
    %16 = vector.broadcast %2 : vector<1x32xf32> to vector<8x32xf32>
    %17 = arith.mulf %16, %9 : vector<8x32xf32>
    %cst_9 = arith.constant 9.99999997E-7 : f32
    %18 = vector.broadcast %cst_9 : f32 to vector<8x1xf32>
    %19 = arith.addf %15, %18 : vector<8x1xf32>
    %20 = vector.broadcast %19 : vector<8x1xf32> to vector<8x32xf32>
    %21 = arith.divf %17, %20 : vector<8x32xf32>
    %22 = vector.broadcast %3 : vector<1x32xf32> to vector<8x32xf32>
    %23 = arith.addf %21, %22 : vector<8x32xf32>
    %c0_10 = arith.constant 0 : index
    %c0_11 = arith.constant 0 : index
    %24 = vector.load %arg5[%c0_10, %c0_11] : memref<32x96xf32, #tpu.memory_space<vmem>>, vector<32x96xf32>
    %cst_12 = arith.constant dense<0.000000e+00> : vector<8x96xf32>
    %25 = tpu.matmul %23, %24, %cst_12 {dimension_numbers = #tpu.dot_dimension_numbers<[1], [0], [0], [1], [0, 0, 1, 1], [], []>} : vector<8x32xf32>, vector<32x96xf32>, vector<8x96xf32> -> vector<8x96xf32>
    %c0_13 = arith.constant 0 : index
    %c0_14 = arith.constant 0 : index
    %26 = vector.load %arg6[%c0_13, %c0_14] : memref<1x96xf32, #tpu.memory_space<vmem>>, vector<1x96xf32>
    %27 = vector.broadcast %26 : vector<1x96xf32> to vector<8x96xf32>
    %28 = arith.addf %25, %27 : vector<8x96xf32>
    %29 = vector.extract_strided_slice %28 {offsets = [0, 0], sizes = [8, 32], strides = [1, 1]} : vector<8x96xf32> to vector<8x32xf32>
    %30 = vector.extract_strided_slice %28 {offsets = [0, 32], sizes = [8, 32], strides = [1, 1]} : vector<8x96xf32> to vector<8x32xf32>
    %31 = vector.extract_strided_slice %28 {offsets = [0, 64], sizes = [8, 32], strides = [1, 1]} : vector<8x96xf32> to vector<8x32xf32>
    %c0_15 = arith.constant 0 : index
    %c0_16 = arith.constant 0 : index
    %c0_17 = arith.constant 0 : index
    %32 = vector.load %arg2[%c0_15, %c0_16, %c0_17] : memref<1x1x8xf32, #tpu.memory_space<vmem>>, vector<1x1x8xf32>
    %33 = vector.shape_cast %32 : vector<1x1x8xf32> to vector<1x8xf32>
    %34 = vector.extract_strided_slice %29 {offsets = [0, 0], sizes = [8, 8], strides = [1, 1]} : vector<8x32xf32> to vector<8x8xf32>
    %cst_18 = arith.constant 0.353553385 : f32
    %35 = vector.broadcast %cst_18 : f32 to vector<8x8xf32>
    %36 = arith.mulf %34, %35 : vector<8x8xf32>
    %37 = vector.extract_strided_slice %30 {offsets = [0, 0], sizes = [8, 8], strides = [1, 1]} : vector<8x32xf32> to vector<8x8xf32>
    %38 = vector.extract_strided_slice %31 {offsets = [0, 0], sizes = [8, 8], strides = [1, 1]} : vector<8x32xf32> to vector<8x8xf32>
    %39 = tpu.transpose %37, [1, 0] : vector<8x8xf32> -> vector<8x8xf32>
    %cst_19 = arith.constant dense<0.000000e+00> : vector<8x8xf32>
    %40 = tpu.matmul %36, %39, %cst_19 {dimension_numbers = #tpu.dot_dimension_numbers<[1], [0], [0], [1], [0, 0, 1, 1], [], []>} : vector<8x8xf32>, vector<8x8xf32>, vector<8x8xf32> -> vector<8x8xf32>
    %41 = vector.broadcast %33 : vector<1x8xf32> to vector<8x8xf32>
    %42 = arith.addf %40, %41 : vector<8x8xf32>
    %cst_20 = arith.constant dense<0xFF800000> : vector<8xf32>
    %43 = vector.multi_reduction <maximumf>, %42, %cst_20 [1] : vector<8x8xf32> to vector<8xf32>
    %44 = vector.shape_cast %43 : vector<8xf32> to vector<8x1xf32>
    %45 = vector.broadcast %44 : vector<8x1xf32> to vector<8x8xf32>
    %46 = arith.subf %42, %45 : vector<8x8xf32>
    %47 = math.exp %46 : vector<8x8xf32>
    %cst_21 = arith.constant dense<0.000000e+00> : vector<8xf32>
    %48 = vector.multi_reduction <add>, %47, %cst_21 [1] : vector<8x8xf32> to vector<8xf32>
    %49 = vector.shape_cast %48 : vector<8xf32> to vector<8x1xf32>
    %50 = tpu.reciprocal %49 {approx = true} : vector<8x1xf32> -> vector<8x1xf32>
    %51 = vector.broadcast %50 : vector<8x1xf32> to vector<8x8xf32>
    %52 = arith.mulf %47, %51 : vector<8x8xf32>
    %cst_22 = arith.constant dense<0.000000e+00> : vector<8x8xf32>
    %53 = tpu.matmul %52, %38, %cst_22 {dimension_numbers = #tpu.dot_dimension_numbers<[1], [0], [0], [1], [0, 0, 1, 1], [], []>} : vector<8x8xf32>, vector<8x8xf32>, vector<8x8xf32> -> vector<8x8xf32>
    %54 = vector.extract_strided_slice %29 {offsets = [0, 8], sizes = [8, 8], strides = [1, 1]} : vector<8x32xf32> to vector<8x8xf32>
    %cst_23 = arith.constant 0.353553385 : f32
    %55 = vector.broadcast %cst_23 : f32 to vector<8x8xf32>
    %56 = arith.mulf %54, %55 : vector<8x8xf32>
    %57 = vector.extract_strided_slice %30 {offsets = [0, 8], sizes = [8, 8], strides = [1, 1]} : vector<8x32xf32> to vector<8x8xf32>
    %58 = vector.extract_strided_slice %31 {offsets = [0, 8], sizes = [8, 8], strides = [1, 1]} : vector<8x32xf32> to vector<8x8xf32>
    %59 = tpu.transpose %57, [1, 0] : vector<8x8xf32> -> vector<8x8xf32>
    %cst_24 = arith.constant dense<0.000000e+00> : vector<8x8xf32>
    %60 = tpu.matmul %56, %59, %cst_24 {dimension_numbers = #tpu.dot_dimension_numbers<[1], [0], [0], [1], [0, 0, 1, 1], [], []>} : vector<8x8xf32>, vector<8x8xf32>, vector<8x8xf32> -> vector<8x8xf32>
    %61 = vector.broadcast %33 : vector<1x8xf32> to vector<8x8xf32>
    %62 = arith.addf %60, %61 : vector<8x8xf32>
    %cst_25 = arith.constant dense<0xFF800000> : vector<8xf32>
    %63 = vector.multi_reduction <maximumf>, %62, %cst_25 [1] : vector<8x8xf32> to vector<8xf32>
    %64 = vector.shape_cast %63 : vector<8xf32> to vector<8x1xf32>
    %65 = vector.broadcast %64 : vector<8x1xf32> to vector<8x8xf32>
    %66 = arith.subf %62, %65 : vector<8x8xf32>
    %67 = math.exp %66 : vector<8x8xf32>
    %cst_26 = arith.constant dense<0.000000e+00> : vector<8xf32>
    %68 = vector.multi_reduction <add>, %67, %cst_26 [1] : vector<8x8xf32> to vector<8xf32>
    %69 = vector.shape_cast %68 : vector<8xf32> to vector<8x1xf32>
    %70 = tpu.reciprocal %69 {approx = true} : vector<8x1xf32> -> vector<8x1xf32>
    %71 = vector.broadcast %70 : vector<8x1xf32> to vector<8x8xf32>
    %72 = arith.mulf %67, %71 : vector<8x8xf32>
    %cst_27 = arith.constant dense<0.000000e+00> : vector<8x8xf32>
    %73 = tpu.matmul %72, %58, %cst_27 {dimension_numbers = #tpu.dot_dimension_numbers<[1], [0], [0], [1], [0, 0, 1, 1], [], []>} : vector<8x8xf32>, vector<8x8xf32>, vector<8x8xf32> -> vector<8x8xf32>
    %74 = vector.extract_strided_slice %29 {offsets = [0, 16], sizes = [8, 8], strides = [1, 1]} : vector<8x32xf32> to vector<8x8xf32>
    %cst_28 = arith.constant 0.353553385 : f32
    %75 = vector.broadcast %cst_28 : f32 to vector<8x8xf32>
    %76 = arith.mulf %74, %75 : vector<8x8xf32>
    %77 = vector.extract_strided_slice %30 {offsets = [0, 16], sizes = [8, 8], strides = [1, 1]} : vector<8x32xf32> to vector<8x8xf32>
    %78 = vector.extract_strided_slice %31 {offsets = [0, 16], sizes = [8, 8], strides = [1, 1]} : vector<8x32xf32> to vector<8x8xf32>
    %79 = tpu.transpose %77, [1, 0] : vector<8x8xf32> -> vector<8x8xf32>
    %cst_29 = arith.constant dense<0.000000e+00> : vector<8x8xf32>
    %80 = tpu.matmul %76, %79, %cst_29 {dimension_numbers = #tpu.dot_dimension_numbers<[1], [0], [0], [1], [0, 0, 1, 1], [], []>} : vector<8x8xf32>, vector<8x8xf32>, vector<8x8xf32> -> vector<8x8xf32>
    %81 = vector.broadcast %33 : vector<1x8xf32> to vector<8x8xf32>
    %82 = arith.addf %80, %81 : vector<8x8xf32>
    %cst_30 = arith.constant dense<0xFF800000> : vector<8xf32>
    %83 = vector.multi_reduction <maximumf>, %82, %cst_30 [1] : vector<8x8xf32> to vector<8xf32>
    %84 = vector.shape_cast %83 : vector<8xf32> to vector<8x1xf32>
    %85 = vector.broadcast %84 : vector<8x1xf32> to vector<8x8xf32>
    %86 = arith.subf %82, %85 : vector<8x8xf32>
    %87 = math.exp %86 : vector<8x8xf32>
    %cst_31 = arith.constant dense<0.000000e+00> : vector<8xf32>
    %88 = vector.multi_reduction <add>, %87, %cst_31 [1] : vector<8x8xf32> to vector<8xf32>
    %89 = vector.shape_cast %88 : vector<8xf32> to vector<8x1xf32>
    %90 = tpu.reciprocal %89 {approx = true} : vector<8x1xf32> -> vector<8x1xf32>
    %91 = vector.broadcast %90 : vector<8x1xf32> to vector<8x8xf32>
    %92 = arith.mulf %87, %91 : vector<8x8xf32>
    %cst_32 = arith.constant dense<0.000000e+00> : vector<8x8xf32>
    %93 = tpu.matmul %92, %78, %cst_32 {dimension_numbers = #tpu.dot_dimension_numbers<[1], [0], [0], [1], [0, 0, 1, 1], [], []>} : vector<8x8xf32>, vector<8x8xf32>, vector<8x8xf32> -> vector<8x8xf32>
    %94 = vector.extract_strided_slice %29 {offsets = [0, 24], sizes = [8, 8], strides = [1, 1]} : vector<8x32xf32> to vector<8x8xf32>
    %cst_33 = arith.constant 0.353553385 : f32
    %95 = vector.broadcast %cst_33 : f32 to vector<8x8xf32>
    %96 = arith.mulf %94, %95 : vector<8x8xf32>
    %97 = vector.extract_strided_slice %30 {offsets = [0, 24], sizes = [8, 8], strides = [1, 1]} : vector<8x32xf32> to vector<8x8xf32>
    %98 = vector.extract_strided_slice %31 {offsets = [0, 24], sizes = [8, 8], strides = [1, 1]} : vector<8x32xf32> to vector<8x8xf32>
    %99 = tpu.transpose %97, [1, 0] : vector<8x8xf32> -> vector<8x8xf32>
    %cst_34 = arith.constant dense<0.000000e+00> : vector<8x8xf32>
    %100 = tpu.matmul %96, %99, %cst_34 {dimension_numbers = #tpu.dot_dimension_numbers<[1], [0], [0], [1], [0, 0, 1, 1], [], []>} : vector<8x8xf32>, vector<8x8xf32>, vector<8x8xf32> -> vector<8x8xf32>
    %101 = vector.broadcast %33 : vector<1x8xf32> to vector<8x8xf32>
    %102 = arith.addf %100, %101 : vector<8x8xf32>
    %cst_35 = arith.constant dense<0xFF800000> : vector<8xf32>
    %103 = vector.multi_reduction <maximumf>, %102, %cst_35 [1] : vector<8x8xf32> to vector<8xf32>
    %104 = vector.shape_cast %103 : vector<8xf32> to vector<8x1xf32>
    %105 = vector.broadcast %104 : vector<8x1xf32> to vector<8x8xf32>
    %106 = arith.subf %102, %105 : vector<8x8xf32>
    %107 = math.exp %106 : vector<8x8xf32>
    %cst_36 = arith.constant dense<0.000000e+00> : vector<8xf32>
    %108 = vector.multi_reduction <add>, %107, %cst_36 [1] : vector<8x8xf32> to vector<8xf32>
    %109 = vector.shape_cast %108 : vector<8xf32> to vector<8x1xf32>
    %110 = tpu.reciprocal %109 {approx = true} : vector<8x1xf32> -> vector<8x1xf32>
    %111 = vector.broadcast %110 : vector<8x1xf32> to vector<8x8xf32>
    %112 = arith.mulf %107, %111 : vector<8x8xf32>
    %cst_37 = arith.constant dense<0.000000e+00> : vector<8x8xf32>
    %113 = tpu.matmul %112, %98, %cst_37 {dimension_numbers = #tpu.dot_dimension_numbers<[1], [0], [0], [1], [0, 0, 1, 1], [], []>} : vector<8x8xf32>, vector<8x8xf32>, vector<8x8xf32> -> vector<8x8xf32>
    %114 = tpu.concatenate %53, %73, %93, %113 in 1 : vector<8x8xf32>, vector<8x8xf32>, vector<8x8xf32>, vector<8x8xf32> -> vector<8x32xf32>
    %c0_38 = arith.constant 0 : index
    %c0_39 = arith.constant 0 : index
    %115 = vector.load %arg7[%c0_38, %c0_39] : memref<32x32xf32, #tpu.memory_space<vmem>>, vector<32x32xf32>
    %cst_40 = arith.constant dense<0.000000e+00> : vector<8x32xf32>
    %116 = tpu.matmul %114, %115, %cst_40 {dimension_numbers = #tpu.dot_dimension_numbers<[1], [0], [0], [1], [0, 0, 1, 1], [], []>} : vector<8x32xf32>, vector<32x32xf32>, vector<8x32xf32> -> vector<8x32xf32>
    %c0_41 = arith.constant 0 : index
    %c0_42 = arith.constant 0 : index
    %117 = vector.load %arg8[%c0_41, %c0_42] : memref<1x32xf32, #tpu.memory_space<vmem>>, vector<1x32xf32>
    %118 = vector.broadcast %117 : vector<1x32xf32> to vector<8x32xf32>
    %119 = arith.addf %116, %118 : vector<8x32xf32>
    %120 = arith.addf %1, %119 : vector<8x32xf32>
    %c0_43 = arith.constant 0 : index
    %c0_44 = arith.constant 0 : index
    %c0_45 = arith.constant 0 : index
    %121 = vector.load %arg9[%c0_43, %c0_44, %c0_45] : memref<1x8x32xf32, #tpu.memory_space<vmem>>, vector<1x8x32xf32>
    %122 = vector.shape_cast %121 : vector<1x8x32xf32> to vector<8x32xf32>
    %123 = vector.shape_cast %120 : vector<8x32xf32> to vector<1x8x32xf32>
    tpu.vector_store %arg9[%c0_43, %c0_44, %c0_45], %123 {strides = array<i32>} : memref<1x8x32xf32, #tpu.memory_space<vmem>>, vector<1x8x32xf32>,
    return
  }
  func.func @transform_0(%arg0: i32) -> (i32, i32, i32) {
    %c0_i32 = arith.constant 0 : i32
    %c0_i32_0 = arith.constant 0 : i32
    %c0_i32_1 = arith.constant 0 : i32
    return %arg0, %c0_i32, %c0_i32_0 : i32, i32, i32
  }
  func.func @transform_1(%arg0: i32) -> (i32, i32, i32) {
    %c0_i32 = arith.constant 0 : i32
    %c0_i32_0 = arith.constant 0 : i32
    %c0_i32_1 = arith.constant 0 : i32
    return %arg0, %c0_i32, %c0_i32_0 : i32, i32, i32
  }
  func.func @transform_2(%arg0: i32) -> (i32, i32) {
    %c0_i32 = arith.constant 0 : i32
    %c0_i32_0 = arith.constant 0 : i32
    %c0_i32_1 = arith.constant 0 : i32
    return %c0_i32, %c0_i32_0 : i32, i32
  }
  func.func @transform_3(%arg0: i32) -> (i32, i32) {
    %c0_i32 = arith.constant 0 : i32
    %c0_i32_0 = arith.constant 0 : i32
    %c0_i32_1 = arith.constant 0 : i32
    return %c0_i32, %c0_i32_0 : i32, i32
  }
  func.func @transform_4(%arg0: i32) -> (i32, i32) {
    %c0_i32 = arith.constant 0 : i32
    %c0_i32_0 = arith.constant 0 : i32
    %c0_i32_1 = arith.constant 0 : i32
    return %c0_i32, %c0_i32_0 : i32, i32
  }
  func.func @transform_5(%arg0: i32) -> (i32, i32) {
    %c0_i32 = arith.constant 0 : i32
    %c0_i32_0 = arith.constant 0 : i32
    %c0_i32_1 = arith.constant 0 : i32
    return %c0_i32, %c0_i32_0 : i32, i32
  }
  func.func @transform_6(%arg0: i32) -> (i32, i32) {
    %c0_i32 = arith.constant 0 : i32
    %c0_i32_0 = arith.constant 0 : i32
    %c0_i32_1 = arith.constant 0 : i32
    return %c0_i32, %c0_i32_0 : i32, i32
  }
  func.func @transform_7(%arg0: i32) -> (i32, i32) {
    %c0_i32 = arith.constant 0 : i32
    %c0_i32_0 = arith.constant 0 : i32
    %c0_i32_1 = arith.constant 0 : i32
    return %c0_i32, %c0_i32_0 : i32, i32
  }
  func.func @transform_8(%arg0: i32) -> (i32, i32, i32) {
    %c0_i32 = arith.constant 0 : i32
    %c0_i32_0 = arith.constant 0 : i32
    %c0_i32_1 = arith.constant 0 : i32
    return %arg0, %c0_i32, %c0_i32_0 : i32, i32, i32
  }
}

module attributes {stable_mosaic.version = 11 : i64} {
  func.func @_layernorm_rows_kernel(%arg0: i32, %arg1: memref<16x32xf32, #tpu.memory_space<vmem>>, %arg2: memref<1x32xf32, #tpu.memory_space<vmem>>, %arg3: memref<1x32xf32, #tpu.memory_space<vmem>>, %arg4: memref<16x32xf32, #tpu.memory_space<vmem>>) attributes {dimension_semantics = [#tpu.dimension_semantics<parallel>], iteration_bounds = array<i64: 1>, scalar_prefetch = 0 : i64, scratch_operands = 0 : i64, tpu.core_type = #tpu.core_type<tc>, window_params = [{transform_indices = @transform_0, window_bounds = array<i64: 16, 32>}, {pipeline_mode = #tpu.pipeline_mode<synchronous>, transform_indices = @transform_1, window_bounds = array<i64: 1, 32>}, {pipeline_mode = #tpu.pipeline_mode<synchronous>, transform_indices = @transform_2, window_bounds = array<i64: 1, 32>}, {transform_indices = @transform_3, window_bounds = array<i64: 16, 32>}]} {
    %c0 = arith.constant 0 : index
    %c0_0 = arith.constant 0 : index
    %0 = vector.load %arg1[%c0, %c0_0] : memref<16x32xf32, #tpu.memory_space<vmem>>, vector<16x32xf32>
    %c0_1 = arith.constant 0 : index
    %c0_2 = arith.constant 0 : index
    %1 = vector.load %arg2[%c0_1, %c0_2] : memref<1x32xf32, #tpu.memory_space<vmem>>, vector<1x32xf32>
    %c0_3 = arith.constant 0 : index
    %c0_4 = arith.constant 0 : index
    %2 = vector.load %arg3[%c0_3, %c0_4] : memref<1x32xf32, #tpu.memory_space<vmem>>, vector<1x32xf32>
    %cst = arith.constant dense<0.000000e+00> : vector<16xf32>
    %3 = vector.multi_reduction <add>, %0, %cst [1] : vector<16x32xf32> to vector<16xf32>
    %4 = vector.shape_cast %3 : vector<16xf32> to vector<16x1xf32>
    %cst_5 = arith.constant 3.200000e+01 : f32
    %5 = vector.broadcast %cst_5 : f32 to vector<16x1xf32>
    %6 = arith.divf %4, %5 : vector<16x1xf32>
    %7 = vector.broadcast %6 : vector<16x1xf32> to vector<16x32xf32>
    %8 = arith.subf %0, %7 : vector<16x32xf32>
    %9 = arith.mulf %8, %8 : vector<16x32xf32>
    %cst_6 = arith.constant dense<0.000000e+00> : vector<16xf32>
    %10 = vector.multi_reduction <add>, %9, %cst_6 [1] : vector<16x32xf32> to vector<16xf32>
    %11 = vector.shape_cast %10 : vector<16xf32> to vector<16x1xf32>
    %cst_7 = arith.constant 0.0322580636 : f32
    %12 = vector.broadcast %cst_7 : f32 to vector<16x1xf32>
    %13 = arith.mulf %11, %12 : vector<16x1xf32>
    %14 = math.sqrt %13 : vector<16x1xf32>
    %15 = vector.broadcast %1 : vector<1x32xf32> to vector<16x32xf32>
    %16 = arith.mulf %15, %8 : vector<16x32xf32>
    %cst_8 = arith.constant 9.99999997E-7 : f32
    %17 = vector.broadcast %cst_8 : f32 to vector<16x1xf32>
    %18 = arith.addf %14, %17 : vector<16x1xf32>
    %19 = vector.broadcast %18 : vector<16x1xf32> to vector<16x32xf32>
    %20 = arith.divf %16, %19 : vector<16x32xf32>
    %21 = vector.broadcast %2 : vector<1x32xf32> to vector<16x32xf32>
    %22 = arith.addf %20, %21 : vector<16x32xf32>
    %c0_9 = arith.constant 0 : index
    %c0_10 = arith.constant 0 : index
    %23 = vector.load %arg4[%c0_9, %c0_10] : memref<16x32xf32, #tpu.memory_space<vmem>>, vector<16x32xf32>
    tpu.vector_store %arg4[%c0_9, %c0_10], %22 {strides = array<i32>} : memref<16x32xf32, #tpu.memory_space<vmem>>, vector<16x32xf32>,
    return
  }
  func.func @transform_0(%arg0: i32) -> (i32, i32) {
    %c0_i32 = arith.constant 0 : i32
    %c0_i32_0 = arith.constant 0 : i32
    return %arg0, %c0_i32 : i32, i32
  }
  func.func @transform_1(%arg0: i32) -> (i32, i32) {
    %c0_i32 = arith.constant 0 : i32
    %c0_i32_0 = arith.constant 0 : i32
    %c0_i32_1 = arith.constant 0 : i32
    return %c0_i32, %c0_i32_0 : i32, i32
  }
  func.func @transform_2(%arg0: i32) -> (i32, i32) {
    %c0_i32 = arith.constant 0 : i32
    %c0_i32_0 = arith.constant 0 : i32
    %c0_i32_1 = arith.constant 0 : i32
    return %c0_i32, %c0_i32_0 : i32, i32
  }
  func.func @transform_3(%arg0: i32) -> (i32, i32) {
    %c0_i32 = arith.constant 0 : i32
    %c0_i32_0 = arith.constant 0 : i32
    return %arg0, %c0_i32 : i32, i32
  }
}

</mosaic_0001>

<llo_original>
// kernel: encoder_forward.6
$region0: #{encoder_forward.6}
  #allocation0 [shape = 'u32[]', space=smem, size = 0x4, offset = 0x4, fixed_abs, tag = 'smem constant byte address 0x4 - core index']
  #allocation1 [shape = 'u32[72,128]{1,0:T(1,128)}', space=vmem, size = 0x9000, scoped, tag = 'internal scratch']
  %s0 = inlined_call_operand.vmem [shape: f32[16,32], index: 0, kind: input, shape index: {}]
  %s1 = inlined_call_operand.vmem [shape: f32[1,32], index: 1, kind: input, shape index: {}]
  %s2 = inlined_call_operand.vmem [shape: f32[1,32], index: 2, kind: input, shape index: {}]
  %s3 = inlined_call_operand.vmem [shape: f32[32,64], index: 3, kind: input, shape index: {}]
  %s4 = inlined_call_operand.vmem [shape: f32[1,64], index: 4, kind: input, shape index: {}]
  %s5 = inlined_call_operand.vmem [shape: f32[64,32], index: 5, kind: input, shape index: {}]
  %s6 = inlined_call_operand.hbm [shape: f32[1,32], index: 6, kind: input, shape index: {}]
  %s7 = inlined_call_operand.vmem [shape: f32[16,32], index: 7, kind: output, shape index: {}]
  %s8 = sld [smem:[#allocation0]]
  $region42: #{encoder_forward.6} parent=0
    _
  %s10 = ssub.s32 1, %s8
  %s11 = scalar_select 0, %s10, %s8
  $region1: #{encoder_forward.6} parent=0
    #allocation2 [shape = 'u8[512]{0}', space=vmem, size = 0x400, scoped, tag = 'input window, operand 6, single buffered']
    #allocation3 [shape = 's32[1]{0}', space=sflag, size = 0x4, scoped, tag = 'scoped memory for encoder_forward.6']
    %12 = vsyncpa [#allocation3], 0
    // Predicated region
    $region2: #{encoder_forward.6} parent=1 // pred_check
      _
    $region3: #{encoder_forward.6} parent=1 // pred_check_branch
      %14 = sbr.rel (0) target = $region5
    $region4: #{encoder_forward.6} parent=1 // pred_region
      _
    $region5: #{encoder_forward.6} parent=1 // pred_fallthru
      _
    // Predicated region
    $region6: #{encoder_forward.6} parent=1 // pred_check
      _
    $region7: #{encoder_forward.6} parent=1 // pred_check_branch
      %16 = sbr.rel (0) target = $region9
    $region8: #{encoder_forward.6} parent=1 // pred_region
      _
    $region9: #{encoder_forward.6} parent=1 // pred_fallthru
      _
    // Predicated region
    $region10: #{encoder_forward.6} parent=1 // pred_check
      _
    $region11: #{encoder_forward.6} parent=1 // pred_check_branch
      %18 = sbr.rel (0) target = $region13
    $region12: #{encoder_forward.6} parent=1 // pred_region
      _
    $region13: #{encoder_forward.6} parent=1 // pred_fallthru
      _
    // Predicated region
    $region14: #{encoder_forward.6} parent=1 // pred_check
      _
    $region15: #{encoder_forward.6} parent=1 // pred_check_branch
      %20 = sbr.rel (0) target = $region17
    $region16: #{encoder_forward.6} parent=1 // pred_region
      _
    $region17: #{encoder_forward.6} parent=1 // pred_fallthru
      _
    // Predicated region
    $region18: #{encoder_forward.6} parent=1 // pred_check
      _
    $region19: #{encoder_forward.6} parent=1 // pred_check_branch
      %22 = sbr.rel (0) target = $region21
    $region20: #{encoder_forward.6} parent=1 // pred_region
      _
    $region21: #{encoder_forward.6} parent=1 // pred_fallthru
      _
    // Predicated region
    $region22: #{encoder_forward.6} parent=1 // pred_check
      _
    $region23: #{encoder_forward.6} parent=1 // pred_check_branch
      %24 = sbr.rel (0) target = $region25
    $region24: #{encoder_forward.6} parent=1 // pred_region
      _
    $region25: #{encoder_forward.6} parent=1 // pred_fallthru
      _
    // Predicated region
    $region26: #{encoder_forward.6} parent=1 // pred_check
      _
    $region27: #{encoder_forward.6} parent=1 // pred_check_branch
      %26 = sbr.rel (0) target = $region29
    $region28: #{encoder_forward.6} parent=1 // pred_region
      %28 = vsyncadd [#allocation3], 0
      %s30 = sshll.u32 %s6, 4
      %s31 = int_to_ptr.hbm [resolvable:$true] %s30
      %s32 = sshll.u32 [#allocation2], 4
      %s33 = int_to_ptr.vmem [resolvable:$true] %s32
      %35 = dma.hbm_to_vmem [thread:$0]  %s31, 16, %s33, [#allocation3]
    $region29: #{encoder_forward.6} parent=1 // pred_fallthru
      _
    // Predicated region
    $region30: #{encoder_forward.6} parent=1 // pred_check
      _
    $region31: #{encoder_forward.6} parent=1 // pred_check_branch
      %37 = sbr.rel (0) target = $region33
    $region32: #{encoder_forward.6} parent=1 // pred_region
      %39 = dma.done [#allocation3], 16
    $region33: #{encoder_forward.6} parent=1 // pred_fallthru
      _
    %v40 = vld [vmem:[%s0] sm:$0xff]
    %v41 = vld [vmem:[%s0 + $0x8] sm:$0xff]
    %v42 = vld [vmem:[%s1] sm:$0x1]
    %v43 = vld [vmem:[%s2] sm:$0x1]
    %vm44 = vcmask 261120
    %v45 = vsel %vm44, %v40, 0.0
    %46 = vadd.xlane.f32.xlu0 %v45
    %v47 = vpop.xlane.xlu0 %46
    %v48 = vsel %vm44, %v41, 0.0
    %49 = vadd.xlane.f32.xlu0 %v48
    %v50 = vpop.xlane.xlu0 %49
    %v51 = vrcp.pop 32.0
    %v52 = vmul.f32 32.0, %v51
    %v53 = vsub.f32 1.0, %v52
    %v54 = vmul.f32 %v51, %v53
    %v55 = vadd.f32 %v51, %v54
    %vm56 = vweird.f32 %v51
    %v57 = vsel %vm56, %v51, %v55
    %v58 = vmul.f32 %v47, %v57
    %v59 = vmul.f32 %v50, %v57
    %v60 = vsub.f32 %v40, %v58
    %v61 = vsub.f32 %v41, %v59
    %v62 = vmul.f32 %v60, %v60
    %v63 = vmul.f32 %v61, %v61
    %v64 = vsel %vm44, %v62, 0.0
    %65 = vadd.xlane.f32.xlu0 %v64
    %v66 = vpop.xlane.xlu0 %65
    %v67 = vsel %vm44, %v63, 0.0
    %68 = vadd.xlane.f32.xlu0 %v67
    %v69 = vpop.xlane.xlu0 %68
    %v70 = vmul.f32 %v66, 0.032258064
    %v71 = vmul.f32 %v69, 0.032258064
    %v72 = vrsqrt.pop %v70
    %v73 = vmul.f32 %v72, %v70
    %v74 = vmul.f32 %v73, %v72
    %v75 = vmul.f32 0.5, %v74
    %v76 = vsub.f32 1.5, %v75
    %v77 = vmul.f32 %v72, %v76
    %v78 = vmul.f32 %v70, %v77
    %vm79 = vcmp.eq.f32.partialorder %v70, inf
    %v80 = vsel %vm79, %v70, %v78
    %vm81 = vcmp.eq.f32.partialorder %v70, 0.0
    %v82 = vand.u32 %v70, 2147483648
    %v83 = vsel %vm81, %v82, %v80
    %v84 = vrsqrt.pop %v71
    %v85 = vmul.f32 %v84, %v71
    %v86 = vmul.f32 %v85, %v84
    %v87 = vmul.f32 0.5, %v86
    %v88 = vsub.f32 1.5, %v87
    %v89 = vmul.f32 %v84, %v88
    %v90 = vmul.f32 %v71, %v89
    %vm91 = vcmp.eq.f32.partialorder %v71, inf
    %v92 = vsel %vm91, %v71, %v90
    %vm93 = vcmp.eq.f32.partialorder %v71, 0.0
    %v94 = vand.u32 %v71, 2147483648
    %v95 = vsel %vm93, %v94, %v92
    %v97 = vperm.slane %v42, 0
    %v99 = vmul.f32 %v97, %v60
    %v100 = vmul.f32 %v97, %v61
    %v101 = vadd.f32 %v83, 1e-06
    %v102 = vadd.f32 %v95, 1e-06
    %v103 = vrcp.pop %v101
    %v104 = vmul.f32 %v101, %v103
    %v105 = vsub.f32 1.0, %v104
    %v106 = vmul.f32 %v103, %v105
    %v107 = vadd.f32 %v103, %v106
    %vm108 = vweird.f32 %v101
    %vm109 = vweird.f32 %v103
    %vm110 = vmor %vm108, %vm109
    %v111 = vsel %vm110, %v103, %v107
    %v112 = vand.u32 2147483647, %v101
    %vm113 = vcmp.eq.f32.partialorder %v112, 8.507059e+37
    %v114 = vand.u32 %v101, 2147483648
    %v115 = vor.u32 1.1754944e-38, %v114
    %v116 = vsel %vm113, %v115, %v111
    %v117 = vmul.f32 %v99, %v116
    %v118 = vrcp.pop %v102
    %v119 = vmul.f32 %v102, %v118
    %v120 = vsub.f32 1.0, %v119
    %v121 = vmul.f32 %v118, %v120
    %v122 = vadd.f32 %v118, %v121
    %vm123 = vweird.f32 %v102
    %vm124 = vweird.f32 %v118
    %vm125 = vmor %vm123, %vm124
    %v126 = vsel %vm125, %v118, %v122
    %v127 = vand.u32 2147483647, %v102
    %vm128 = vcmp.eq.f32.partialorder %v127, 8.507059e+37
    %v129 = vand.u32 %v102, 2147483648
    %v130 = vor.u32 1.1754944e-38, %v129
    %v131 = vsel %vm128, %v130, %v126
    %v132 = vmul.f32 %v100, %v131
    %v134 = vperm.slane %v43, 0
    %v136 = vadd.f32 %v117, %v134
    %v137 = vadd.f32 %v132, %v134
    %v138 = vld [vmem:[%s3] sm:$0xff]
    %v139 = vld [vmem:[%s3 + $0x8] sm:$0xff]
    %v140 = vld [vmem:[%s3 + $0x10] sm:$0xff]
    %v141 = vld [vmem:[%s3 + $0x18] sm:$0xff]
    %v142 = vld [vmem:[%s4] sm:$0x1]
    %v144 = vperm.slane %v142, 0
    %v147 = vsel %vm44, %v136, 0
    %v150 = vsel %vm44, %v137, 0
    %152 = vmatpush.msra.mxu0 0.0
    %153 = vmatpush.msra.mxu0 0.0
    %154 = vmatpush.msra.mxu0 0.0
    %155 = vmatpush.msra.mxu0 0.0
    %156 = vmatpush.msra.mxu0 0.0
    %157 = vmatpush.msra.mxu0 0.0
    %158 = vmatpush.msra.mxu0 0.0
    %159 = vmatpush.msra.mxu0 0.0
    %160 = vmatpush.msra.mxu0 0.0
    %161 = vmatpush.msra.mxu0 0.0
    %162 = vmatpush.msra.mxu0 0.0
    %163 = vmatpush.msra.mxu0 0.0
    %164 = vmatpush.msra.mxu0 %v141
    %165 = vmatpush.msra.mxu0 %v140
    %166 = vmatpush.msra.mxu0 %v139
    %167 = vmatpush.msra.mxu0 %v138
    %168 = vmatmul.f32.gmra.mxu0 %v147
    %v169 = vpop.f32.mrf.mxu0
    %v170 = vadd.f32 %v144, %v169
    %171 = vmatmul.f32.gmra.mxu0 %v150
    %v172 = vpop.f32.mrf.mxu0
    %v173 = vadd.f32 %v144, %v172
    %174 = vdwg.mxu0
    %v175 = vmax.f32 %v170, 0.0
    %v176 = vmax.f32 %v173, 0.0
    %v177 = vld [vmem:[%s5] sm:$0xff]
    %v178 = vld [vmem:[%s5 + $0x8] sm:$0xff]
    %v179 = vld [vmem:[%s5 + $0x10] sm:$0xff]
    %v180 = vld [vmem:[%s5 + $0x18] sm:$0xff]
    %v181 = vld [vmem:[%s5 + $0x20] sm:$0xff]
    %v182 = vld [vmem:[%s5 + $0x28] sm:$0xff]
    %v183 = vld [vmem:[%s5 + $0x30] sm:$0xff]
    %v184 = vld [vmem:[%s5 + $0x38] sm:$0xff]
    %v185 = vld [vmem:[#allocation2] sm:$0x1]
    %v187 = vperm.slane %v185, 0
    %vm189 = vcmask 523264
    %v191 = vsel %vm189, %v175, 0
    %v194 = vsel %vm189, %v176, 0
    %196 = vmatpush.msra.mxu0 0.0
    %197 = vmatpush.msra.mxu0 0.0
    %198 = vmatpush.msra.mxu0 0.0
    %199 = vmatpush.msra.mxu0 0.0
    %200 = vmatpush.msra.mxu0 0.0
    %201 = vmatpush.msra.mxu0 0.0
    %202 = vmatpush.msra.mxu0 0.0
    %203 = vmatpush.msra.mxu0 0.0
    %204 = vmatpush.msra.mxu0 %v184
    %205 = vmatpush.msra.mxu0 %v183
    %206 = vmatpush.msra.mxu0 %v182
    %207 = vmatpush.msra.mxu0 %v181
    %208 = vmatpush.msra.mxu0 %v180
    %209 = vmatpush.msra.mxu0 %v179
    %210 = vmatpush.msra.mxu0 %v178
    %211 = vmatpush.msra.mxu0 %v177
    %212 = vmatmul.f32.gmra.mxu0 %v191
    %v213 = vpop.f32.mrf.mxu0
    %v214 = vadd.f32 %v187, %v213
    %215 = vmatmul.f32.gmra.mxu0 %v194
    %v216 = vpop.f32.mrf.mxu0
    %v217 = vadd.f32 %v187, %v216
    %218 = vdwg.mxu0
    %v219 = vadd.f32 %v40, %v214
    %v220 = vadd.f32 %v41, %v217
    %221 = vst.msk [vmem:[%s7] sm:$0xff] %vm44, %v219
    %222 = vst.msk [vmem:[%s7 + $0x8] sm:$0xff] %vm44, %v220
    // Predicated region
    $region34: #{encoder_forward.6} parent=1 // pred_check
      _
    $region35: #{encoder_forward.6} parent=1 // pred_check_branch
      %224 = sbr.rel (0) target = $region37
    $region36: #{encoder_forward.6} parent=1 // pred_region
      _
    $region37: #{encoder_forward.6} parent=1 // pred_fallthru
      _
    // Predicated region
    $region38: #{encoder_forward.6} parent=1 // pred_check
      _
    $region39: #{encoder_forward.6} parent=1 // pred_check_branch
      %226 = sbr.rel (0) target = $region41
    $region40: #{encoder_forward.6} parent=1 // pred_region
      _
    $region41: #{encoder_forward.6} parent=1 // pred_fallthru
      _
    %227 = vsyncpa [#allocation3], 1

// kernel: encoder_forward.8
$region0: #{encoder_forward.8}
  #allocation0 [shape = 'u32[]', space=smem, size = 0x4, offset = 0x4, fixed_abs, tag = 'smem constant byte address 0x4 - core index']
  #allocation1 [shape = 'u32[72,128]{1,0:T(1,128)}', space=vmem, size = 0x9000, scoped, tag = 'internal scratch']
  %s0 = inlined_call_operand.vmem [shape: f32[16,32], index: 0, kind: input, shape index: {}]
  %s1 = inlined_call_operand.vmem [shape: f32[1,32], index: 1, kind: input, shape index: {}]
  %s2 = inlined_call_operand.vmem [shape: f32[1,32], index: 2, kind: input, shape index: {}]
  %s3 = inlined_call_operand.vmem [shape: f32[32,64], index: 3, kind: input, shape index: {}]
  %s4 = inlined_call_operand.vmem [shape: f32[1,64], index: 4, kind: input, shape index: {}]
  %s5 = inlined_call_operand.vmem [shape: f32[64,32], index: 5, kind: input, shape index: {}]
  %s6 = inlined_call_operand.vmem [shape: f32[1,32], index: 6, kind: input, shape index: {}]
  %s7 = inlined_call_operand.vmem [shape: f32[16,32], index: 7, kind: output, shape index: {}]
  %s8 = sld [smem:[#allocation0]]
  $region38: #{encoder_forward.8} parent=0
    _
  %s10 = ssub.s32 1, %s8
  %s11 = scalar_select 0, %s10, %s8
  // Predicated region
  $region2: #{encoder_forward.8} parent=0 // pred_check
    _
  $region3: #{encoder_forward.8} parent=0 // pred_check_branch
    %13 = sbr.rel (0) target = $region5
  $region4: #{encoder_forward.8} parent=0 // pred_region
    _
  $region5: #{encoder_forward.8} parent=0 // pred_fallthru
    _
  // Predicated region
  $region6: #{encoder_forward.8} parent=0 // pred_check
    _
  $region7: #{encoder_forward.8} parent=0 // pred_check_branch
    %15 = sbr.rel (0) target = $region9
  $region8: #{encoder_forward.8} parent=0 // pred_region
    _
  $region9: #{encoder_forward.8} parent=0 // pred_fallthru
    _
  // Predicated region
  $region10: #{encoder_forward.8} parent=0 // pred_check
    _
  $region11: #{encoder_forward.8} parent=0 // pred_check_branch
    %17 = sbr.rel (0) target = $region13
  $region12: #{encoder_forward.8} parent=0 // pred_region
    _
  $region13: #{encoder_forward.8} parent=0 // pred_fallthru
    _
  // Predicated region
  $region14: #{encoder_forward.8} parent=0 // pred_check
    _
  $region15: #{encoder_forward.8} parent=0 // pred_check_branch
    %19 = sbr.rel (0) target = $region17
  $region16: #{encoder_forward.8} parent=0 // pred_region
    _
  $region17: #{encoder_forward.8} parent=0 // pred_fallthru
    _
  // Predicated region
  $region18: #{encoder_forward.8} parent=0 // pred_check
    _
  $region19: #{encoder_forward.8} parent=0 // pred_check_branch
    %21 = sbr.rel (0) target = $region21
  $region20: #{encoder_forward.8} parent=0 // pred_region
    _
  $region21: #{encoder_forward.8} parent=0 // pred_fallthru
    _
  // Predicated region
  $region22: #{encoder_forward.8} parent=0 // pred_check
    _
  $region23: #{encoder_forward.8} parent=0 // pred_check_branch
    %23 = sbr.rel (0) target = $region25
  $region24: #{encoder_forward.8} parent=0 // pred_region
    _
  $region25: #{encoder_forward.8} parent=0 // pred_fallthru
    _
  // Predicated region
  $region26: #{encoder_forward.8} parent=0 // pred_check
    _
  $region27: #{encoder_forward.8} parent=0 // pred_check_branch
    %25 = sbr.rel (0) target = $region29
  $region28: #{encoder_forward.8} parent=0 // pred_region
    _
  $region29: #{encoder_forward.8} parent=0 // pred_fallthru
    _
  %v26 = vld [vmem:[%s0] sm:$0xff]
  %v27 = vld [vmem:[%s0 + $0x8] sm:$0xff]
  %v28 = vld [vmem:[%s1] sm:$0x1]
  %v29 = vld [vmem:[%s2] sm:$0x1]
  %vm30 = vcmask 261120
  %v31 = vsel %vm30, %v26, 0.0
  %32 = vadd.xlane.f32.xlu0 %v31
  %v33 = vpop.xlane.xlu0 %32
  %v34 = vsel %vm30, %v27, 0.0
  %35 = vadd.xlane.f32.xlu0 %v34
  %v36 = vpop.xlane.xlu0 %35
  %v37 = vrcp.pop 32.0
  %v38 = vmul.f32 32.0, %v37
  %v39 = vsub.f32 1.0, %v38
  %v40 = vmul.f32 %v37, %v39
  %v41 = vadd.f32 %v37, %v40
  %vm42 = vweird.f32 %v37
  %v43 = vsel %vm42, %v37, %v41
  %v44 = vmul.f32 %v33, %v43
  %v45 = vmul.f32 %v36, %v43
  %v46 = vsub.f32 %v26, %v44
  %v47 = vsub.f32 %v27, %v45
  %v48 = vmul.f32 %v46, %v46
  %v49 = vmul.f32 %v47, %v47
  %v50 = vsel %vm30, %v48, 0.0
  %51 = vadd.xlane.f32.xlu0 %v50
  %v52 = vpop.xlane.xlu0 %51
  %v53 = vsel %vm30, %v49, 0.0
  %54 = vadd.xlane.f32.xlu0 %v53
  %v55 = vpop.xlane.xlu0 %54
  %v56 = vmul.f32 %v52, 0.032258064
  %v57 = vmul.f32 %v55, 0.032258064
  %v58 = vrsqrt.pop %v56
  %v59 = vmul.f32 %v58, %v56
  %v60 = vmul.f32 %v59, %v58
  %v61 = vmul.f32 0.5, %v60
  %v62 = vsub.f32 1.5, %v61
  %v63 = vmul.f32 %v58, %v62
  %v64 = vmul.f32 %v56, %v63
  %vm65 = vcmp.eq.f32.partialorder %v56, inf
  %v66 = vsel %vm65, %v56, %v64
  %vm67 = vcmp.eq.f32.partialorder %v56, 0.0
  %v68 = vand.u32 %v56, 2147483648
  %v69 = vsel %vm67, %v68, %v66
  %v70 = vrsqrt.pop %v57
  %v71 = vmul.f32 %v70, %v57
  %v72 = vmul.f32 %v71, %v70
  %v73 = vmul.f32 0.5, %v72
  %v74 = vsub.f32 1.5, %v73
  %v75 = vmul.f32 %v70, %v74
  %v76 = vmul.f32 %v57, %v75
  %vm77 = vcmp.eq.f32.partialorder %v57, inf
  %v78 = vsel %vm77, %v57, %v76
  %vm79 = vcmp.eq.f32.partialorder %v57, 0.0
  %v80 = vand.u32 %v57, 2147483648
  %v81 = vsel %vm79, %v80, %v78
  %v83 = vperm.slane %v28, 0
  %v85 = vmul.f32 %v83, %v46
  %v86 = vmul.f32 %v83, %v47
  %v87 = vadd.f32 %v69, 1e-06
  %v88 = vadd.f32 %v81, 1e-06
  %v89 = vrcp.pop %v87
  %v90 = vmul.f32 %v87, %v89
  %v91 = vsub.f32 1.0, %v90
  %v92 = vmul.f32 %v89, %v91
  %v93 = vadd.f32 %v89, %v92
  %vm94 = vweird.f32 %v87
  %vm95 = vweird.f32 %v89
  %vm96 = vmor %vm94, %vm95
  %v97 = vsel %vm96, %v89, %v93
  %v98 = vand.u32 2147483647, %v87
  %vm99 = vcmp.eq.f32.partialorder %v98, 8.507059e+37
  %v100 = vand.u32 %v87, 2147483648
  %v101 = vor.u32 1.1754944e-38, %v100
  %v102 = vsel %vm99, %v101, %v97
  %v103 = vmul.f32 %v85, %v102
  %v104 = vrcp.pop %v88
  %v105 = vmul.f32 %v88, %v104
  %v106 = vsub.f32 1.0, %v105
  %v107 = vmul.f32 %v104, %v106
  %v108 = vadd.f32 %v104, %v107
  %vm109 = vweird.f32 %v88
  %vm110 = vweird.f32 %v104
  %vm111 = vmor %vm109, %vm110
  %v112 = vsel %vm111, %v104, %v108
  %v113 = vand.u32 2147483647, %v88
  %vm114 = vcmp.eq.f32.partialorder %v113, 8.507059e+37
  %v115 = vand.u32 %v88, 2147483648
  %v116 = vor.u32 1.1754944e-38, %v115
  %v117 = vsel %vm114, %v116, %v112
  %v118 = vmul.f32 %v86, %v117
  %v120 = vperm.slane %v29, 0
  %v122 = vadd.f32 %v103, %v120
  %v123 = vadd.f32 %v118, %v120
  %v124 = vld [vmem:[%s3] sm:$0xff]
  %v125 = vld [vmem:[%s3 + $0x8] sm:$0xff]
  %v126 = vld [vmem:[%s3 + $0x10] sm:$0xff]
  %v127 = vld [vmem:[%s3 + $0x18] sm:$0xff]
  %v128 = vld [vmem:[%s4] sm:$0x1]
  %v130 = vperm.slane %v128, 0
  %v133 = vsel %vm30, %v122, 0
  %v136 = vsel %vm30, %v123, 0
  %138 = vmatpush.msra.mxu0 0.0
  %139 = vmatpush.msra.mxu0 0.0
  %140 = vmatpush.msra.mxu0 0.0
  %141 = vmatpush.msra.mxu0 0.0
  %142 = vmatpush.msra.mxu0 0.0
  %143 = vmatpush.msra.mxu0 0.0
  %144 = vmatpush.msra.mxu0 0.0
  %145 = vmatpush.msra.mxu0 0.0
  %146 = vmatpush.msra.mxu0 0.0
  %147 = vmatpush.msra.mxu0 0.0
  %148 = vmatpush.msra.mxu0 0.0
  %149 = vmatpush.msra.mxu0 0.0
  %150 = vmatpush.msra.mxu0 %v127
  %151 = vmatpush.msra.mxu0 %v126
  %152 = vmatpush.msra.mxu0 %v125
  %153 = vmatpush.msra.mxu0 %v124
  %154 = vmatmul.f32.gmra.mxu0 %v133
  %v155 = vpop.f32.mrf.mxu0
  %v156 = vadd.f32 %v130, %v155
  %157 = vmatmul.f32.gmra.mxu0 %v136
  %v158 = vpop.f32.mrf.mxu0
  %v159 = vadd.f32 %v130, %v158
  %160 = vdwg.mxu0
  %v161 = vmax.f32 %v156, 0.0
  %v162 = vmax.f32 %v159, 0.0
  %v163 = vld [vmem:[%s5] sm:$0xff]
  %v164 = vld [vmem:[%s5 + $0x8] sm:$0xff]
  %v165 = vld [vmem:[%s5 + $0x10] sm:$0xff]
  %v166 = vld [vmem:[%s5 + $0x18] sm:$0xff]
  %v167 = vld [vmem:[%s5 + $0x20] sm:$0xff]
  %v168 = vld [vmem:[%s5 + $0x28] sm:$0xff]
  %v169 = vld [vmem:[%s5 + $0x30] sm:$0xff]
  %v170 = vld [vmem:[%s5 + $0x38] sm:$0xff]
  %v171 = vld [vmem:[%s6] sm:$0x1]
  %v173 = vperm.slane %v171, 0
  %vm175 = vcmask 523264
  %v177 = vsel %vm175, %v161, 0
  %v180 = vsel %vm175, %v162, 0
  %182 = vmatpush.msra.mxu0 0.0
  %183 = vmatpush.msra.mxu0 0.0
  %184 = vmatpush.msra.mxu0 0.0
  %185 = vmatpush.msra.mxu0 0.0
  %186 = vmatpush.msra.mxu0 0.0
  %187 = vmatpush.msra.mxu0 0.0
  %188 = vmatpush.msra.mxu0 0.0
  %189 = vmatpush.msra.mxu0 0.0
  %190 = vmatpush.msra.mxu0 %v170
  %191 = vmatpush.msra.mxu0 %v169
  %192 = vmatpush.msra.mxu0 %v168
  %193 = vmatpush.msra.mxu0 %v167
  %194 = vmatpush.msra.mxu0 %v166
  %195 = vmatpush.msra.mxu0 %v165
  %196 = vmatpush.msra.mxu0 %v164
  %197 = vmatpush.msra.mxu0 %v163
  %198 = vmatmul.f32.gmra.mxu0 %v177
  %v199 = vpop.f32.mrf.mxu0
  %v200 = vadd.f32 %v173, %v199
  %201 = vmatmul.f32.gmra.mxu0 %v180
  %v202 = vpop.f32.mrf.mxu0
  %v203 = vadd.f32 %v173, %v202
  %204 = vdwg.mxu0
  %v205 = vadd.f32 %v26, %v200
  %v206 = vadd.f32 %v27, %v203
  %207 = vst.msk [vmem:[%s7] sm:$0xff] %vm30, %v205
  %208 = vst.msk [vmem:[%s7 + $0x8] sm:$0xff] %vm30, %v206
  // Predicated region
  $region30: #{encoder_forward.8} parent=0 // pred_check
    _
  $region31: #{encoder_forward.8} parent=0 // pred_check_branch
    %210 = sbr.rel (0) target = $region33
  $region32: #{encoder_forward.8} parent=0 // pred_region
    _
  $region33: #{encoder_forward.8} parent=0 // pred_fallthru
    _
  // Predicated region
  $region34: #{encoder_forward.8} parent=0 // pred_check
    _
  $region35: #{encoder_forward.8} parent=0 // pred_check_branch
    %212 = sbr.rel (0) target = $region37
  $region36: #{encoder_forward.8} parent=0 // pred_region
    _
  $region37: #{encoder_forward.8} parent=0 // pred_fallthru
    _

// kernel: encoder_forward.5
$region0: #{encoder_forward.5}
  #allocation0 [shape = 'u32[]', space=smem, size = 0x4, offset = 0x4, fixed_abs, tag = 'smem constant byte address 0x4 - core index']
  #allocation1 [shape = 'u32[72,128]{1,0:T(1,128)}', space=vmem, size = 0x9000, scoped, tag = 'internal scratch']
  %s0 = inlined_call_operand.hbm [shape: f32[2,8,32], index: 0, kind: input, shape index: {}]
  %s1 = inlined_call_operand.vmem [shape: f32[2,1,8], index: 1, kind: input, shape index: {}]
  %s2 = inlined_call_operand.hbm [shape: f32[1,32], index: 2, kind: input, shape index: {}]
  %s3 = inlined_call_operand.hbm [shape: f32[1,32], index: 3, kind: input, shape index: {}]
  %s4 = inlined_call_operand.hbm [shape: f32[32,96], index: 4, kind: input, shape index: {}]
  %s5 = inlined_call_operand.hbm [shape: f32[1,96], index: 5, kind: input, shape index: {}]
  %s6 = inlined_call_operand.hbm [shape: f32[32,32], index: 6, kind: input, shape index: {}]
  %s7 = inlined_call_operand.hbm [shape: f32[1,32], index: 7, kind: input, shape index: {}]
  %s8 = inlined_call_operand.vmem [shape: f32[2,8,32], index: 8, kind: output, shape index: {}]
  %s9 = sld [smem:[#allocation0]]
  $region93: #{encoder_forward.5} parent=0
    _
  %s11 = ssub.s32 1, %s9
  %s12 = scalar_select 0, %s11, %s9
  $region1: #{encoder_forward.5} parent=0
    #allocation2 [shape = 'u8[8192]{0}', space=vmem, size = 0x2000, scoped, tag = 'input window, operand 0']
    #allocation3 [shape = 's32[2]{0}', space=sflag, size = 0x8, scoped, tag = 'scoped memory for encoder_forward.5']
    #allocation4 [shape = 'u8[512]{0}', space=vmem, size = 0x400, scoped, tag = 'input window, operand 2, single buffered']
    #allocation5 [shape = 's32[1]{0}', space=sflag, size = 0x4, scoped, tag = 'scoped memory for encoder_forward.5']
    #allocation6 [shape = 'u8[512]{0}', space=vmem, size = 0x400, scoped, tag = 'input window, operand 3, single buffered']
    #allocation7 [shape = 'u8[16384]{0}', space=vmem, size = 0x4000, scoped, tag = 'input window, operand 4, single buffered']
    #allocation8 [shape = 's32[1]{0}', space=sflag, size = 0x4, scoped, tag = 'scoped memory for encoder_forward.5']
    #allocation9 [shape = 'u8[512]{0}', space=vmem, size = 0x400, scoped, tag = 'input window, operand 5, single buffered']
    #allocation10 [shape = 'u8[16384]{0}', space=vmem, size = 0x4000, scoped, tag = 'input window, operand 6, single buffered']
    #allocation11 [shape = 's32[1]{0}', space=sflag, size = 0x4, scoped, tag = 'scoped memory for encoder_forward.5']
    #allocation12 [shape = 'u8[512]{0}', space=vmem, size = 0x400, scoped, tag = 'input window, operand 7, single buffered']
    %13 = vsyncpa [#allocation3], 0
    %s14 = scalar_lea.sflag [#allocation3], 1
    %15 = vsyncpa %s14, 0
    %16 = vsyncpa [#allocation5], 0
    %17 = vsyncpa [#allocation8], 0
    %18 = vsyncpa [#allocation11], 0
    loop: start=0, step=1, limit=4
    $region2: #{encoder_forward.5} parent=1 // loop_pre_header
      _
    $region3: #{encoder_forward.5} parent=1 // loop_header
      %s20 = sphi 0, %s24
      %p21 = scmp.ge.s32.totalorder %s20, 4
      %s30 = sphi 0, %s32
      %s33 = sphi 0, %s30
      %s34 = sphi 0, %s33
      %s50 = sphi 0, %s34
      %s56 = sphi 0, %s58
      %s59 = sphi 0, %s56
      %s60 = sphi 0, %s59
      %s76 = sphi 0, %s60
      %s80 = sphi 0, %s80
      %s82 = sphi 0, %s80
      %s83 = sphi 0, %s82
      %s97 = sphi 0, %s83
      %s101 = sphi 0, %s101
      %s103 = sphi 0, %s101
      %s104 = sphi 0, %s103
      %s118 = sphi 0, %s104
      %s122 = sphi 0, %s122
      %s124 = sphi 0, %s122
      %s125 = sphi 0, %s124
      %s139 = sphi 0, %s125
      %s143 = sphi 0, %s143
      %s145 = sphi 0, %s143
      %s146 = sphi 0, %s145
      %s160 = sphi 0, %s146
      %s164 = sphi 0, %s164
      %s166 = sphi 0, %s164
      %s167 = sphi 0, %s166
      %s181 = sphi 0, %s167
      %s185 = sphi 0, %s185
      %s187 = sphi 0, %s185
      %s188 = sphi 0, %s187
      %s202 = sphi 0, %s188
      %s208 = sphi 0, %s210
      %s211 = sphi 0, %s208
      %s212 = sphi 0, %s211
      %s228 = sphi 0, %s212
    $region4: #{encoder_forward.5} parent=1 // loop_header_branch
      %23 = sbr.rel (%p21) target = $region8
    $region5: #{encoder_forward.5} parent=1 // loop_body
      %s25 = ssub.s32 %s20, 1
      %s26 = ssub.s32 %s20, 2
      %s27 = sadd.s32 %s20, 1
      %s28 = ssub.s32 %s20, %s27
      %p29 = scmp.eq.s32.totalorder %s28, 0
      %s31 = sadd.s32 %s30, 1
      %s32 = scalar_select %p29, %s30, %s31
      %p35 = pneg %p29
      %p36 = scmp.eq.s32.totalorder %s20, 1
      %p37 = por %p35, %p36
      %p38 = scmp.ne.s32.totalorder %s30, %s33
      %p39 = scmp.eq.s32.totalorder %s20, 0
      %p40 = por %p38, %p39
      %p41 = scmp.ne.s32.totalorder %s30, %s33
      %p42 = scmp.eq.s32.totalorder %s25, 1
      %p43 = por %p41, %p42
      %p44 = scmp.ne.s32.totalorder %s33, %s34
      %p45 = scmp.eq.s32.totalorder %s25, 0
      %p46 = por %p44, %p45
      %p47 = scmp.ne.s32.totalorder %s33, %s34
      %p48 = scmp.eq.s32.totalorder %s26, 1
      %p49 = por %p47, %p48
      %p51 = scmp.ne.s32.totalorder %s34, %s50
      %p52 = scmp.eq.s32.totalorder %s26, 0
      %p53 = por %p51, %p52
      %s54 = ssub.s32 %s20, %s27
      %p55 = scmp.eq.s32.totalorder %s54, 0
      %s57 = sadd.s32 %s56, 1
      %s58 = scalar_select %p55, %s56, %s57
      %p61 = pneg %p55
      %p62 = scmp.eq.s32.totalorder %s20, 1
      %p63 = por %p61, %p62
      %p64 = scmp.ne.s32.totalorder %s56, %s59
      %p65 = scmp.eq.s32.totalorder %s20, 0
      %p66 = por %p64, %p65
      %p67 = scmp.ne.s32.totalorder %s56, %s59
      %p68 = scmp.eq.s32.totalorder %s25, 1
      %p69 = por %p67, %p68
      %p70 = scmp.ne.s32.totalorder %s59, %s60
      %p71 = scmp.eq.s32.totalorder %s25, 0
      %p72 = por %p70, %p71
      %p73 = scmp.ne.s32.totalorder %s59, %s60
      %p74 = scmp.eq.s32.totalorder %s26, 1
      %p75 = por %p73, %p74
      %p77 = scmp.ne.s32.totalorder %s60, %s76
      %p78 = scmp.eq.s32.totalorder %s26, 0
      %p79 = por %p77, %p78
      %s81 = sadd.s32 %s80, 1
      %p84 = scmp.eq.s32.totalorder %s20, 1
      %p85 = scmp.ne.s32.totalorder %s80, %s82
      %p86 = scmp.eq.s32.totalorder %s20, 0
      %p87 = por %p85, %p86
      %p88 = scmp.ne.s32.totalorder %s80, %s82
      %p89 = scmp.eq.s32.totalorder %s25, 1
      %p90 = por %p88, %p89
      %p91 = scmp.ne.s32.totalorder %s82, %s83
      %p92 = scmp.eq.s32.totalorder %s25, 0
      %p93 = por %p91, %p92
      %p94 = scmp.ne.s32.totalorder %s82, %s83
      %p95 = scmp.eq.s32.totalorder %s26, 1
      %p96 = por %p94, %p95
      %p98 = scmp.ne.s32.totalorder %s83, %s97
      %p99 = scmp.eq.s32.totalorder %s26, 0
      %p100 = por %p98, %p99
      %s102 = sadd.s32 %s101, 1
      %p105 = scmp.eq.s32.totalorder %s20, 1
      %p106 = scmp.ne.s32.totalorder %s101, %s103
      %p107 = scmp.eq.s32.totalorder %s20, 0
      %p108 = por %p106, %p107
      %p109 = scmp.ne.s32.totalorder %s101, %s103
      %p110 = scmp.eq.s32.totalorder %s25, 1
      %p111 = por %p109, %p110
      %p112 = scmp.ne.s32.totalorder %s103, %s104
      %p113 = scmp.eq.s32.totalorder %s25, 0
      %p114 = por %p112, %p113
      %p115 = scmp.ne.s32.totalorder %s103, %s104
      %p116 = scmp.eq.s32.totalorder %s26, 1
      %p117 = por %p115, %p116
      %p119 = scmp.ne.s32.totalorder %s104, %s118
      %p120 = scmp.eq.s32.totalorder %s26, 0
      %p121 = por %p119, %p120
      %s123 = sadd.s32 %s122, 1
      %p126 = scmp.eq.s32.totalorder %s20, 1
      %p127 = scmp.ne.s32.totalorder %s122, %s124
      %p128 = scmp.eq.s32.totalorder %s20, 0
      %p129 = por %p127, %p128
      %p130 = scmp.ne.s32.totalorder %s122, %s124
      %p131 = scmp.eq.s32.totalorder %s25, 1
      %p132 = por %p130, %p131
      %p133 = scmp.ne.s32.totalorder %s124, %s125
      %p134 = scmp.eq.s32.totalorder %s25, 0
      %p135 = por %p133, %p134
      %p136 = scmp.ne.s32.totalorder %s124, %s125
      %p137 = scmp.eq.s32.totalorder %s26, 1
      %p138 = por %p136, %p137
      %p140 = scmp.ne.s32.totalorder %s125, %s139
      %p141 = scmp.eq.s32.totalorder %s26, 0
      %p142 = por %p140, %p141
      %s144 = sadd.s32 %s143, 1
      %p147 = scmp.eq.s32.totalorder %s20, 1
      %p148 = scmp.ne.s32.totalorder %s143, %s145
      %p149 = scmp.eq.s32.totalorder %s20, 0
      %p150 = por %p148, %p149
      %p151 = scmp.ne.s32.totalorder %s143, %s145
      %p152 = scmp.eq.s32.totalorder %s25, 1
      %p153 = por %p151, %p152
      %p154 = scmp.ne.s32.totalorder %s145, %s146
      %p155 = scmp.eq.s32.totalorder %s25, 0
      %p156 = por %p154, %p155
      %p157 = scmp.ne.s32.totalorder %s145, %s146
      %p158 = scmp.eq.s32.totalorder %s26, 1
      %p159 = por %p157, %p158
      %p161 = scmp.ne.s32.totalorder %s146, %s160
      %p162 = scmp.eq.s32.totalorder %s26, 0
      %p163 = por %p161, %p162
      %s165 = sadd.s32 %s164, 1
      %p168 = scmp.eq.s32.totalorder %s20, 1
      %p169 = scmp.ne.s32.totalorder %s164, %s166
      %p170 = scmp.eq.s32.totalorder %s20, 0
      %p171 = por %p169, %p170
      %p172 = scmp.ne.s32.totalorder %s164, %s166
      %p173 = scmp.eq.s32.totalorder %s25, 1
      %p174 = por %p172, %p173
      %p175 = scmp.ne.s32.totalorder %s166, %s167
      %p176 = scmp.eq.s32.totalorder %s25, 0
      %p177 = por %p175, %p176
      %p178 = scmp.ne.s32.totalorder %s166, %s167
      %p179 = scmp.eq.s32.totalorder %s26, 1
      %p180 = por %p178, %p179
      %p182 = scmp.ne.s32.totalorder %s167, %s181
      %p183 = scmp.eq.s32.totalorder %s26, 0
      %p184 = por %p182, %p183
      %s186 = sadd.s32 %s185, 1
      %p189 = scmp.eq.s32.totalorder %s20, 1
      %p190 = scmp.ne.s32.totalorder %s185, %s187
      %p191 = scmp.eq.s32.totalorder %s20, 0
      %p192 = por %p190, %p191
      %p193 = scmp.ne.s32.totalorder %s185, %s187
      %p194 = scmp.eq.s32.totalorder %s25, 1
      %p195 = por %p193, %p194
      %p196 = scmp.ne.s32.totalorder %s187, %s188
      %p197 = scmp.eq.s32.totalorder %s25, 0
      %p198 = por %p196, %p197
      %p199 = scmp.ne.s32.totalorder %s187, %s188
      %p200 = scmp.eq.s32.totalorder %s26, 1
      %p201 = por %p199, %p200
      %p203 = scmp.ne.s32.totalorder %s188, %s202
      %p204 = scmp.eq.s32.totalorder %s26, 0
      %p205 = por %p203, %p204
      %s206 = ssub.s32 %s20, %s27
      %p207 = scmp.eq.s32.totalorder %s206, 0
      %s209 = sadd.s32 %s208, 1
      %s210 = scalar_select %p207, %s208, %s209
      %p213 = pneg %p207
      %p214 = scmp.eq.s32.totalorder %s20, 1
      %p215 = por %p213, %p214
      %p216 = scmp.ne.s32.totalorder %s208, %s211
      %p217 = scmp.eq.s32.totalorder %s20, 0
      %p218 = por %p216, %p217
      %p219 = scmp.ne.s32.totalorder %s208, %s211
      %p220 = scmp.eq.s32.totalorder %s25, 1
      %p221 = por %p219, %p220
      %p222 = scmp.ne.s32.totalorder %s211, %s212
      %p223 = scmp.eq.s32.totalorder %s25, 0
      %p224 = por %p222, %p223
      %p225 = scmp.ne.s32.totalorder %s211, %s212
      %p226 = scmp.eq.s32.totalorder %s26, 1
      %p227 = por %p225, %p226
      %p229 = scmp.ne.s32.totalorder %s212, %s228
      %p230 = scmp.eq.s32.totalorder %s26, 0
      %p231 = por %p229, %p230
      %p232 = scmp.le.s32.totalorder 1, %s20
      %p233 = scmp.lt.s32.totalorder %s20, 3
      %p234 = pnand %p232, %p233
      %p235 = pneg %p234
      // Predicated region
      $region9: #{encoder_forward.5} parent=5 // pred_check
        _
      $region10: #{encoder_forward.5} parent=5 // pred_check_branch
        %237 = sbr.rel (%p234) target = $region12
      $region11: #{encoder_forward.5} parent=5 // pred_region
        %s238 = ssub.s32 %s20, 1
        // Predicated region
        $region13: #{encoder_forward.5} parent=11 // pred_check
          %p239 = pneg %p93
        $region14: #{encoder_forward.5} parent=11 // pred_check_branch
          %241 = sbr.rel (%p239) target = $region16
        $region15: #{encoder_forward.5} parent=11 // pred_region
          %243 = vsyncadd [#allocation5], 0
          %s245 = sshll.u32 %s2, 4
          %s246 = int_to_ptr.hbm [resolvable:$true] %s245
          %s247 = sshll.u32 [#allocation4], 4
          %s248 = int_to_ptr.vmem [resolvable:$true] %s247
          %250 = dma.hbm_to_vmem [thread:$0]  %s246, 16, %s248, [#allocation5]
        $region16: #{encoder_forward.5} parent=11 // pred_fallthru
          _
        // Predicated region
        $region17: #{encoder_forward.5} parent=11 // pred_check
          %p251 = pneg %p114
        $region18: #{encoder_forward.5} parent=11 // pred_check_branch
          %253 = sbr.rel (%p251) target = $region20
        $region19: #{encoder_forward.5} parent=11 // pred_region
          %255 = vsyncadd [#allocation5], 0
          %s257 = sshll.u32 %s3, 4
          %s258 = int_to_ptr.hbm [resolvable:$true] %s257
          %s259 = sshll.u32 [#allocation6], 4
          %s260 = int_to_ptr.vmem [resolvable:$true] %s259
          %262 = dma.hbm_to_vmem [thread:$0]  %s258, 16, %s260, [#allocation5]
        $region20: #{encoder_forward.5} parent=11 // pred_fallthru
          _
        // Predicated region
        $region21: #{encoder_forward.5} parent=11 // pred_check
          %p263 = pneg %p135
        $region22: #{encoder_forward.5} parent=11 // pred_check_branch
          %265 = sbr.rel (%p263) target = $region24
        $region23: #{encoder_forward.5} parent=11 // pred_region
          %267 = vsyncadd [#allocation8], 0
          %s268 = sshll.u32 %s4, 4
          %s269 = int_to_ptr.hbm [resolvable:$true] %s268
          %s270 = sshll.u32 [#allocation7], 4
          %s271 = int_to_ptr.vmem [resolvable:$true] %s270
          %276 = dma.hbm_to_vmem [thread:$0]  %s269, 512, %s271, [#allocation8], 128, 128, 8
        $region24: #{encoder_forward.5} parent=11 // pred_fallthru
          _
        // Predicated region
        $region25: #{encoder_forward.5} parent=11 // pred_check
          %p277 = pneg %p156
        $region26: #{encoder_forward.5} parent=11 // pred_check_branch
          %279 = sbr.rel (%p277) target = $region28
        $region27: #{encoder_forward.5} parent=11 // pred_region
          %281 = vsyncadd [#allocation8], 0
          %s283 = sshll.u32 %s5, 4
          %s284 = int_to_ptr.hbm [resolvable:$true] %s283
          %s285 = sshll.u32 [#allocation9], 4
          %s286 = int_to_ptr.vmem [resolvable:$true] %s285
          %288 = dma.hbm_to_vmem [thread:$0]  %s284, 16, %s286, [#allocation8]
        $region28: #{encoder_forward.5} parent=11 // pred_fallthru
          _
        // Predicated region
        $region29: #{encoder_forward.5} parent=11 // pred_check
          %p289 = pneg %p177
        $region30: #{encoder_forward.5} parent=11 // pred_check_branch
          %291 = sbr.rel (%p289) target = $region32
        $region31: #{encoder_forward.5} parent=11 // pred_region
          %293 = vsyncadd [#allocation11], 0
          %s294 = sshll.u32 %s6, 4
          %s295 = int_to_ptr.hbm [resolvable:$true] %s294
          %s296 = sshll.u32 [#allocation10], 4
          %s297 = int_to_ptr.vmem [resolvable:$true] %s296
          %302 = dma.hbm_to_vmem [thread:$0]  %s295, 512, %s297, [#allocation11], 128, 128, 8
        $region32: #{encoder_forward.5} parent=11 // pred_fallthru
          _
        // Predicated region
        $region33: #{encoder_forward.5} parent=11 // pred_check
          %p303 = pneg %p198
        $region34: #{encoder_forward.5} parent=11 // pred_check_branch
          %305 = sbr.rel (%p303) target = $region36
        $region35: #{encoder_forward.5} parent=11 // pred_region
          %307 = vsyncadd [#allocation11], 0
          %s309 = sshll.u32 %s7, 4
          %s310 = int_to_ptr.hbm [resolvable:$true] %s309
          %s311 = sshll.u32 [#allocation12], 4
          %s312 = int_to_ptr.vmem [resolvable:$true] %s311
          %314 = dma.hbm_to_vmem [thread:$0]  %s310, 16, %s312, [#allocation11]
        $region36: #{encoder_forward.5} parent=11 // pred_fallthru
          _
      $region12: #{encoder_forward.5} parent=5 // pred_fallthru
        _
      %p315 = scmp.lt.s32.totalorder %s20, 2
      // Predicated region
      $region37: #{encoder_forward.5} parent=5 // pred_check
        %p316 = pneg %p315
      $region38: #{encoder_forward.5} parent=5 // pred_check_branch
        %318 = sbr.rel (%p316) target = $region40
      $region39: #{encoder_forward.5} parent=5 // pred_region
        // Predicated region
        $region41: #{encoder_forward.5} parent=39 // pred_check
          %p319 = pneg %p40
        $region42: #{encoder_forward.5} parent=39 // pred_check_branch
          %321 = sbr.rel (%p319) target = $region44
        $region43: #{encoder_forward.5} parent=39 // pred_region
          %s322 = sand.u32 %s30, 1
          %s323 = scalar_lea.sflag [#allocation3], %s322
          %s324 = sand.u32 %s30, 1
          %s325 = smul.addr %s324, 8
          %s326 = scalar_lea.vmem [#allocation2], %s325
          %328 = vsyncadd %s323, 0
          %s329 = smul.addr %s20, 8
          %s330 = scalar_lea.hbm %s0, %s329
          %s332 = sshll.u32 %s330, 4
          %s333 = int_to_ptr.hbm [resolvable:$true] %s332
          %s334 = sshll.u32 %s326, 4
          %s335 = int_to_ptr.vmem [resolvable:$true] %s334
          %337 = dma.hbm_to_vmem [thread:$0]  %s333, 128, %s335, %s323
        $region44: #{encoder_forward.5} parent=39 // pred_fallthru
          _
        // Predicated region
        $region45: #{encoder_forward.5} parent=39 // pred_check
          %p338 = pneg %p66
        $region46: #{encoder_forward.5} parent=39 // pred_check_branch
          %340 = sbr.rel (%p338) target = $region48
        $region47: #{encoder_forward.5} parent=39 // pred_region
          %p341 = scmp.lt.s32.totalorder %s20, 1
          %s342 = scalar_select %p341, %s20, 1
          %s343 = scalar_lea.vmem %s1, %s342
        $region48: #{encoder_forward.5} parent=39 // pred_fallthru
          _
      $region40: #{encoder_forward.5} parent=5 // pred_fallthru
        _
      %p344 = scmp.le.s32.totalorder 1, %s20
      %p345 = scmp.lt.s32.totalorder %s20, 3
      %p346 = pnand %p344, %p345
      %p347 = pneg %p346
      // Predicated region
      $region49: #{encoder_forward.5} parent=5 // pred_check
        _
      $region50: #{encoder_forward.5} parent=5 // pred_check_branch
        %349 = sbr.rel (%p346) target = $region52
      $region51: #{encoder_forward.5} parent=5 // pred_region
        %s350 = ssub.s32 %s20, 1
        %s351 = sand.u32 %s33, 1
        %s352 = scalar_lea.sflag [#allocation3], %s351
        %s353 = sand.u32 %s33, 1
        %s354 = smul.addr %s353, 8
        %s355 = scalar_lea.vmem [#allocation2], %s354
        // Predicated region
        $region53: #{encoder_forward.5} parent=51 // pred_check
          %p356 = pneg %p46
        $region54: #{encoder_forward.5} parent=51 // pred_check_branch
          %358 = sbr.rel (%p356) target = $region56
        $region55: #{encoder_forward.5} parent=51 // pred_region
          %360 = dma.done %s352, 128
        $region56: #{encoder_forward.5} parent=51 // pred_fallthru
          _
        // Predicated region
        $region57: #{encoder_forward.5} parent=51 // pred_check
          %p361 = pneg %p93
        $region58: #{encoder_forward.5} parent=51 // pred_check_branch
          %363 = sbr.rel (%p361) target = $region60
        $region59: #{encoder_forward.5} parent=51 // pred_region
          %365 = dma.done [#allocation5], 16
        $region60: #{encoder_forward.5} parent=51 // pred_fallthru
          _
        // Predicated region
        $region61: #{encoder_forward.5} parent=51 // pred_check
          %p366 = pneg %p114
        $region62: #{encoder_forward.5} parent=51 // pred_check_branch
          %368 = sbr.rel (%p366) target = $region64
        $region63: #{encoder_forward.5} parent=51 // pred_region
          %370 = dma.done [#allocation5], 16
        $region64: #{encoder_forward.5} parent=51 // pred_fallthru
          _
        // Predicated region
        $region65: #{encoder_forward.5} parent=51 // pred_check
          %p371 = pneg %p135
        $region66: #{encoder_forward.5} parent=51 // pred_check_branch
          %373 = sbr.rel (%p371) target = $region68
        $region67: #{encoder_forward.5} parent=51 // pred_region
          %375 = dma.done [#allocation8], 512
        $region68: #{encoder_forward.5} parent=51 // pred_fallthru
          _
        // Predicated region
        $region69: #{encoder_forward.5} parent=51 // pred_check
          %p376 = pneg %p156
        $region70: #{encoder_forward.5} parent=51 // pred_check_branch
          %378 = sbr.rel (%p376) target = $region72
        $region71: #{encoder_forward.5} parent=51 // pred_region
          %380 = dma.done [#allocation8], 16
        $region72: #{encoder_forward.5} parent=51 // pred_fallthru
          _
        // Predicated region
        $region73: #{encoder_forward.5} parent=51 // pred_check
          %p381 = pneg %p177
        $region74: #{encoder_forward.5} parent=51 // pred_check_branch
          %383 = sbr.rel (%p381) target = $region76
        $region75: #{encoder_forward.5} parent=51 // pred_region
          %385 = dma.done [#allocation11], 512
        $region76: #{encoder_forward.5} parent=51 // pred_fallthru
          _
        // Predicated region
        $region77: #{encoder_forward.5} parent=51 // pred_check
          %p386 = pneg %p198
        $region78: #{encoder_forward.5} parent=51 // pred_check_branch
          %388 = sbr.rel (%p386) target = $region80
        $region79: #{encoder_forward.5} parent=51 // pred_region
          %390 = dma.done [#allocation11], 16
        $region80: #{encoder_forward.5} parent=51 // pred_fallthru
          _
        %s391 = sand.u32 %s33, 1
        %s392 = scalar_lea.sflag [#allocation3], %s391
        %s393 = sand.u32 %s33, 1
        %s394 = smul.addr %s393, 8
        %s395 = scalar_lea.vmem [#allocation2], %s394
        %p396 = pneg %p46
        %p397 = pneg %p43
        %p398 = scmp.lt.s32.totalorder %s25, 1
        %s399 = scalar_select %p398, %s25, 1
        %s400 = scalar_lea.vmem %s1, %s399
        %p401 = pneg %p72
        %p402 = pneg %p69
        %p403 = pneg %p93
        %p404 = pneg %p90
        %p405 = pneg %p114
        %p406 = pneg %p111
        %p407 = pneg %p135
        %p408 = pneg %p132
        %p409 = pneg %p156
        %p410 = pneg %p153
        %p411 = pneg %p177
        %p412 = pneg %p174
        %p413 = pneg %p198
        %p414 = pneg %p195
        %p415 = pneg %p224
        %p416 = pneg %p221
        %p417 = scmp.lt.s32.totalorder %s25, 1
        %s418 = scalar_select %p417, %s25, 1
        %s419 = smul.addr %s418, 8
        %s420 = scalar_lea.vmem %s8, %s419
        %p421 = scmp.lt.s32.totalorder %s25, 1
        %s422 = scalar_select %p421, %s25, 1
        %s423 = scalar_lea.vmem %s1, %s422
        %p424 = scmp.lt.s32.totalorder %s25, 1
        %s425 = scalar_select %p424, %s25, 1
        %s426 = smul.addr %s425, 8
        %s427 = scalar_lea.vmem %s8, %s426
        %v428 = vld [vmem:[%s355] sm:$0xff]
        %v429 = vld [vmem:[#allocation4] sm:$0x1]
        %v430 = vld [vmem:[#allocation6] sm:$0x1]
        %vm431 = vcmask 261120
        %v432 = vsel %vm431, %v428, 0.0
        %433 = vadd.xlane.f32.xlu0 %v432
        %v434 = vpop.xlane.xlu0 %433
        %v435 = vrcp.pop 32.0
        %v436 = vmul.f32 32.0, %v435
        %v437 = vsub.f32 1.0, %v436
        %v438 = vmul.f32 %v435, %v437
        %v439 = vadd.f32 %v435, %v438
        %vm440 = vweird.f32 %v435
        %v441 = vsel %vm440, %v435, %v439
        %v442 = vmul.f32 %v434, %v441
        %v443 = vsub.f32 %v428, %v442
        %v444 = vmul.f32 %v443, %v443
        %v445 = vsel %vm431, %v444, 0.0
        %446 = vadd.xlane.f32.xlu0 %v445
        %v447 = vpop.xlane.xlu0 %446
        %v448 = vmul.f32 %v447, 0.032258064
        %v449 = vrsqrt.pop %v448
        %v450 = vmul.f32 %v449, %v448
        %v451 = vmul.f32 %v450, %v449
        %v452 = vmul.f32 0.5, %v451
        %v453 = vsub.f32 1.5, %v452
        %v454 = vmul.f32 %v449, %v453
        %v455 = vmul.f32 %v448, %v454
        %vm456 = vcmp.eq.f32.partialorder %v448, inf
        %v457 = vsel %vm456, %v448, %v455
        %vm458 = vcmp.eq.f32.partialorder %v448, 0.0
        %v459 = vand.u32 %v448, 2147483648
        %v460 = vsel %vm458, %v459, %v457
        %v462 = vperm.slane %v429, 0
        %v464 = vmul.f32 %v462, %v443
        %v465 = vadd.f32 %v460, 1e-06
        %v466 = vrcp.pop %v465
        %v467 = vmul.f32 %v465, %v466
        %v468 = vsub.f32 1.0, %v467
        %v469 = vmul.f32 %v466, %v468
        %v470 = vadd.f32 %v466, %v469
        %vm471 = vweird.f32 %v465
        %vm472 = vweird.f32 %v466
        %vm473 = vmor %vm471, %vm472
        %v474 = vsel %vm473, %v466, %v470
        %v475 = vand.u32 2147483647, %v465
        %vm476 = vcmp.eq.f32.partialorder %v475, 8.507059e+37
        %v477 = vand.u32 %v465, 2147483648
        %v478 = vor.u32 1.1754944e-38, %v477
        %v479 = vsel %vm476, %v478, %v474
        %v480 = vmul.f32 %v464, %v479
        %v482 = vperm.slane %v430, 0
        %v484 = vadd.f32 %v480, %v482
        %v485 = vld [vmem:[#allocation7] sm:$0xff]
        %v486 = vld [vmem:[#allocation7 + $0x8] sm:$0xff]
        %v487 = vld [vmem:[#allocation7 + $0x10] sm:$0xff]
        %v488 = vld [vmem:[#allocation7 + $0x18] sm:$0xff]
        %v489 = vld [vmem:[#allocation9] sm:$0x1]
        %v491 = vperm.slane %v489, 0
        %v494 = vsel %vm431, %v484, 0
        %496 = vmatpush.msra.mxu0 0.0
        %497 = vmatpush.msra.mxu0 0.0
        %498 = vmatpush.msra.mxu0 0.0
        %499 = vmatpush.msra.mxu0 0.0
        %500 = vmatpush.msra.mxu0 0.0
        %501 = vmatpush.msra.mxu0 0.0
        %502 = vmatpush.msra.mxu0 0.0
        %503 = vmatpush.msra.mxu0 0.0
        %504 = vmatpush.msra.mxu0 0.0
        %505 = vmatpush.msra.mxu0 0.0
        %506 = vmatpush.msra.mxu0 0.0
        %507 = vmatpush.msra.mxu0 0.0
        %508 = vmatpush.msra.mxu0 %v488
        %509 = vmatpush.msra.mxu0 %v487
        %510 = vmatpush.msra.mxu0 %v486
        %511 = vmatpush.msra.mxu0 %v485
        %512 = vmatmul.f32.gmra.mxu0 %v494
        %v513 = vpop.f32.mrf.mxu0
        %v514 = vadd.f32 %v491, %v513
        %515 = vdwg.mxu0
        %v516 = vld [vmem:[%s423] sm:$0x1]
        %v517 = vmul.f32 %v514, 0.35355338
        %v519 = vperm.slane %v516, 0
        %522 = vrot.lane.b32.xlu0 %v514, 96
        %v523 = vpop.permute.xlu0 %522
        %vm524 = vcmask 64512
        %v526 = vsel %vm524, %v517, 0
        %v528 = vsel %vm524, %v523, 0
        %530 = vmatpush.xpose.msra.mxu0 0.0
        %531 = vmatpush.xpose.msra.mxu0 0.0
        %532 = vmatpush.xpose.msra.mxu0 0.0
        %533 = vmatpush.xpose.msra.mxu0 0.0
        %534 = vmatpush.xpose.msra.mxu0 0.0
        %535 = vmatpush.xpose.msra.mxu0 0.0
        %536 = vmatpush.xpose.msra.mxu0 0.0
        %537 = vmatpush.xpose.msra.mxu0 0.0
        %538 = vmatpush.xpose.msra.mxu0 0.0
        %539 = vmatpush.xpose.msra.mxu0 0.0
        %540 = vmatpush.xpose.msra.mxu0 0.0
        %541 = vmatpush.xpose.msra.mxu0 0.0
        %542 = vmatpush.xpose.msra.mxu0 0.0
        %543 = vmatpush.xpose.msra.mxu0 0.0
        %544 = vmatpush.xpose.msra.mxu0 0.0
        %545 = vmatpush.xpose.msra.mxu0 %v528
        %546 = vmatmul.f32.gmra.mxu0 %v526
        %v547 = vpop.f32.mrf.mxu0
        %v548 = vadd.f32 %v519, %v547
        %549 = vdwg.mxu0
        %v550 = vsel %vm524, %v548, -inf
        %551 = vmax.xlane.f32.xlu0 %v550
        %v552 = vpop.xlane.xlu0 %551
        %v553 = vsub.f32 %v548, %v552
        %v554 = vmul.f32 %v553, 1.442695
        %v555 = vpow.pop %v554
        %v556 = vsel %vm524, %v555, 0.0
        %557 = vadd.xlane.f32.xlu0 %v556
        %v558 = vpop.xlane.xlu0 %557
        %v559 = vrcp.pop %v558
        %v560 = vmul.f32 %v555, %v559
        %561 = vrot.lane.b32.xlu0 %v514, 64
        %v562 = vpop.permute.xlu0 %561
        %v565 = vsel %vm524, %v560, 0
        %567 = vmatpush.msra.mxu0 0.0
        %568 = vmatpush.msra.mxu0 0.0
        %569 = vmatpush.msra.mxu0 0.0
        %570 = vmatpush.msra.mxu0 0.0
        %571 = vmatpush.msra.mxu0 0.0
        %572 = vmatpush.msra.mxu0 0.0
        %573 = vmatpush.msra.mxu0 0.0
        %574 = vmatpush.msra.mxu0 0.0
        %575 = vmatpush.msra.mxu0 0.0
        %576 = vmatpush.msra.mxu0 0.0
        %577 = vmatpush.msra.mxu0 0.0
        %578 = vmatpush.msra.mxu0 0.0
        %579 = vmatpush.msra.mxu0 0.0
        %580 = vmatpush.msra.mxu0 0.0
        %581 = vmatpush.msra.mxu0 0.0
        %582 = vmatpush.msra.mxu0 %v562
        %583 = vmatmul.f32.gmra.mxu0 %v565
        %v584 = vpop.f32.mrf.mxu0
        %v585 = vadd.f32 0.0, %v584
        %586 = vdwg.mxu0
        %587 = vrot.lane.b32.xlu0 %v517, 120
        %v588 = vpop.permute.xlu0 %587
        %589 = vrot.lane.b32.xlu0 %v514, 88
        %v590 = vpop.permute.xlu0 %589
        %v591 = vsel %vm524, %v588, 0
        %v593 = vsel %vm524, %v590, 0
        %595 = vmatpush.xpose.msra.mxu0 0.0
        %596 = vmatpush.xpose.msra.mxu0 0.0
        %597 = vmatpush.xpose.msra.mxu0 0.0
        %598 = vmatpush.xpose.msra.mxu0 0.0
        %599 = vmatpush.xpose.msra.mxu0 0.0
        %600 = vmatpush.xpose.msra.mxu0 0.0
        %601 = vmatpush.xpose.msra.mxu0 0.0
        %602 = vmatpush.xpose.msra.mxu0 0.0
        %603 = vmatpush.xpose.msra.mxu0 0.0
        %604 = vmatpush.xpose.msra.mxu0 0.0
        %605 = vmatpush.xpose.msra.mxu0 0.0
        %606 = vmatpush.xpose.msra.mxu0 0.0
        %607 = vmatpush.xpose.msra.mxu0 0.0
        %608 = vmatpush.xpose.msra.mxu0 0.0
        %609 = vmatpush.xpose.msra.mxu0 0.0
        %610 = vmatpush.xpose.msra.mxu0 %v593
        %611 = vmatmul.f32.gmra.mxu0 %v591
        %v612 = vpop.f32.mrf.mxu0
        %v613 = vadd.f32 %v519, %v612
        %614 = vdwg.mxu0
        %v615 = vsel %vm524, %v613, -inf
        %616 = vmax.xlane.f32.xlu0 %v615
        %v617 = vpop.xlane.xlu0 %616
        %v618 = vsub.f32 %v613, %v617
        %v619 = vmul.f32 %v618, 1.442695
        %v620 = vpow.pop %v619
        %v621 = vsel %vm524, %v620, 0.0
        %622 = vadd.xlane.f32.xlu0 %v621
        %v623 = vpop.xlane.xlu0 %622
        %v624 = vrcp.pop %v623
        %v625 = vmul.f32 %v620, %v624
        %626 = vrot.lane.b32.xlu0 %v514, 56
        %v627 = vpop.permute.xlu0 %626
        %v630 = vsel %vm524, %v625, 0
        %632 = vmatpush.msra.mxu0 0.0
        %633 = vmatpush.msra.mxu0 0.0
        %634 = vmatpush.msra.mxu0 0.0
        %635 = vmatpush.msra.mxu0 0.0
        %636 = vmatpush.msra.mxu0 0.0
        %637 = vmatpush.msra.mxu0 0.0
        %638 = vmatpush.msra.mxu0 0.0
        %639 = vmatpush.msra.mxu0 0.0
        %640 = vmatpush.msra.mxu0 0.0
        %641 = vmatpush.msra.mxu0 0.0
        %642 = vmatpush.msra.mxu0 0.0
        %643 = vmatpush.msra.mxu0 0.0
        %644 = vmatpush.msra.mxu0 0.0
        %645 = vmatpush.msra.mxu0 0.0
        %646 = vmatpush.msra.mxu0 0.0
        %647 = vmatpush.msra.mxu0 %v627
        %648 = vmatmul.f32.gmra.mxu0 %v630
        %v649 = vpop.f32.mrf.mxu0
        %v650 = vadd.f32 0.0, %v649
        %651 = vdwg.mxu0
        %652 = vrot.lane.b32.xlu0 %v517, 112
        %v653 = vpop.permute.xlu0 %652
        %654 = vrot.lane.b32.xlu0 %v514, 80
        %v655 = vpop.permute.xlu0 %654
        %v656 = vsel %vm524, %v653, 0
        %v658 = vsel %vm524, %v655, 0
        %660 = vmatpush.xpose.msra.mxu0 0.0
        %661 = vmatpush.xpose.msra.mxu0 0.0
        %662 = vmatpush.xpose.msra.mxu0 0.0
        %663 = vmatpush.xpose.msra.mxu0 0.0
        %664 = vmatpush.xpose.msra.mxu0 0.0
        %665 = vmatpush.xpose.msra.mxu0 0.0
        %666 = vmatpush.xpose.msra.mxu0 0.0
        %667 = vmatpush.xpose.msra.mxu0 0.0
        %668 = vmatpush.xpose.msra.mxu0 0.0
        %669 = vmatpush.xpose.msra.mxu0 0.0
        %670 = vmatpush.xpose.msra.mxu0 0.0
        %671 = vmatpush.xpose.msra.mxu0 0.0
        %672 = vmatpush.xpose.msra.mxu0 0.0
        %673 = vmatpush.xpose.msra.mxu0 0.0
        %674 = vmatpush.xpose.msra.mxu0 0.0
        %675 = vmatpush.xpose.msra.mxu0 %v658
        %676 = vmatmul.f32.gmra.mxu0 %v656
        %v677 = vpop.f32.mrf.mxu0
        %v678 = vadd.f32 %v519, %v677
        %679 = vdwg.mxu0
        %v680 = vsel %vm524, %v678, -inf
        %681 = vmax.xlane.f32.xlu0 %v680
        %v682 = vpop.xlane.xlu0 %681
        %v683 = vsub.f32 %v678, %v682
        %v684 = vmul.f32 %v683, 1.442695
        %v685 = vpow.pop %v684
        %v686 = vsel %vm524, %v685, 0.0
        %687 = vadd.xlane.f32.xlu0 %v686
        %v688 = vpop.xlane.xlu0 %687
        %v689 = vrcp.pop %v688
        %v690 = vmul.f32 %v685, %v689
        %691 = vrot.lane.b32.xlu0 %v514, 48
        %v692 = vpop.permute.xlu0 %691
        %v695 = vsel %vm524, %v690, 0
        %697 = vmatpush.msra.mxu0 0.0
        %698 = vmatpush.msra.mxu0 0.0
        %699 = vmatpush.msra.mxu0 0.0
        %700 = vmatpush.msra.mxu0 0.0
        %701 = vmatpush.msra.mxu0 0.0
        %702 = vmatpush.msra.mxu0 0.0
        %703 = vmatpush.msra.mxu0 0.0
        %704 = vmatpush.msra.mxu0 0.0
        %705 = vmatpush.msra.mxu0 0.0
        %706 = vmatpush.msra.mxu0 0.0
        %707 = vmatpush.msra.mxu0 0.0
        %708 = vmatpush.msra.mxu0 0.0
        %709 = vmatpush.msra.mxu0 0.0
        %710 = vmatpush.msra.mxu0 0.0
        %711 = vmatpush.msra.mxu0 0.0
        %712 = vmatpush.msra.mxu0 %v692
        %713 = vmatmul.f32.gmra.mxu0 %v695
        %v714 = vpop.f32.mrf.mxu0
        %v715 = vadd.f32 0.0, %v714
        %716 = vdwg.mxu0
        %717 = vrot.lane.b32.xlu0 %v517, 104
        %v718 = vpop.permute.xlu0 %717
        %719 = vrot.lane.b32.xlu0 %v514, 72
        %v720 = vpop.permute.xlu0 %719
        %v721 = vsel %vm524, %v718, 0
        %v723 = vsel %vm524, %v720, 0
        %725 = vmatpush.xpose.msra.mxu0 0.0
        %726 = vmatpush.xpose.msra.mxu0 0.0
        %727 = vmatpush.xpose.msra.mxu0 0.0
        %728 = vmatpush.xpose.msra.mxu0 0.0
        %729 = vmatpush.xpose.msra.mxu0 0.0
        %730 = vmatpush.xpose.msra.mxu0 0.0
        %731 = vmatpush.xpose.msra.mxu0 0.0
        %732 = vmatpush.xpose.msra.mxu0 0.0
        %733 = vmatpush.xpose.msra.mxu0 0.0
        %734 = vmatpush.xpose.msra.mxu0 0.0
        %735 = vmatpush.xpose.msra.mxu0 0.0
        %736 = vmatpush.xpose.msra.mxu0 0.0
        %737 = vmatpush.xpose.msra.mxu0 0.0
        %738 = vmatpush.xpose.msra.mxu0 0.0
        %739 = vmatpush.xpose.msra.mxu0 0.0
        %740 = vmatpush.xpose.msra.mxu0 %v723
        %741 = vmatmul.f32.gmra.mxu0 %v721
        %v742 = vpop.f32.mrf.mxu0
        %v743 = vadd.f32 %v519, %v742
        %744 = vdwg.mxu0
        %v745 = vsel %vm524, %v743, -inf
        %746 = vmax.xlane.f32.xlu0 %v745
        %v747 = vpop.xlane.xlu0 %746
        %v748 = vsub.f32 %v743, %v747
        %v749 = vmul.f32 %v748, 1.442695
        %v750 = vpow.pop %v749
        %v751 = vsel %vm524, %v750, 0.0
        %752 = vadd.xlane.f32.xlu0 %v751
        %v753 = vpop.xlane.xlu0 %752
        %v754 = vrcp.pop %v753
        %v755 = vmul.f32 %v750, %v754
        %756 = vrot.lane.b32.xlu0 %v514, 40
        %v757 = vpop.permute.xlu0 %756
        %v760 = vsel %vm524, %v755, 0
        %762 = vmatpush.msra.mxu0 0.0
        %763 = vmatpush.msra.mxu0 0.0
        %764 = vmatpush.msra.mxu0 0.0
        %765 = vmatpush.msra.mxu0 0.0
        %766 = vmatpush.msra.mxu0 0.0
        %767 = vmatpush.msra.mxu0 0.0
        %768 = vmatpush.msra.mxu0 0.0
        %769 = vmatpush.msra.mxu0 0.0
        %770 = vmatpush.msra.mxu0 0.0
        %771 = vmatpush.msra.mxu0 0.0
        %772 = vmatpush.msra.mxu0 0.0
        %773 = vmatpush.msra.mxu0 0.0
        %774 = vmatpush.msra.mxu0 0.0
        %775 = vmatpush.msra.mxu0 0.0
        %776 = vmatpush.msra.mxu0 0.0
        %777 = vmatpush.msra.mxu0 %v757
        %778 = vmatmul.f32.gmra.mxu0 %v760
        %v779 = vpop.f32.mrf.mxu0
        %v780 = vadd.f32 0.0, %v779
        %781 = vdwg.mxu0
        %783 = vrot.lane.b32.xlu0 %v650, 8
        %v784 = vpop.permute.xlu0 %783
        %787 = vrot.lane.b32.xlu0 %v715, 16
        %v788 = vpop.permute.xlu0 %787
        %791 = vrot.lane.b32.xlu0 %v780, 24
        %v792 = vpop.permute.xlu0 %791
        %v794 = vsel %vm524, %v585, %v784
        %vm795 = vcmask 130048
        %v796 = vsel %vm795, %v794, %v788
        %vm797 = vcmask 195584
        %v798 = vsel %vm797, %v796, %v792
        %v799 = vld [vmem:[#allocation10] sm:$0xff]
        %v800 = vld [vmem:[#allocation10 + $0x8] sm:$0xff]
        %v801 = vld [vmem:[#allocation10 + $0x10] sm:$0xff]
        %v802 = vld [vmem:[#allocation10 + $0x18] sm:$0xff]
        %v803 = vld [vmem:[#allocation12] sm:$0x1]
        %v805 = vperm.slane %v803, 0
        %v808 = vsel %vm431, %v798, 0
        %810 = vmatpush.msra.mxu0 0.0
        %811 = vmatpush.msra.mxu0 0.0
        %812 = vmatpush.msra.mxu0 0.0
        %813 = vmatpush.msra.mxu0 0.0
        %814 = vmatpush.msra.mxu0 0.0
        %815 = vmatpush.msra.mxu0 0.0
        %816 = vmatpush.msra.mxu0 0.0
        %817 = vmatpush.msra.mxu0 0.0
        %818 = vmatpush.msra.mxu0 0.0
        %819 = vmatpush.msra.mxu0 0.0
        %820 = vmatpush.msra.mxu0 0.0
        %821 = vmatpush.msra.mxu0 0.0
        %822 = vmatpush.msra.mxu0 %v802
        %823 = vmatpush.msra.mxu0 %v801
        %824 = vmatpush.msra.mxu0 %v800
        %825 = vmatpush.msra.mxu0 %v799
        %826 = vmatmul.f32.gmra.mxu0 %v808
        %v827 = vpop.f32.mrf.mxu0
        %v828 = vadd.f32 %v805, %v827
        %829 = vdwg.mxu0
        %v830 = vadd.f32 %v428, %v828
        %831 = vst.msk [vmem:[%s427] sm:$0xff] %vm431, %v830
        %p832 = scmp.lt.s32.totalorder %s25, 1
        %s833 = scalar_select %p832, %s25, 1
        %s834 = smul.addr %s833, 8
        %s835 = scalar_lea.vmem %s8, %s834
        // Predicated region
        $region81: #{encoder_forward.5} parent=51 // pred_check
          %p836 = pneg %p221
        $region82: #{encoder_forward.5} parent=51 // pred_check_branch
          %838 = sbr.rel (%p836) target = $region84
        $region83: #{encoder_forward.5} parent=51 // pred_region
          _
        $region84: #{encoder_forward.5} parent=51 // pred_fallthru
          _
      $region52: #{encoder_forward.5} parent=5 // pred_fallthru
        _
      %p839 = scmp.le.s32.totalorder 2, %s20
      // Predicated region
      $region85: #{encoder_forward.5} parent=5 // pred_check
        %p840 = pneg %p839
      $region86: #{encoder_forward.5} parent=5 // pred_check_branch
        %842 = sbr.rel (%p840) target = $region88
      $region87: #{encoder_forward.5} parent=5 // pred_region
        %s843 = ssub.s32 %s20, 2
        // Predicated region
        $region89: #{encoder_forward.5} parent=87 // pred_check
          %p844 = pneg %p227
        $region90: #{encoder_forward.5} parent=87 // pred_check_branch
          %846 = sbr.rel (%p844) target = $region92
        $region91: #{encoder_forward.5} parent=87 // pred_region
          %p847 = scmp.lt.s32.totalorder %s26, 1
          %s848 = scalar_select %p847, %s26, 1
          %s849 = smul.addr %s848, 8
          %s850 = scalar_lea.vmem %s8, %s849
        $region92: #{encoder_forward.5} parent=87 // pred_fallthru
          _
      $region88: #{encoder_forward.5} parent=5 // pred_fallthru
        _
    $region6: #{encoder_forward.5} parent=1 // loop_footer
      %s24 = sadd.s32 1, %s20
    $region7: #{encoder_forward.5} parent=1 // loop_footer_branch
      %19 = sbr.rel target = $region3
    $region8: #{encoder_forward.5} parent=1 // loop_exit
      _
    %851 = vsyncpa [#allocation3], 1
    %s852 = scalar_lea.sflag [#allocation3], 1
    %853 = vsyncpa %s852, 1
    %854 = vsyncpa [#allocation5], 1
    %855 = vsyncpa [#allocation8], 1
    %856 = vsyncpa [#allocation11], 1

// kernel: encoder_forward.7
$region0: #{encoder_forward.7}
  #allocation0 [shape = 'u32[]', space=smem, size = 0x4, offset = 0x4, fixed_abs, tag = 'smem constant byte address 0x4 - core index']
  #allocation1 [shape = 'u32[72,128]{1,0:T(1,128)}', space=vmem, size = 0x9000, scoped, tag = 'internal scratch']
  %s0 = inlined_call_operand.vmem [shape: f32[2,8,32], index: 0, kind: input, shape index: {}]
  %s1 = inlined_call_operand.vmem [shape: f32[2,1,8], index: 1, kind: input, shape index: {}]
  %s2 = inlined_call_operand.vmem [shape: f32[1,32], index: 2, kind: input, shape index: {}]
  %s3 = inlined_call_operand.vmem [shape: f32[1,32], index: 3, kind: input, shape index: {}]
  %s4 = inlined_call_operand.vmem [shape: f32[32,96], index: 4, kind: input, shape index: {}]
  %s5 = inlined_call_operand.vmem [shape: f32[1,96], index: 5, kind: input, shape index: {}]
  %s6 = inlined_call_operand.hbm [shape: f32[32,32], index: 6, kind: input, shape index: {}]
  %s7 = inlined_call_operand.vmem [shape: f32[1,32], index: 7, kind: input, shape index: {}]
  %s8 = inlined_call_operand.vmem [shape: f32[2,8,32], index: 8, kind: output, shape index: {}]
  %s9 = sld [smem:[#allocation0]]
  $region69: #{encoder_forward.7} parent=0
    _
  %s11 = ssub.s32 1, %s9
  %s12 = scalar_select 0, %s11, %s9
  $region1: #{encoder_forward.7} parent=0
    #allocation2 [shape = 'u8[16384]{0}', space=vmem, size = 0x4000, scoped, tag = 'input window, operand 6, single buffered']
    #allocation3 [shape = 's32[2]{0}', space=sflag, size = 0x8, scoped, tag = 'scoped memory for encoder_forward.7']
    %13 = vsyncpa [#allocation3], 0
    loop: start=0, step=1, limit=4
    $region2: #{encoder_forward.7} parent=1 // loop_pre_header
      _
    $region3: #{encoder_forward.7} parent=1 // loop_header
      %s15 = sphi 0, %s19
      %p16 = scmp.ge.s32.totalorder %s15, 4
      %s25 = sphi 0, %s27
      %s28 = sphi 0, %s25
      %s29 = sphi 0, %s28
      %s45 = sphi 0, %s29
      %s51 = sphi 0, %s53
      %s54 = sphi 0, %s51
      %s55 = sphi 0, %s54
      %s71 = sphi 0, %s55
      %s75 = sphi 0, %s75
      %s77 = sphi 0, %s75
      %s78 = sphi 0, %s77
      %s92 = sphi 0, %s78
      %s96 = sphi 0, %s96
      %s98 = sphi 0, %s96
      %s99 = sphi 0, %s98
      %s113 = sphi 0, %s99
      %s117 = sphi 0, %s117
      %s119 = sphi 0, %s117
      %s120 = sphi 0, %s119
      %s134 = sphi 0, %s120
      %s138 = sphi 0, %s138
      %s140 = sphi 0, %s138
      %s141 = sphi 0, %s140
      %s155 = sphi 0, %s141
      %s159 = sphi 0, %s159
      %s161 = sphi 0, %s159
      %s162 = sphi 0, %s161
      %s176 = sphi 0, %s162
      %s180 = sphi 0, %s180
      %s182 = sphi 0, %s180
      %s183 = sphi 0, %s182
      %s197 = sphi 0, %s183
      %s203 = sphi 0, %s205
      %s206 = sphi 0, %s203
      %s207 = sphi 0, %s206
      %s223 = sphi 0, %s207
    $region4: #{encoder_forward.7} parent=1 // loop_header_branch
      %18 = sbr.rel (%p16) target = $region8
    $region5: #{encoder_forward.7} parent=1 // loop_body
      %s20 = ssub.s32 %s15, 1
      %s21 = ssub.s32 %s15, 2
      %s22 = sadd.s32 %s15, 1
      %s23 = ssub.s32 %s15, %s22
      %p24 = scmp.eq.s32.totalorder %s23, 0
      %s26 = sadd.s32 %s25, 1
      %s27 = scalar_select %p24, %s25, %s26
      %p30 = pneg %p24
      %p31 = scmp.eq.s32.totalorder %s15, 1
      %p32 = por %p30, %p31
      %p33 = scmp.ne.s32.totalorder %s25, %s28
      %p34 = scmp.eq.s32.totalorder %s15, 0
      %p35 = por %p33, %p34
      %p36 = scmp.ne.s32.totalorder %s25, %s28
      %p37 = scmp.eq.s32.totalorder %s20, 1
      %p38 = por %p36, %p37
      %p39 = scmp.ne.s32.totalorder %s28, %s29
      %p40 = scmp.eq.s32.totalorder %s20, 0
      %p41 = por %p39, %p40
      %p42 = scmp.ne.s32.totalorder %s28, %s29
      %p43 = scmp.eq.s32.totalorder %s21, 1
      %p44 = por %p42, %p43
      %p46 = scmp.ne.s32.totalorder %s29, %s45
      %p47 = scmp.eq.s32.totalorder %s21, 0
      %p48 = por %p46, %p47
      %s49 = ssub.s32 %s15, %s22
      %p50 = scmp.eq.s32.totalorder %s49, 0
      %s52 = sadd.s32 %s51, 1
      %s53 = scalar_select %p50, %s51, %s52
      %p56 = pneg %p50
      %p57 = scmp.eq.s32.totalorder %s15, 1
      %p58 = por %p56, %p57
      %p59 = scmp.ne.s32.totalorder %s51, %s54
      %p60 = scmp.eq.s32.totalorder %s15, 0
      %p61 = por %p59, %p60
      %p62 = scmp.ne.s32.totalorder %s51, %s54
      %p63 = scmp.eq.s32.totalorder %s20, 1
      %p64 = por %p62, %p63
      %p65 = scmp.ne.s32.totalorder %s54, %s55
      %p66 = scmp.eq.s32.totalorder %s20, 0
      %p67 = por %p65, %p66
      %p68 = scmp.ne.s32.totalorder %s54, %s55
      %p69 = scmp.eq.s32.totalorder %s21, 1
      %p70 = por %p68, %p69
      %p72 = scmp.ne.s32.totalorder %s55, %s71
      %p73 = scmp.eq.s32.totalorder %s21, 0
      %p74 = por %p72, %p73
      %s76 = sadd.s32 %s75, 1
      %p79 = scmp.eq.s32.totalorder %s15, 1
      %p80 = scmp.ne.s32.totalorder %s75, %s77
      %p81 = scmp.eq.s32.totalorder %s15, 0
      %p82 = por %p80, %p81
      %p83 = scmp.ne.s32.totalorder %s75, %s77
      %p84 = scmp.eq.s32.totalorder %s20, 1
      %p85 = por %p83, %p84
      %p86 = scmp.ne.s32.totalorder %s77, %s78
      %p87 = scmp.eq.s32.totalorder %s20, 0
      %p88 = por %p86, %p87
      %p89 = scmp.ne.s32.totalorder %s77, %s78
      %p90 = scmp.eq.s32.totalorder %s21, 1
      %p91 = por %p89, %p90
      %p93 = scmp.ne.s32.totalorder %s78, %s92
      %p94 = scmp.eq.s32.totalorder %s21, 0
      %p95 = por %p93, %p94
      %s97 = sadd.s32 %s96, 1
      %p100 = scmp.eq.s32.totalorder %s15, 1
      %p101 = scmp.ne.s32.totalorder %s96, %s98
      %p102 = scmp.eq.s32.totalorder %s15, 0
      %p103 = por %p101, %p102
      %p104 = scmp.ne.s32.totalorder %s96, %s98
      %p105 = scmp.eq.s32.totalorder %s20, 1
      %p106 = por %p104, %p105
      %p107 = scmp.ne.s32.totalorder %s98, %s99
      %p108 = scmp.eq.s32.totalorder %s20, 0
      %p109 = por %p107, %p108
      %p110 = scmp.ne.s32.totalorder %s98, %s99
      %p111 = scmp.eq.s32.totalorder %s21, 1
      %p112 = por %p110, %p111
      %p114 = scmp.ne.s32.totalorder %s99, %s113
      %p115 = scmp.eq.s32.totalorder %s21, 0
      %p116 = por %p114, %p115
      %s118 = sadd.s32 %s117, 1
      %p121 = scmp.eq.s32.totalorder %s15, 1
      %p122 = scmp.ne.s32.totalorder %s117, %s119
      %p123 = scmp.eq.s32.totalorder %s15, 0
      %p124 = por %p122, %p123
      %p125 = scmp.ne.s32.totalorder %s117, %s119
      %p126 = scmp.eq.s32.totalorder %s20, 1
      %p127 = por %p125, %p126
      %p128 = scmp.ne.s32.totalorder %s119, %s120
      %p129 = scmp.eq.s32.totalorder %s20, 0
      %p130 = por %p128, %p129
      %p131 = scmp.ne.s32.totalorder %s119, %s120
      %p132 = scmp.eq.s32.totalorder %s21, 1
      %p133 = por %p131, %p132
      %p135 = scmp.ne.s32.totalorder %s120, %s134
      %p136 = scmp.eq.s32.totalorder %s21, 0
      %p137 = por %p135, %p136
      %s139 = sadd.s32 %s138, 1
      %p142 = scmp.eq.s32.totalorder %s15, 1
      %p143 = scmp.ne.s32.totalorder %s138, %s140
      %p144 = scmp.eq.s32.totalorder %s15, 0
      %p145 = por %p143, %p144
      %p146 = scmp.ne.s32.totalorder %s138, %s140
      %p147 = scmp.eq.s32.totalorder %s20, 1
      %p148 = por %p146, %p147
      %p149 = scmp.ne.s32.totalorder %s140, %s141
      %p150 = scmp.eq.s32.totalorder %s20, 0
      %p151 = por %p149, %p150
      %p152 = scmp.ne.s32.totalorder %s140, %s141
      %p153 = scmp.eq.s32.totalorder %s21, 1
      %p154 = por %p152, %p153
      %p156 = scmp.ne.s32.totalorder %s141, %s155
      %p157 = scmp.eq.s32.totalorder %s21, 0
      %p158 = por %p156, %p157
      %s160 = sadd.s32 %s159, 1
      %p163 = scmp.eq.s32.totalorder %s15, 1
      %p164 = scmp.ne.s32.totalorder %s159, %s161
      %p165 = scmp.eq.s32.totalorder %s15, 0
      %p166 = por %p164, %p165
      %p167 = scmp.ne.s32.totalorder %s159, %s161
      %p168 = scmp.eq.s32.totalorder %s20, 1
      %p169 = por %p167, %p168
      %p170 = scmp.ne.s32.totalorder %s161, %s162
      %p171 = scmp.eq.s32.totalorder %s20, 0
      %p172 = por %p170, %p171
      %p173 = scmp.ne.s32.totalorder %s161, %s162
      %p174 = scmp.eq.s32.totalorder %s21, 1
      %p175 = por %p173, %p174
      %p177 = scmp.ne.s32.totalorder %s162, %s176
      %p178 = scmp.eq.s32.totalorder %s21, 0
      %p179 = por %p177, %p178
      %s181 = sadd.s32 %s180, 1
      %p184 = scmp.eq.s32.totalorder %s15, 1
      %p185 = scmp.ne.s32.totalorder %s180, %s182
      %p186 = scmp.eq.s32.totalorder %s15, 0
      %p187 = por %p185, %p186
      %p188 = scmp.ne.s32.totalorder %s180, %s182
      %p189 = scmp.eq.s32.totalorder %s20, 1
      %p190 = por %p188, %p189
      %p191 = scmp.ne.s32.totalorder %s182, %s183
      %p192 = scmp.eq.s32.totalorder %s20, 0
      %p193 = por %p191, %p192
      %p194 = scmp.ne.s32.totalorder %s182, %s183
      %p195 = scmp.eq.s32.totalorder %s21, 1
      %p196 = por %p194, %p195
      %p198 = scmp.ne.s32.totalorder %s183, %s197
      %p199 = scmp.eq.s32.totalorder %s21, 0
      %p200 = por %p198, %p199
      %s201 = ssub.s32 %s15, %s22
      %p202 = scmp.eq.s32.totalorder %s201, 0
      %s204 = sadd.s32 %s203, 1
      %s205 = scalar_select %p202, %s203, %s204
      %p208 = pneg %p202
      %p209 = scmp.eq.s32.totalorder %s15, 1
      %p210 = por %p208, %p209
      %p211 = scmp.ne.s32.totalorder %s203, %s206
      %p212 = scmp.eq.s32.totalorder %s15, 0
      %p213 = por %p211, %p212
      %p214 = scmp.ne.s32.totalorder %s203, %s206
      %p215 = scmp.eq.s32.totalorder %s20, 1
      %p216 = por %p214, %p215
      %p217 = scmp.ne.s32.totalorder %s206, %s207
      %p218 = scmp.eq.s32.totalorder %s20, 0
      %p219 = por %p217, %p218
      %p220 = scmp.ne.s32.totalorder %s206, %s207
      %p221 = scmp.eq.s32.totalorder %s21, 1
      %p222 = por %p220, %p221
      %p224 = scmp.ne.s32.totalorder %s207, %s223
      %p225 = scmp.eq.s32.totalorder %s21, 0
      %p226 = por %p224, %p225
      %p227 = scmp.le.s32.totalorder 1, %s15
      %p228 = scmp.lt.s32.totalorder %s15, 3
      %p229 = pnand %p227, %p228
      %p230 = pneg %p229
      // Predicated region
      $region9: #{encoder_forward.7} parent=5 // pred_check
        _
      $region10: #{encoder_forward.7} parent=5 // pred_check_branch
        %232 = sbr.rel (%p229) target = $region12
      $region11: #{encoder_forward.7} parent=5 // pred_region
        %s233 = ssub.s32 %s15, 1
        // Predicated region
        $region13: #{encoder_forward.7} parent=11 // pred_check
          %p234 = pneg %p88
        $region14: #{encoder_forward.7} parent=11 // pred_check_branch
          %236 = sbr.rel (%p234) target = $region16
        $region15: #{encoder_forward.7} parent=11 // pred_region
          _
        $region16: #{encoder_forward.7} parent=11 // pred_fallthru
          _
        // Predicated region
        $region17: #{encoder_forward.7} parent=11 // pred_check
          %p237 = pneg %p109
        $region18: #{encoder_forward.7} parent=11 // pred_check_branch
          %239 = sbr.rel (%p237) target = $region20
        $region19: #{encoder_forward.7} parent=11 // pred_region
          _
        $region20: #{encoder_forward.7} parent=11 // pred_fallthru
          _
        // Predicated region
        $region21: #{encoder_forward.7} parent=11 // pred_check
          %p240 = pneg %p130
        $region22: #{encoder_forward.7} parent=11 // pred_check_branch
          %242 = sbr.rel (%p240) target = $region24
        $region23: #{encoder_forward.7} parent=11 // pred_region
          _
        $region24: #{encoder_forward.7} parent=11 // pred_fallthru
          _
        // Predicated region
        $region25: #{encoder_forward.7} parent=11 // pred_check
          %p243 = pneg %p151
        $region26: #{encoder_forward.7} parent=11 // pred_check_branch
          %245 = sbr.rel (%p243) target = $region28
        $region27: #{encoder_forward.7} parent=11 // pred_region
          _
        $region28: #{encoder_forward.7} parent=11 // pred_fallthru
          _
        // Predicated region
        $region29: #{encoder_forward.7} parent=11 // pred_check
          %p246 = pneg %p172
        $region30: #{encoder_forward.7} parent=11 // pred_check_branch
          %248 = sbr.rel (%p246) target = $region32
        $region31: #{encoder_forward.7} parent=11 // pred_region
          %250 = vsyncadd [#allocation3], 0
          %s251 = sshll.u32 %s6, 4
          %s252 = int_to_ptr.hbm [resolvable:$true] %s251
          %s253 = sshll.u32 [#allocation2], 4
          %s254 = int_to_ptr.vmem [resolvable:$true] %s253
          %259 = dma.hbm_to_vmem [thread:$0]  %s252, 512, %s254, [#allocation3], 128, 128, 8
        $region32: #{encoder_forward.7} parent=11 // pred_fallthru
          _
        // Predicated region
        $region33: #{encoder_forward.7} parent=11 // pred_check
          %p260 = pneg %p193
        $region34: #{encoder_forward.7} parent=11 // pred_check_branch
          %262 = sbr.rel (%p260) target = $region36
        $region35: #{encoder_forward.7} parent=11 // pred_region
          _
        $region36: #{encoder_forward.7} parent=11 // pred_fallthru
          _
      $region12: #{encoder_forward.7} parent=5 // pred_fallthru
        _
      %p263 = scmp.lt.s32.totalorder %s15, 2
      // Predicated region
      $region37: #{encoder_forward.7} parent=5 // pred_check
        %p264 = pneg %p263
      $region38: #{encoder_forward.7} parent=5 // pred_check_branch
        %266 = sbr.rel (%p264) target = $region40
      $region39: #{encoder_forward.7} parent=5 // pred_region
        // Predicated region
        $region41: #{encoder_forward.7} parent=39 // pred_check
          %p267 = pneg %p35
        $region42: #{encoder_forward.7} parent=39 // pred_check_branch
          %269 = sbr.rel (%p267) target = $region44
        $region43: #{encoder_forward.7} parent=39 // pred_region
          %p270 = scmp.lt.s32.totalorder %s15, 1
          %s271 = scalar_select %p270, %s15, 1
          %s272 = smul.addr %s271, 8
          %s273 = scalar_lea.vmem %s0, %s272
        $region44: #{encoder_forward.7} parent=39 // pred_fallthru
          _
        // Predicated region
        $region45: #{encoder_forward.7} parent=39 // pred_check
          %p274 = pneg %p61
        $region46: #{encoder_forward.7} parent=39 // pred_check_branch
          %276 = sbr.rel (%p274) target = $region48
        $region47: #{encoder_forward.7} parent=39 // pred_region
          %p277 = scmp.lt.s32.totalorder %s15, 1
          %s278 = scalar_select %p277, %s15, 1
          %s279 = scalar_lea.vmem %s1, %s278
        $region48: #{encoder_forward.7} parent=39 // pred_fallthru
          _
      $region40: #{encoder_forward.7} parent=5 // pred_fallthru
        _
      %p280 = scmp.le.s32.totalorder 1, %s15
      %p281 = scmp.lt.s32.totalorder %s15, 3
      %p282 = pnand %p280, %p281
      %p283 = pneg %p282
      // Predicated region
      $region49: #{encoder_forward.7} parent=5 // pred_check
        _
      $region50: #{encoder_forward.7} parent=5 // pred_check_branch
        %285 = sbr.rel (%p282) target = $region52
      $region51: #{encoder_forward.7} parent=5 // pred_region
        %s286 = ssub.s32 %s15, 1
        // Predicated region
        $region53: #{encoder_forward.7} parent=51 // pred_check
          %p287 = pneg %p172
        $region54: #{encoder_forward.7} parent=51 // pred_check_branch
          %289 = sbr.rel (%p287) target = $region56
        $region55: #{encoder_forward.7} parent=51 // pred_region
          %291 = dma.done [#allocation3], 512
        $region56: #{encoder_forward.7} parent=51 // pred_fallthru
          _
        %p292 = scmp.lt.s32.totalorder %s20, 1
        %s293 = scalar_select %p292, %s20, 1
        %s294 = smul.addr %s293, 8
        %s295 = scalar_lea.vmem %s0, %s294
        %p296 = pneg %p41
        %p297 = pneg %p38
        %p298 = scmp.lt.s32.totalorder %s20, 1
        %s299 = scalar_select %p298, %s20, 1
        %s300 = scalar_lea.vmem %s1, %s299
        %p301 = pneg %p67
        %p302 = pneg %p64
        %p303 = pneg %p88
        %p304 = pneg %p85
        %p305 = pneg %p109
        %p306 = pneg %p106
        %p307 = pneg %p130
        %p308 = pneg %p127
        %p309 = pneg %p151
        %p310 = pneg %p148
        %p311 = pneg %p172
        %p312 = pneg %p169
        %p313 = pneg %p193
        %p314 = pneg %p190
        %p315 = pneg %p219
        %p316 = pneg %p216
        %p317 = scmp.lt.s32.totalorder %s20, 1
        %s318 = scalar_select %p317, %s20, 1
        %s319 = smul.addr %s318, 8
        %s320 = scalar_lea.vmem %s8, %s319
        %p321 = scmp.lt.s32.totalorder %s20, 1
        %s322 = scalar_select %p321, %s20, 1
        %s323 = smul.addr %s322, 8
        %s324 = scalar_lea.vmem %s0, %s323
        %p325 = scmp.lt.s32.totalorder %s20, 1
        %s326 = scalar_select %p325, %s20, 1
        %s327 = scalar_lea.vmem %s1, %s326
        %p328 = scmp.lt.s32.totalorder %s20, 1
        %s329 = scalar_select %p328, %s20, 1
        %s330 = smul.addr %s329, 8
        %s331 = scalar_lea.vmem %s8, %s330
        %v332 = vld [vmem:[%s324] sm:$0xff]
        %v333 = vld [vmem:[%s2] sm:$0x1]
        %v334 = vld [vmem:[%s3] sm:$0x1]
        %vm335 = vcmask 261120
        %v336 = vsel %vm335, %v332, 0.0
        %337 = vadd.xlane.f32.xlu0 %v336
        %v338 = vpop.xlane.xlu0 %337
        %v339 = vrcp.pop 32.0
        %v340 = vmul.f32 32.0, %v339
        %v341 = vsub.f32 1.0, %v340
        %v342 = vmul.f32 %v339, %v341
        %v343 = vadd.f32 %v339, %v342
        %vm344 = vweird.f32 %v339
        %v345 = vsel %vm344, %v339, %v343
        %v346 = vmul.f32 %v338, %v345
        %v347 = vsub.f32 %v332, %v346
        %v348 = vmul.f32 %v347, %v347
        %v349 = vsel %vm335, %v348, 0.0
        %350 = vadd.xlane.f32.xlu0 %v349
        %v351 = vpop.xlane.xlu0 %350
        %v352 = vmul.f32 %v351, 0.032258064
        %v353 = vrsqrt.pop %v352
        %v354 = vmul.f32 %v353, %v352
        %v355 = vmul.f32 %v354, %v353
        %v356 = vmul.f32 0.5, %v355
        %v357 = vsub.f32 1.5, %v356
        %v358 = vmul.f32 %v353, %v357
        %v359 = vmul.f32 %v352, %v358
        %vm360 = vcmp.eq.f32.partialorder %v352, inf
        %v361 = vsel %vm360, %v352, %v359
        %vm362 = vcmp.eq.f32.partialorder %v352, 0.0
        %v363 = vand.u32 %v352, 2147483648
        %v364 = vsel %vm362, %v363, %v361
        %v366 = vperm.slane %v333, 0
        %v368 = vmul.f32 %v366, %v347
        %v369 = vadd.f32 %v364, 1e-06
        %v370 = vrcp.pop %v369
        %v371 = vmul.f32 %v369, %v370
        %v372 = vsub.f32 1.0, %v371
        %v373 = vmul.f32 %v370, %v372
        %v374 = vadd.f32 %v370, %v373
        %vm375 = vweird.f32 %v369
        %vm376 = vweird.f32 %v370
        %vm377 = vmor %vm375, %vm376
        %v378 = vsel %vm377, %v370, %v374
        %v379 = vand.u32 2147483647, %v369
        %vm380 = vcmp.eq.f32.partialorder %v379, 8.507059e+37
        %v381 = vand.u32 %v369, 2147483648
        %v382 = vor.u32 1.1754944e-38, %v381
        %v383 = vsel %vm380, %v382, %v378
        %v384 = vmul.f32 %v368, %v383
        %v386 = vperm.slane %v334, 0
        %v388 = vadd.f32 %v384, %v386
        %v389 = vld [vmem:[%s4] sm:$0xff]
        %v390 = vld [vmem:[%s4 + $0x8] sm:$0xff]
        %v391 = vld [vmem:[%s4 + $0x10] sm:$0xff]
        %v392 = vld [vmem:[%s4 + $0x18] sm:$0xff]
        %v393 = vld [vmem:[%s5] sm:$0x1]
        %v395 = vperm.slane %v393, 0
        %v398 = vsel %vm335, %v388, 0
        %400 = vmatpush.msra.mxu0 0.0
        %401 = vmatpush.msra.mxu0 0.0
        %402 = vmatpush.msra.mxu0 0.0
        %403 = vmatpush.msra.mxu0 0.0
        %404 = vmatpush.msra.mxu0 0.0
        %405 = vmatpush.msra.mxu0 0.0
        %406 = vmatpush.msra.mxu0 0.0
        %407 = vmatpush.msra.mxu0 0.0
        %408 = vmatpush.msra.mxu0 0.0
        %409 = vmatpush.msra.mxu0 0.0
        %410 = vmatpush.msra.mxu0 0.0
        %411 = vmatpush.msra.mxu0 0.0
        %412 = vmatpush.msra.mxu0 %v392
        %413 = vmatpush.msra.mxu0 %v391
        %414 = vmatpush.msra.mxu0 %v390
        %415 = vmatpush.msra.mxu0 %v389
        %416 = vmatmul.f32.gmra.mxu0 %v398
        %v417 = vpop.f32.mrf.mxu0
        %v418 = vadd.f32 %v395, %v417
        %419 = vdwg.mxu0
        %v420 = vld [vmem:[%s327] sm:$0x1]
        %v421 = vmul.f32 %v418, 0.35355338
        %v423 = vperm.slane %v420, 0
        %426 = vrot.lane.b32.xlu0 %v418, 96
        %v427 = vpop.permute.xlu0 %426
        %vm428 = vcmask 64512
        %v430 = vsel %vm428, %v421, 0
        %v432 = vsel %vm428, %v427, 0
        %434 = vmatpush.xpose.msra.mxu0 0.0
        %435 = vmatpush.xpose.msra.mxu0 0.0
        %436 = vmatpush.xpose.msra.mxu0 0.0
        %437 = vmatpush.xpose.msra.mxu0 0.0
        %438 = vmatpush.xpose.msra.mxu0 0.0
        %439 = vmatpush.xpose.msra.mxu0 0.0
        %440 = vmatpush.xpose.msra.mxu0 0.0
        %441 = vmatpush.xpose.msra.mxu0 0.0
        %442 = vmatpush.xpose.msra.mxu0 0.0
        %443 = vmatpush.xpose.msra.mxu0 0.0
        %444 = vmatpush.xpose.msra.mxu0 0.0
        %445 = vmatpush.xpose.msra.mxu0 0.0
        %446 = vmatpush.xpose.msra.mxu0 0.0
        %447 = vmatpush.xpose.msra.mxu0 0.0
        %448 = vmatpush.xpose.msra.mxu0 0.0
        %449 = vmatpush.xpose.msra.mxu0 %v432
        %450 = vmatmul.f32.gmra.mxu0 %v430
        %v451 = vpop.f32.mrf.mxu0
        %v452 = vadd.f32 %v423, %v451
        %453 = vdwg.mxu0
        %v454 = vsel %vm428, %v452, -inf
        %455 = vmax.xlane.f32.xlu0 %v454
        %v456 = vpop.xlane.xlu0 %455
        %v457 = vsub.f32 %v452, %v456
        %v458 = vmul.f32 %v457, 1.442695
        %v459 = vpow.pop %v458
        %v460 = vsel %vm428, %v459, 0.0
        %461 = vadd.xlane.f32.xlu0 %v460
        %v462 = vpop.xlane.xlu0 %461
        %v463 = vrcp.pop %v462
        %v464 = vmul.f32 %v459, %v463
        %465 = vrot.lane.b32.xlu0 %v418, 64
        %v466 = vpop.permute.xlu0 %465
        %v469 = vsel %vm428, %v464, 0
        %471 = vmatpush.msra.mxu0 0.0
        %472 = vmatpush.msra.mxu0 0.0
        %473 = vmatpush.msra.mxu0 0.0
        %474 = vmatpush.msra.mxu0 0.0
        %475 = vmatpush.msra.mxu0 0.0
        %476 = vmatpush.msra.mxu0 0.0
        %477 = vmatpush.msra.mxu0 0.0
        %478 = vmatpush.msra.mxu0 0.0
        %479 = vmatpush.msra.mxu0 0.0
        %480 = vmatpush.msra.mxu0 0.0
        %481 = vmatpush.msra.mxu0 0.0
        %482 = vmatpush.msra.mxu0 0.0
        %483 = vmatpush.msra.mxu0 0.0
        %484 = vmatpush.msra.mxu0 0.0
        %485 = vmatpush.msra.mxu0 0.0
        %486 = vmatpush.msra.mxu0 %v466
        %487 = vmatmul.f32.gmra.mxu0 %v469
        %v488 = vpop.f32.mrf.mxu0
        %v489 = vadd.f32 0.0, %v488
        %490 = vdwg.mxu0
        %491 = vrot.lane.b32.xlu0 %v421, 120
        %v492 = vpop.permute.xlu0 %491
        %493 = vrot.lane.b32.xlu0 %v418, 88
        %v494 = vpop.permute.xlu0 %493
        %v495 = vsel %vm428, %v492, 0
        %v497 = vsel %vm428, %v494, 0
        %499 = vmatpush.xpose.msra.mxu0 0.0
        %500 = vmatpush.xpose.msra.mxu0 0.0
        %501 = vmatpush.xpose.msra.mxu0 0.0
        %502 = vmatpush.xpose.msra.mxu0 0.0
        %503 = vmatpush.xpose.msra.mxu0 0.0
        %504 = vmatpush.xpose.msra.mxu0 0.0
        %505 = vmatpush.xpose.msra.mxu0 0.0
        %506 = vmatpush.xpose.msra.mxu0 0.0
        %507 = vmatpush.xpose.msra.mxu0 0.0
        %508 = vmatpush.xpose.msra.mxu0 0.0
        %509 = vmatpush.xpose.msra.mxu0 0.0
        %510 = vmatpush.xpose.msra.mxu0 0.0
        %511 = vmatpush.xpose.msra.mxu0 0.0
        %512 = vmatpush.xpose.msra.mxu0 0.0
        %513 = vmatpush.xpose.msra.mxu0 0.0
        %514 = vmatpush.xpose.msra.mxu0 %v497
        %515 = vmatmul.f32.gmra.mxu0 %v495
        %v516 = vpop.f32.mrf.mxu0
        %v517 = vadd.f32 %v423, %v516
        %518 = vdwg.mxu0
        %v519 = vsel %vm428, %v517, -inf
        %520 = vmax.xlane.f32.xlu0 %v519
        %v521 = vpop.xlane.xlu0 %520
        %v522 = vsub.f32 %v517, %v521
        %v523 = vmul.f32 %v522, 1.442695
        %v524 = vpow.pop %v523
        %v525 = vsel %vm428, %v524, 0.0
        %526 = vadd.xlane.f32.xlu0 %v525
        %v527 = vpop.xlane.xlu0 %526
        %v528 = vrcp.pop %v527
        %v529 = vmul.f32 %v524, %v528
        %530 = vrot.lane.b32.xlu0 %v418, 56
        %v531 = vpop.permute.xlu0 %530
        %v534 = vsel %vm428, %v529, 0
        %536 = vmatpush.msra.mxu0 0.0
        %537 = vmatpush.msra.mxu0 0.0
        %538 = vmatpush.msra.mxu0 0.0
        %539 = vmatpush.msra.mxu0 0.0
        %540 = vmatpush.msra.mxu0 0.0
        %541 = vmatpush.msra.mxu0 0.0
        %542 = vmatpush.msra.mxu0 0.0
        %543 = vmatpush.msra.mxu0 0.0
        %544 = vmatpush.msra.mxu0 0.0
        %545 = vmatpush.msra.mxu0 0.0
        %546 = vmatpush.msra.mxu0 0.0
        %547 = vmatpush.msra.mxu0 0.0
        %548 = vmatpush.msra.mxu0 0.0
        %549 = vmatpush.msra.mxu0 0.0
        %550 = vmatpush.msra.mxu0 0.0
        %551 = vmatpush.msra.mxu0 %v531
        %552 = vmatmul.f32.gmra.mxu0 %v534
        %v553 = vpop.f32.mrf.mxu0
        %v554 = vadd.f32 0.0, %v553
        %555 = vdwg.mxu0
        %556 = vrot.lane.b32.xlu0 %v421, 112
        %v557 = vpop.permute.xlu0 %556
        %558 = vrot.lane.b32.xlu0 %v418, 80
        %v559 = vpop.permute.xlu0 %558
        %v560 = vsel %vm428, %v557, 0
        %v562 = vsel %vm428, %v559, 0
        %564 = vmatpush.xpose.msra.mxu0 0.0
        %565 = vmatpush.xpose.msra.mxu0 0.0
        %566 = vmatpush.xpose.msra.mxu0 0.0
        %567 = vmatpush.xpose.msra.mxu0 0.0
        %568 = vmatpush.xpose.msra.mxu0 0.0
        %569 = vmatpush.xpose.msra.mxu0 0.0
        %570 = vmatpush.xpose.msra.mxu0 0.0
        %571 = vmatpush.xpose.msra.mxu0 0.0
        %572 = vmatpush.xpose.msra.mxu0 0.0
        %573 = vmatpush.xpose.msra.mxu0 0.0
        %574 = vmatpush.xpose.msra.mxu0 0.0
        %575 = vmatpush.xpose.msra.mxu0 0.0
        %576 = vmatpush.xpose.msra.mxu0 0.0
        %577 = vmatpush.xpose.msra.mxu0 0.0
        %578 = vmatpush.xpose.msra.mxu0 0.0
        %579 = vmatpush.xpose.msra.mxu0 %v562
        %580 = vmatmul.f32.gmra.mxu0 %v560
        %v581 = vpop.f32.mrf.mxu0
        %v582 = vadd.f32 %v423, %v581
        %583 = vdwg.mxu0
        %v584 = vsel %vm428, %v582, -inf
        %585 = vmax.xlane.f32.xlu0 %v584
        %v586 = vpop.xlane.xlu0 %585
        %v587 = vsub.f32 %v582, %v586
        %v588 = vmul.f32 %v587, 1.442695
        %v589 = vpow.pop %v588
        %v590 = vsel %vm428, %v589, 0.0
        %591 = vadd.xlane.f32.xlu0 %v590
        %v592 = vpop.xlane.xlu0 %591
        %v593 = vrcp.pop %v592
        %v594 = vmul.f32 %v589, %v593
        %595 = vrot.lane.b32.xlu0 %v418, 48
        %v596 = vpop.permute.xlu0 %595
        %v599 = vsel %vm428, %v594, 0
        %601 = vmatpush.msra.mxu0 0.0
        %602 = vmatpush.msra.mxu0 0.0
        %603 = vmatpush.msra.mxu0 0.0
        %604 = vmatpush.msra.mxu0 0.0
        %605 = vmatpush.msra.mxu0 0.0
        %606 = vmatpush.msra.mxu0 0.0
        %607 = vmatpush.msra.mxu0 0.0
        %608 = vmatpush.msra.mxu0 0.0
        %609 = vmatpush.msra.mxu0 0.0
        %610 = vmatpush.msra.mxu0 0.0
        %611 = vmatpush.msra.mxu0 0.0
        %612 = vmatpush.msra.mxu0 0.0
        %613 = vmatpush.msra.mxu0 0.0
        %614 = vmatpush.msra.mxu0 0.0
        %615 = vmatpush.msra.mxu0 0.0
        %616 = vmatpush.msra.mxu0 %v596
        %617 = vmatmul.f32.gmra.mxu0 %v599
        %v618 = vpop.f32.mrf.mxu0
        %v619 = vadd.f32 0.0, %v618
        %620 = vdwg.mxu0
        %621 = vrot.lane.b32.xlu0 %v421, 104
        %v622 = vpop.permute.xlu0 %621
        %623 = vrot.lane.b32.xlu0 %v418, 72
        %v624 = vpop.permute.xlu0 %623
        %v625 = vsel %vm428, %v622, 0
        %v627 = vsel %vm428, %v624, 0
        %629 = vmatpush.xpose.msra.mxu0 0.0
        %630 = vmatpush.xpose.msra.mxu0 0.0
        %631 = vmatpush.xpose.msra.mxu0 0.0
        %632 = vmatpush.xpose.msra.mxu0 0.0
        %633 = vmatpush.xpose.msra.mxu0 0.0
        %634 = vmatpush.xpose.msra.mxu0 0.0
        %635 = vmatpush.xpose.msra.mxu0 0.0
        %636 = vmatpush.xpose.msra.mxu0 0.0
        %637 = vmatpush.xpose.msra.mxu0 0.0
        %638 = vmatpush.xpose.msra.mxu0 0.0
        %639 = vmatpush.xpose.msra.mxu0 0.0
        %640 = vmatpush.xpose.msra.mxu0 0.0
        %641 = vmatpush.xpose.msra.mxu0 0.0
        %642 = vmatpush.xpose.msra.mxu0 0.0
        %643 = vmatpush.xpose.msra.mxu0 0.0
        %644 = vmatpush.xpose.msra.mxu0 %v627
        %645 = vmatmul.f32.gmra.mxu0 %v625
        %v646 = vpop.f32.mrf.mxu0
        %v647 = vadd.f32 %v423, %v646
        %648 = vdwg.mxu0
        %v649 = vsel %vm428, %v647, -inf
        %650 = vmax.xlane.f32.xlu0 %v649
        %v651 = vpop.xlane.xlu0 %650
        %v652 = vsub.f32 %v647, %v651
        %v653 = vmul.f32 %v652, 1.442695
        %v654 = vpow.pop %v653
        %v655 = vsel %vm428, %v654, 0.0
        %656 = vadd.xlane.f32.xlu0 %v655
        %v657 = vpop.xlane.xlu0 %656
        %v658 = vrcp.pop %v657
        %v659 = vmul.f32 %v654, %v658
        %660 = vrot.lane.b32.xlu0 %v418, 40
        %v661 = vpop.permute.xlu0 %660
        %v664 = vsel %vm428, %v659, 0
        %666 = vmatpush.msra.mxu0 0.0
        %667 = vmatpush.msra.mxu0 0.0
        %668 = vmatpush.msra.mxu0 0.0
        %669 = vmatpush.msra.mxu0 0.0
        %670 = vmatpush.msra.mxu0 0.0
        %671 = vmatpush.msra.mxu0 0.0
        %672 = vmatpush.msra.mxu0 0.0
        %673 = vmatpush.msra.mxu0 0.0
        %674 = vmatpush.msra.mxu0 0.0
        %675 = vmatpush.msra.mxu0 0.0
        %676 = vmatpush.msra.mxu0 0.0
        %677 = vmatpush.msra.mxu0 0.0
        %678 = vmatpush.msra.mxu0 0.0
        %679 = vmatpush.msra.mxu0 0.0
        %680 = vmatpush.msra.mxu0 0.0
        %681 = vmatpush.msra.mxu0 %v661
        %682 = vmatmul.f32.gmra.mxu0 %v664
        %v683 = vpop.f32.mrf.mxu0
        %v684 = vadd.f32 0.0, %v683
        %685 = vdwg.mxu0
        %687 = vrot.lane.b32.xlu0 %v554, 8
        %v688 = vpop.permute.xlu0 %687
        %691 = vrot.lane.b32.xlu0 %v619, 16
        %v692 = vpop.permute.xlu0 %691
        %695 = vrot.lane.b32.xlu0 %v684, 24
        %v696 = vpop.permute.xlu0 %695
        %v698 = vsel %vm428, %v489, %v688
        %vm699 = vcmask 130048
        %v700 = vsel %vm699, %v698, %v692
        %vm701 = vcmask 195584
        %v702 = vsel %vm701, %v700, %v696
        %v703 = vld [vmem:[#allocation2] sm:$0xff]
        %v704 = vld [vmem:[#allocation2 + $0x8] sm:$0xff]
        %v705 = vld [vmem:[#allocation2 + $0x10] sm:$0xff]
        %v706 = vld [vmem:[#allocation2 + $0x18] sm:$0xff]
        %v707 = vld [vmem:[%s7] sm:$0x1]
        %v709 = vperm.slane %v707, 0
        %v712 = vsel %vm335, %v702, 0
        %714 = vmatpush.msra.mxu0 0.0
        %715 = vmatpush.msra.mxu0 0.0
        %716 = vmatpush.msra.mxu0 0.0
        %717 = vmatpush.msra.mxu0 0.0
        %718 = vmatpush.msra.mxu0 0.0
        %719 = vmatpush.msra.mxu0 0.0
        %720 = vmatpush.msra.mxu0 0.0
        %721 = vmatpush.msra.mxu0 0.0
        %722 = vmatpush.msra.mxu0 0.0
        %723 = vmatpush.msra.mxu0 0.0
        %724 = vmatpush.msra.mxu0 0.0
        %725 = vmatpush.msra.mxu0 0.0
        %726 = vmatpush.msra.mxu0 %v706
        %727 = vmatpush.msra.mxu0 %v705
        %728 = vmatpush.msra.mxu0 %v704
        %729 = vmatpush.msra.mxu0 %v703
        %730 = vmatmul.f32.gmra.mxu0 %v712
        %v731 = vpop.f32.mrf.mxu0
        %v732 = vadd.f32 %v709, %v731
        %733 = vdwg.mxu0
        %v734 = vadd.f32 %v332, %v732
        %735 = vst.msk [vmem:[%s331] sm:$0xff] %vm335, %v734
        %p736 = scmp.lt.s32.totalorder %s20, 1
        %s737 = scalar_select %p736, %s20, 1
        %s738 = smul.addr %s737, 8
        %s739 = scalar_lea.vmem %s8, %s738
        // Predicated region
        $region57: #{encoder_forward.7} parent=51 // pred_check
          %p740 = pneg %p216
        $region58: #{encoder_forward.7} parent=51 // pred_check_branch
          %742 = sbr.rel (%p740) target = $region60
        $region59: #{encoder_forward.7} parent=51 // pred_region
          _
        $region60: #{encoder_forward.7} parent=51 // pred_fallthru
          _
      $region52: #{encoder_forward.7} parent=5 // pred_fallthru
        _
      %p743 = scmp.le.s32.totalorder 2, %s15
      // Predicated region
      $region61: #{encoder_forward.7} parent=5 // pred_check
        %p744 = pneg %p743
      $region62: #{encoder_forward.7} parent=5 // pred_check_branch
        %746 = sbr.rel (%p744) target = $region64
      $region63: #{encoder_forward.7} parent=5 // pred_region
        %s747 = ssub.s32 %s15, 2
        // Predicated region
        $region65: #{encoder_forward.7} parent=63 // pred_check
          %p748 = pneg %p222
        $region66: #{encoder_forward.7} parent=63 // pred_check_branch
          %750 = sbr.rel (%p748) target = $region68
        $region67: #{encoder_forward.7} parent=63 // pred_region
          %p751 = scmp.lt.s32.totalorder %s21, 1
          %s752 = scalar_select %p751, %s21, 1
          %s753 = smul.addr %s752, 8
          %s754 = scalar_lea.vmem %s8, %s753
        $region68: #{encoder_forward.7} parent=63 // pred_fallthru
          _
      $region64: #{encoder_forward.7} parent=5 // pred_fallthru
        _
    $region6: #{encoder_forward.7} parent=1 // loop_footer
      %s19 = sadd.s32 1, %s15
    $region7: #{encoder_forward.7} parent=1 // loop_footer_branch
      %14 = sbr.rel target = $region3
    $region8: #{encoder_forward.7} parent=1 // loop_exit
      _
    %755 = vsyncpa [#allocation3], 1
    %s756 = scalar_lea.sflag [#allocation3], 1
    %757 = vsyncpa %s756, 1

// kernel: encoder_forward.9
$region0: #{encoder_forward.9}
  #allocation0 [shape = 'u32[]', space=smem, size = 0x4, offset = 0x4, fixed_abs, tag = 'smem constant byte address 0x4 - core index']
  #allocation1 [shape = 'u32[72,128]{1,0:T(1,128)}', space=vmem, size = 0x9000, scoped, tag = 'internal scratch']
  %s0 = inlined_call_operand.vmem [shape: f32[16,32], index: 0, kind: input, shape index: {}]
  %s1 = inlined_call_operand.vmem [shape: f32[1,32], index: 1, kind: input, shape index: {}]
  %s2 = inlined_call_operand.vmem [shape: f32[1,32], index: 2, kind: input, shape index: {}]
  %s3 = inlined_call_operand.hbm [shape: f32[16,32], index: 3, kind: output, shape index: {}]
  %s4 = sld [smem:[#allocation0]]
  $region22: #{encoder_forward.9} parent=0
    _
  %s6 = ssub.s32 1, %s4
  %s7 = scalar_select 0, %s6, %s4
  $region1: #{encoder_forward.9} parent=0
    #allocation2 [shape = 'u8[8192]{0}', space=vmem, size = 0x2000, scoped, tag = 'output window, operand 0, single buffered']
    #allocation3 [shape = 's32[1]{0}', space=sflag, size = 0x4, scoped, tag = 'scoped memory for encoder_forward.9']
    %8 = vsyncpa [#allocation3], 0
    // Predicated region
    $region2: #{encoder_forward.9} parent=1 // pred_check
      _
    $region3: #{encoder_forward.9} parent=1 // pred_check_branch
      %10 = sbr.rel (0) target = $region5
    $region4: #{encoder_forward.9} parent=1 // pred_region
      _
    $region5: #{encoder_forward.9} parent=1 // pred_fallthru
      _
    // Predicated region
    $region6: #{encoder_forward.9} parent=1 // pred_check
      _
    $region7: #{encoder_forward.9} parent=1 // pred_check_branch
      %12 = sbr.rel (0) target = $region9
    $region8: #{encoder_forward.9} parent=1 // pred_region
      _
    $region9: #{encoder_forward.9} parent=1 // pred_fallthru
      _
    // Predicated region
    $region10: #{encoder_forward.9} parent=1 // pred_check
      _
    $region11: #{encoder_forward.9} parent=1 // pred_check_branch
      %14 = sbr.rel (0) target = $region13
    $region12: #{encoder_forward.9} parent=1 // pred_region
      _
    $region13: #{encoder_forward.9} parent=1 // pred_fallthru
      _
    %v15 = vld [vmem:[%s0] sm:$0xff]
    %v16 = vld [vmem:[%s0 + $0x8] sm:$0xff]
    %v17 = vld [vmem:[%s1] sm:$0x1]
    %v18 = vld [vmem:[%s2] sm:$0x1]
    %vm19 = vcmask 261120
    %v20 = vsel %vm19, %v15, 0.0
    %21 = vadd.xlane.f32.xlu0 %v20
    %v22 = vpop.xlane.xlu0 %21
    %v23 = vsel %vm19, %v16, 0.0
    %24 = vadd.xlane.f32.xlu0 %v23
    %v25 = vpop.xlane.xlu0 %24
    %v26 = vrcp.pop 32.0
    %v27 = vmul.f32 32.0, %v26
    %v28 = vsub.f32 1.0, %v27
    %v29 = vmul.f32 %v26, %v28
    %v30 = vadd.f32 %v26, %v29
    %vm31 = vweird.f32 %v26
    %v32 = vsel %vm31, %v26, %v30
    %v33 = vmul.f32 %v22, %v32
    %v34 = vmul.f32 %v25, %v32
    %v35 = vsub.f32 %v15, %v33
    %v36 = vsub.f32 %v16, %v34
    %v37 = vmul.f32 %v35, %v35
    %v38 = vmul.f32 %v36, %v36
    %v39 = vsel %vm19, %v37, 0.0
    %40 = vadd.xlane.f32.xlu0 %v39
    %v41 = vpop.xlane.xlu0 %40
    %v42 = vsel %vm19, %v38, 0.0
    %43 = vadd.xlane.f32.xlu0 %v42
    %v44 = vpop.xlane.xlu0 %43
    %v45 = vmul.f32 %v41, 0.032258064
    %v46 = vmul.f32 %v44, 0.032258064
    %v47 = vrsqrt.pop %v45
    %v48 = vmul.f32 %v47, %v45
    %v49 = vmul.f32 %v48, %v47
    %v50 = vmul.f32 0.5, %v49
    %v51 = vsub.f32 1.5, %v50
    %v52 = vmul.f32 %v47, %v51
    %v53 = vmul.f32 %v45, %v52
    %vm54 = vcmp.eq.f32.partialorder %v45, inf
    %v55 = vsel %vm54, %v45, %v53
    %vm56 = vcmp.eq.f32.partialorder %v45, 0.0
    %v57 = vand.u32 %v45, 2147483648
    %v58 = vsel %vm56, %v57, %v55
    %v59 = vrsqrt.pop %v46
    %v60 = vmul.f32 %v59, %v46
    %v61 = vmul.f32 %v60, %v59
    %v62 = vmul.f32 0.5, %v61
    %v63 = vsub.f32 1.5, %v62
    %v64 = vmul.f32 %v59, %v63
    %v65 = vmul.f32 %v46, %v64
    %vm66 = vcmp.eq.f32.partialorder %v46, inf
    %v67 = vsel %vm66, %v46, %v65
    %vm68 = vcmp.eq.f32.partialorder %v46, 0.0
    %v69 = vand.u32 %v46, 2147483648
    %v70 = vsel %vm68, %v69, %v67
    %v72 = vperm.slane %v17, 0
    %v74 = vmul.f32 %v72, %v35
    %v75 = vmul.f32 %v72, %v36
    %v76 = vadd.f32 %v58, 1e-06
    %v77 = vadd.f32 %v70, 1e-06
    %v78 = vrcp.pop %v76
    %v79 = vmul.f32 %v76, %v78
    %v80 = vsub.f32 1.0, %v79
    %v81 = vmul.f32 %v78, %v80
    %v82 = vadd.f32 %v78, %v81
    %vm83 = vweird.f32 %v76
    %vm84 = vweird.f32 %v78
    %vm85 = vmor %vm83, %vm84
    %v86 = vsel %vm85, %v78, %v82
    %v87 = vand.u32 2147483647, %v76
    %vm88 = vcmp.eq.f32.partialorder %v87, 8.507059e+37
    %v89 = vand.u32 %v76, 2147483648
    %v90 = vor.u32 1.1754944e-38, %v89
    %v91 = vsel %vm88, %v90, %v86
    %v92 = vmul.f32 %v74, %v91
    %v93 = vrcp.pop %v77
    %v94 = vmul.f32 %v77, %v93
    %v95 = vsub.f32 1.0, %v94
    %v96 = vmul.f32 %v93, %v95
    %v97 = vadd.f32 %v93, %v96
    %vm98 = vweird.f32 %v77
    %vm99 = vweird.f32 %v93
    %vm100 = vmor %vm98, %vm99
    %v101 = vsel %vm100, %v93, %v97
    %v102 = vand.u32 2147483647, %v77
    %vm103 = vcmp.eq.f32.partialorder %v102, 8.507059e+37
    %v104 = vand.u32 %v77, 2147483648
    %v105 = vor.u32 1.1754944e-38, %v104
    %v106 = vsel %vm103, %v105, %v101
    %v107 = vmul.f32 %v75, %v106
    %v109 = vperm.slane %v18, 0
    %v111 = vadd.f32 %v92, %v109
    %v112 = vadd.f32 %v107, %v109
    %113 = vst.msk [vmem:[#allocation2] sm:$0xff] %vm19, %v111
    %114 = vst.msk [vmem:[#allocation2 + $0x8] sm:$0xff] %vm19, %v112
    // Predicated region
    $region14: #{encoder_forward.9} parent=1 // pred_check
      _
    $region15: #{encoder_forward.9} parent=1 // pred_check_branch
      %116 = sbr.rel (0) target = $region17
    $region16: #{encoder_forward.9} parent=1 // pred_region
      %118 = vsyncadd [#allocation3], 0
      %s119 = sshll.u32 [#allocation2], 4
      %s120 = int_to_ptr.vmem [resolvable:$true] %s119
      %s121 = sshll.u32 %s3, 4
      %s122 = int_to_ptr.hbm [resolvable:$true] %s121
      %127 = dma.vmem_to_hbm [thread:$0]  %s120, 256, %s122, [#allocation3], 128, 128, 8
    $region17: #{encoder_forward.9} parent=1 // pred_fallthru
      _
    // Predicated region
    $region18: #{encoder_forward.9} parent=1 // pred_check
      _
    $region19: #{encoder_forward.9} parent=1 // pred_check_branch
      %129 = sbr.rel (0) target = $region21
    $region20: #{encoder_forward.9} parent=1 // pred_region
      %131 = dma.done [#allocation3], 256
    $region21: #{encoder_forward.9} parent=1 // pred_fallthru
      _
    %132 = vsyncpa [#allocation3], 1

</llo_original>
